<compile_context>
chip_gen: v6e
topology: v6e:2x2x1
jax: 0.10.0
libtpu: 0.0.40
codegen_flags: <defaults>
</compile_context>

<pallas_src>
import math
from functools import partial

import jax
import jax.numpy as jnp
from jax.experimental import pallas as pl
from jax.experimental.pallas import tpu as pltpu

ATTN_SCALE = 8.0        # Attention(..., scale=8) in the reference module
_LN_EPS = 1e-5          # F.layer_norm default
_L2_EPS_SQ = 1e-24      # (F.normalize eps=1e-12)^2, applied to the squared norm
_NEG_BIG = -1e30        # additive mask bias (exp underflows to 0; null col keeps denom>0)

# Matmul operand dtype. float32 keeps exact parity with the PyTorch module;
# set to jnp.bfloat16 for ~3x MXU throughput / half the weight bytes at real sizes.
MM_DTYPE = jnp.float32


# ----------------------------------------------------------------------------
# in-kernel helpers
# ----------------------------------------------------------------------------

def _mm(a, b):
    return jnp.dot(a.astype(MM_DTYPE), b.astype(MM_DTYPE),
                   preferred_element_type=jnp.float32)


def _mm_t(a, b):   # a @ b.T (contract last dims)
    return jax.lax.dot_general(a.astype(MM_DTYPE), b.astype(MM_DTYPE),
                               (((1,), (1,)), ((), ())),
                               preferred_element_type=jnp.float32)


def _ln(x, g):
    # F.layer_norm(x, (D,), gamma, beta=0), eps=1e-5
    mu = jnp.mean(x, axis=-1, keepdims=True)
    xc = x - mu
    var = jnp.mean(xc * xc, axis=-1, keepdims=True)
    return xc * jax.lax.rsqrt(var + _LN_EPS) * g


def _l2n(t):
    # F.normalize(t, dim=-1): t / max(||t||, 1e-12) == t * rsqrt(max(sumsq, 1e-24))
    ss = jnp.sum(t * t, axis=-1, keepdims=True)
    return t * jax.lax.rsqrt(jnp.maximum(ss, _L2_EPS_SQ))


def _gelu(a):
    # exact erf-based GELU (torch F.gelu default)
    return 0.5 * a * (1.0 + jax.lax.erf(a * (1.0 / math.sqrt(2.0))))


# ----------------------------------------------------------------------------
# fused whole-stack kernel: one grid step = (batch element, layer)
# ----------------------------------------------------------------------------

def _stack_kernel(*refs, heads, dim_head, inner, masked):
    idx = 0
    x_ref = refs[idx]; idx += 1
    c_ref = refs[idx]; idx += 1
    bias_ref = None
    if masked:
        bias_ref = refs[idx]; idx += 1
    (sa_g, sa_wq, sa_wkv, sa_wo, sa_qs, sa_ks, sa_nk, sa_nv,
     ca_g, ca_wq, ca_wkv, ca_wo, ca_qs, ca_ks, ca_nk, ca_nv,
     ff_g1, ff_w1, ff_g2, ff_w2, fin_g,
     o_ref, carry, oheads) = refs[idx:]

    l = pl.program_id(1)
    is_last = l == pl.num_programs(1) - 1
    hdh = heads * dim_head

    @pl.when(l == 0)
    def _():                      # new batch element: load x into the VMEM carry
        carry[...] = x_ref[0]

    x = carry[...]                # (N, D) running residual stream
    ctx = c_ref[0]                # (M, D) context (NOT LayerNormed, as in reference)
    bias = bias_ref[0] if masked else None   # (1, M) additive mask bias

    def attn_block(x_in, kv_src, g, wq, wkv, wo, qs, ks, nk, nv, b_):
        xn = _ln(x_in, g[0])                          # LayerNorm(dim)
        kv = xn if kv_src is None else kv_src         # self: normed x; cross: raw ctx
        q_all = _mm(xn, wq[0])                        # (N, H*Dh)   fused over heads
        kv_all = _mm(kv, wkv[0])                      # (M, 2*H*Dh) fused over heads
        qs_v, ks_v = qs[0], ks[0]                     # (1, Dh) = learned scale * sqrt(8)
        nk_v, nv_v = nk[0], nv[0]                     # (H, Dh)
        for h in range(heads):                        # unrolled; softmax is tiny
            lo = h * dim_head
            hi = lo + dim_head
            qh = _l2n(q_all[:, lo:hi]) * qs_v                         # (N, Dh)
            kh = _l2n(kv_all[:, lo:hi]) * ks_v                        # (M, Dh)
            vh = kv_all[:, hdh + lo:hdh + hi]                         # (M, Dh)
            nkh = _l2n(nk_v[h:h + 1, :]) * ks_v                       # (1, Dh) null key
            nvh = nv_v[h:h + 1, :]                                    # (1, Dh) null value
            sim = _mm_t(qh, kh)                                       # (N, M)
            if b_ is not None:
                sim = sim + b_                                        # additive mask bias
            sim_n = jnp.sum(qh * nkh, axis=-1, keepdims=True)         # (N, 1) null column
            m = jnp.maximum(jnp.max(sim, axis=-1, keepdims=True), sim_n)
            p = jnp.exp(sim - m)
            pn = jnp.exp(sim_n - m)
            inv = pl.reciprocal(jnp.sum(p, axis=-1, keepdims=True) + pn, approx=False)
            oheads[:, lo:hi] = (_mm(p, vh) + pn * nvh) * inv          # (N, Dh)
        # single fused output projection + residual
        return x_in + _mm(oheads[...], wo[0])                         # (N, D)

    # self-attention + residual
    x1 = attn_block(x, None, sa_g, sa_wq, sa_wkv, sa_wo,
                    sa_qs, sa_ks, sa_nk, sa_nv, None)
    # cross-attention + residual
    x2 = attn_block(x1, ctx, ca_g, ca_wq, ca_wkv, ca_wo,
                    ca_qs, ca_ks, ca_nk, ca_nv, bias)
    # feed-forward: LN -> W1 -> GEGLU -> LN -> W2 -> + residual
    h1 = _mm(_ln(x2, ff_g1[0]), ff_w1[0])             # (N, 2*inner)
    a = h1[:, :inner]                                 # GEGLU: gelu(first half)
    gate = h1[:, inner:]                              #        * second half
    act = _ln(gate * _gelu(a), ff_g2[0])
    x3 = x2 + _mm(act, ff_w2[0])

    carry[...] = x3                                   # carry to the next layer

    @pl.when(is_last)
    def _():                                          # final LayerNorm folded in
        o_ref[0] = _ln(x3, fin_g[...])


def transformer_blocks(x, params, heads, dim_head, context, context_mask=None):
    """Full TransformerBlocks forward in one pallas_call."""
    B, N, D = x.shape
    M = context.shape[1]
    L = params["sa_wq"].shape[0]
    inner = params["ff_g2"].shape[-1]
    hdh = heads * dim_head
    masked = context_mask is not None

    args = [x, context]
    in_specs = [
        pl.BlockSpec((1, N, D), lambda b, l: (b, 0, 0)),
        pl.BlockSpec((1, M, D), lambda b, l: (b, 0, 0)),
    ]
    if masked:
        bias = jnp.where(context_mask, 0.0, _NEG_BIG).astype(jnp.float32).reshape(B, 1, M)
        args.append(bias)
        in_specs.append(pl.BlockSpec((1, 1, M), lambda b, l: (b, 0, 0)))

    def wspec(arr):   # per-layer weight slab: select layer l along the leading axis
        s = arr.shape
        return pl.BlockSpec((1,) + s[1:], lambda b, l: (l,) + (0,) * (len(s) - 1))

    weight_names = ["sa_g", "sa_wq", "sa_wkv", "sa_wo", "sa_qs", "sa_ks", "sa_nk", "sa_nv",
                    "ca_g", "ca_wq", "ca_wkv", "ca_wo", "ca_qs", "ca_ks", "ca_nk", "ca_nv",
                    "ff_g1", "ff_w1", "ff_g2", "ff_w2"]
    for name in weight_names:
        args.append(params[name])
        in_specs.append(wspec(params[name]))

    args.append(params["final_g"])
    in_specs.append(pl.BlockSpec((1, D), lambda b, l: (0, 0)))

    kernel = partial(_stack_kernel, heads=heads, dim_head=dim_head,
                     inner=inner, masked=masked)
    grid_spec = pltpu.PrefetchScalarGridSpec(
        num_scalar_prefetch=0,
        grid=(B, L),                                   # batch outer, layers inner
        in_specs=in_specs,
        out_specs=pl.BlockSpec((1, N, D), lambda b, l: (b, 0, 0)),
        scratch_shapes=[pltpu.VMEM((N, D), jnp.float32),     # residual-stream carry
                        pltpu.VMEM((N, hdh), jnp.float32)],  # per-head attn outputs
    )
    return pl.pallas_call(
        kernel,
        out_shape=jax.ShapeDtypeStruct((B, N, D), jnp.float32),
        grid_spec=grid_spec,
        compiler_params=pltpu.CompilerParams(
            dimension_semantics=("parallel", "arbitrary")),
    )(*args)


# ----------------------------------------------------------------------------
# deterministic parameter init (synthetic, structurally matching the PyTorch module;
# weights are packed once into depth-stacked slabs so the kernel never re-packs)
# ----------------------------------------------------------------------------

def init_transformer_params(key, dim, depth, heads, dim_head, ff_mult):
    inner_attn = heads * dim_head
    inner_ff = int(dim * ff_mult * 2 / 3)
    s = math.sqrt(ATTN_SCALE)   # fold the constant attention scale into q/k scales

    def attn_layer(k):
        k1, k2, k3, k4 = jax.random.split(k, 4)
        null_kv = jax.random.normal(k1, (2, heads, dim_head), jnp.float32)
        wq = jax.random.normal(k2, (dim, inner_attn), jnp.float32) * 0.05
        wkv = jax.random.normal(k3, (dim, inner_attn * 2), jnp.float32) * 0.05
        wo = jax.random.normal(k4, (inner_attn, dim), jnp.float32) * 0.05
        return dict(
            g=jnp.ones((1, dim), jnp.float32),
            wq=wq, wkv=wkv, wo=wo,
            qs=jnp.full((1, dim_head), s, jnp.float32),   # q_scale * sqrt(8)
            ks=jnp.full((1, dim_head), s, jnp.float32),   # k_scale * sqrt(8)
            nk=null_kv[0], nv=null_kv[1])

    def ff_layer(k):
        k1, k2 = jax.random.split(k, 2)
        return dict(
            g1=jnp.ones((1, dim), jnp.float32),
            w1=jax.random.normal(k1, (dim, inner_ff * 2), jnp.float32) * 0.05,
            g2=jnp.ones((1, inner_ff), jnp.float32),
            w2=jax.random.normal(k2, (inner_ff, dim), jnp.float32) * 0.05)

    sa, ca, ff = [], [], []
    for _ in range(depth):
        ks_, kc_, kf_, key = jax.random.split(key, 4)
        sa.append(attn_layer(ks_)); ca.append(attn_layer(kc_)); ff.append(ff_layer(kf_))

    def stack(dicts, prefix):
        return {prefix + name: jnp.stack([d[name] for d in dicts], axis=0)
                for name in dicts[0]}

    params = {}
    params.update(stack(sa, "sa_"))
    params.update(stack(ca, "ca_"))
    params.update(stack(ff, "ff_"))
    params["final_g"] = jnp.ones((1, dim), jnp.float32)
    return params


# ----------------------------------------------------------------------------

if __name__ == "__main__":
    B, N, M = 2, 8, 8
    DIM, DEPTH, HEADS, DIM_HEAD, FF_MULT = 48, 2, 4, 16, 4

    key = jax.random.PRNGKey(0)
    kx, kc, kp = jax.random.split(key, 3)

    x = jax.random.normal(kx, (B, N, DIM), jnp.float32)
    context = jax.random.normal(kc, (B, M, DIM), jnp.float32)
    # boolean context mask (second batch element has 5 valid context tokens)
    lengths = jnp.array([M, 5], dtype=jnp.int32)
    context_mask = jnp.arange(M)[None, :] < lengths[:, None]

    params = init_transformer_params(kp, DIM, DEPTH, HEADS, DIM_HEAD, FF_MULT)

    fwd = jax.jit(partial(transformer_blocks, heads=HEADS, dim_head=DIM_HEAD))
    out = fwd(x, params, context=context, context_mask=context_mask)
    jax.block_until_ready(out)
    assert out.shape == (B, N, DIM)
    assert bool(jnp.all(jnp.isfinite(out)))
    print("KERNEL_OK")
</pallas_src>

<mosaic_0001>
module attributes {stable_mosaic.version = 11 : i64} {
  func.func @_stack_kernel(%arg0: i32, %arg1: i32, %arg2: memref<1x8x48xf32, #tpu.memory_space<vmem>>, %arg3: memref<1x8x48xf32, #tpu.memory_space<vmem>>, %arg4: memref<1x1x8xf32, #tpu.memory_space<vmem>>, %arg5: memref<1x1x48xf32, #tpu.memory_space<vmem>>, %arg6: memref<1x48x64xf32, #tpu.memory_space<vmem>>, %arg7: memref<1x48x128xf32, #tpu.memory_space<vmem>>, %arg8: memref<1x64x48xf32, #tpu.memory_space<vmem>>, %arg9: memref<1x1x16xf32, #tpu.memory_space<vmem>>, %arg10: memref<1x1x16xf32, #tpu.memory_space<vmem>>, %arg11: memref<1x4x16xf32, #tpu.memory_space<vmem>>, %arg12: memref<1x4x16xf32, #tpu.memory_space<vmem>>, %arg13: memref<1x1x48xf32, #tpu.memory_space<vmem>>, %arg14: memref<1x48x64xf32, #tpu.memory_space<vmem>>, %arg15: memref<1x48x128xf32, #tpu.memory_space<vmem>>, %arg16: memref<1x64x48xf32, #tpu.memory_space<vmem>>, %arg17: memref<1x1x16xf32, #tpu.memory_space<vmem>>, %arg18: memref<1x1x16xf32, #tpu.memory_space<vmem>>, %arg19: memref<1x4x16xf32, #tpu.memory_space<vmem>>, %arg20: memref<1x4x16xf32, #tpu.memory_space<vmem>>, %arg21: memref<1x1x48xf32, #tpu.memory_space<vmem>>, %arg22: memref<1x48x256xf32, #tpu.memory_space<vmem>>, %arg23: memref<1x1x128xf32, #tpu.memory_space<vmem>>, %arg24: memref<1x128x48xf32, #tpu.memory_space<vmem>>, %arg25: memref<1x48xf32, #tpu.memory_space<vmem>>, %arg26: memref<1x8x48xf32, #tpu.memory_space<vmem>>, %arg27: memref<8x48xf32, #tpu.memory_space<vmem>>, %arg28: memref<8x64xf32, #tpu.memory_space<vmem>>) attributes {dimension_semantics = [#tpu.dimension_semantics<parallel>, #tpu.dimension_semantics<arbitrary>], iteration_bounds = array<i64: 2, 2>, scalar_prefetch = 0 : i64, scratch_operands = 2 : i64, tpu.core_type = #tpu.core_type<tc>, window_params = [{transform_indices = @transform_0, window_bounds = array<i64: 1, 8, 48>}, {transform_indices = @transform_1, window_bounds = array<i64: 1, 8, 48>}, {transform_indices = @transform_2, window_bounds = array<i64: 1, 1, 8>}, {transform_indices = @transform_3, window_bounds = array<i64: 1, 1, 48>}, {transform_indices = @transform_4, window_bounds = array<i64: 1, 48, 64>}, {transform_indices = @transform_5, window_bounds = array<i64: 1, 48, 128>}, {transform_indices = @transform_6, window_bounds = array<i64: 1, 64, 48>}, {transform_indices = @transform_7, window_bounds = array<i64: 1, 1, 16>}, {transform_indices = @transform_8, window_bounds = array<i64: 1, 1, 16>}, {transform_indices = @transform_9, window_bounds = array<i64: 1, 4, 16>}, {transform_indices = @transform_10, window_bounds = array<i64: 1, 4, 16>}, {transform_indices = @transform_11, window_bounds = array<i64: 1, 1, 48>}, {transform_indices = @transform_12, window_bounds = array<i64: 1, 48, 64>}, {transform_indices = @transform_13, window_bounds = array<i64: 1, 48, 128>}, {transform_indices = @transform_14, window_bounds = array<i64: 1, 64, 48>}, {transform_indices = @transform_15, window_bounds = array<i64: 1, 1, 16>}, {transform_indices = @transform_16, window_bounds = array<i64: 1, 1, 16>}, {transform_indices = @transform_17, window_bounds = array<i64: 1, 4, 16>}, {transform_indices = @transform_18, window_bounds = array<i64: 1, 4, 16>}, {transform_indices = @transform_19, window_bounds = array<i64: 1, 1, 48>}, {transform_indices = @transform_20, window_bounds = array<i64: 1, 48, 256>}, {transform_indices = @transform_21, window_bounds = array<i64: 1, 1, 128>}, {transform_indices = @transform_22, window_bounds = array<i64: 1, 128, 48>}, {pipeline_mode = #tpu.pipeline_mode<synchronous>, transform_indices = @transform_23, window_bounds = array<i64: 1, 48>}, {transform_indices = @transform_24, window_bounds = array<i64: 1, 8, 48>}]} {
    %c1_i32 = arith.constant 1 : i32
    %0 = arith.cmpi eq, %arg1, %c1_i32 : i32
    %c0_i32 = arith.constant 0 : i32
    %1 = arith.cmpi eq, %arg1, %c0_i32 : i32
    %2 = arith.extui %1 : i1 to i32
    %c0_i32_0 = arith.constant 0 : i32
    %3 = arith.cmpi ne, %2, %c0_i32_0 : i32
    scf.if %3 {
      %c0_206 = arith.constant 0 : index
      %c0_207 = arith.constant 0 : index
      %c0_208 = arith.constant 0 : index
      %628 = vector.load %arg2[%c0_206, %c0_207, %c0_208] : memref<1x8x48xf32, #tpu.memory_space<vmem>>, vector<1x8x48xf32>
      %629 = vector.shape_cast %628 : vector<1x8x48xf32> to vector<8x48xf32>
      %c0_209 = arith.constant 0 : index
      %c0_210 = arith.constant 0 : index
      %630 = vector.load %arg27[%c0_209, %c0_210] : memref<8x48xf32, #tpu.memory_space<vmem>>, vector<8x48xf32>
      tpu.vector_store %arg27[%c0_209, %c0_210], %629 {strides = array<i32>} : memref<8x48xf32, #tpu.memory_space<vmem>>, vector<8x48xf32>,
    } else {
    }
    %c0 = arith.constant 0 : index
    %c0_1 = arith.constant 0 : index
    %4 = vector.load %arg27[%c0, %c0_1] : memref<8x48xf32, #tpu.memory_space<vmem>>, vector<8x48xf32>
    %c0_2 = arith.constant 0 : index
    %c0_3 = arith.constant 0 : index
    %c0_4 = arith.constant 0 : index
    %5 = vector.load %arg3[%c0_2, %c0_3, %c0_4] : memref<1x8x48xf32, #tpu.memory_space<vmem>>, vector<1x8x48xf32>
    %6 = vector.shape_cast %5 : vector<1x8x48xf32> to vector<8x48xf32>
    %c0_5 = arith.constant 0 : index
    %c0_6 = arith.constant 0 : index
    %c0_7 = arith.constant 0 : index
    %7 = vector.load %arg4[%c0_5, %c0_6, %c0_7] : memref<1x1x8xf32, #tpu.memory_space<vmem>>, vector<1x1x8xf32>
    %8 = vector.shape_cast %7 : vector<1x1x8xf32> to vector<1x8xf32>
    %c0_8 = arith.constant 0 : index
    %c0_9 = arith.constant 0 : index
    %c0_10 = arith.constant 0 : index
    %9 = vector.load %arg5[%c0_8, %c0_9, %c0_10] : memref<1x1x48xf32, #tpu.memory_space<vmem>>, vector<1x1x48xf32>
    %10 = vector.shape_cast %9 : vector<1x1x48xf32> to vector<1x48xf32>
    %cst = arith.constant dense<0.000000e+00> : vector<8xf32>
    %11 = vector.multi_reduction <add>, %4, %cst [1] : vector<8x48xf32> to vector<8xf32>
    %12 = vector.shape_cast %11 : vector<8xf32> to vector<8x1xf32>
    %cst_11 = arith.constant 4.800000e+01 : f32
    %13 = vector.broadcast %cst_11 : f32 to vector<8x1xf32>
    %14 = arith.divf %12, %13 : vector<8x1xf32>
    %15 = vector.broadcast %14 : vector<8x1xf32> to vector<8x48xf32>
    %16 = arith.subf %4, %15 : vector<8x48xf32>
    %17 = arith.mulf %16, %16 : vector<8x48xf32>
    %cst_12 = arith.constant dense<0.000000e+00> : vector<8xf32>
    %18 = vector.multi_reduction <add>, %17, %cst_12 [1] : vector<8x48xf32> to vector<8xf32>
    %19 = vector.shape_cast %18 : vector<8xf32> to vector<8x1xf32>
    %cst_13 = arith.constant 4.800000e+01 : f32
    %20 = vector.broadcast %cst_13 : f32 to vector<8x1xf32>
    %21 = arith.divf %19, %20 : vector<8x1xf32>
    %cst_14 = arith.constant 9.99999974E-6 : f32
    %22 = vector.broadcast %cst_14 : f32 to vector<8x1xf32>
    %23 = arith.addf %21, %22 : vector<8x1xf32>
    %24 = math.rsqrt %23 : vector<8x1xf32>
    %25 = vector.broadcast %24 : vector<8x1xf32> to vector<8x48xf32>
    %26 = arith.mulf %16, %25 : vector<8x48xf32>
    %27 = vector.broadcast %10 : vector<1x48xf32> to vector<8x48xf32>
    %28 = arith.mulf %26, %27 : vector<8x48xf32>
    %c0_15 = arith.constant 0 : index
    %c0_16 = arith.constant 0 : index
    %c0_17 = arith.constant 0 : index
    %29 = vector.load %arg6[%c0_15, %c0_16, %c0_17] : memref<1x48x64xf32, #tpu.memory_space<vmem>>, vector<1x48x64xf32>
    %30 = vector.shape_cast %29 : vector<1x48x64xf32> to vector<48x64xf32>
    %cst_18 = arith.constant dense<0.000000e+00> : vector<8x64xf32>
    %31 = tpu.matmul %28, %30, %cst_18 {dimension_numbers = #tpu.dot_dimension_numbers<[1], [0], [0], [1], [0, 0, 1, 1], [], []>} : vector<8x48xf32>, vector<48x64xf32>, vector<8x64xf32> -> vector<8x64xf32>
    %c0_19 = arith.constant 0 : index
    %c0_20 = arith.constant 0 : index
    %c0_21 = arith.constant 0 : index
    %32 = vector.load %arg7[%c0_19, %c0_20, %c0_21] : memref<1x48x128xf32, #tpu.memory_space<vmem>>, vector<1x48x128xf32>
    %33 = vector.shape_cast %32 : vector<1x48x128xf32> to vector<48x128xf32>
    %cst_22 = arith.constant dense<0.000000e+00> : vector<8x128xf32>
    %34 = tpu.matmul %28, %33, %cst_22 {dimension_numbers = #tpu.dot_dimension_numbers<[1], [0], [0], [1], [0, 0, 1, 1], [], []>} : vector<8x48xf32>, vector<48x128xf32>, vector<8x128xf32> -> vector<8x128xf32>
    %c0_23 = arith.constant 0 : index
    %c0_24 = arith.constant 0 : index
    %c0_25 = arith.constant 0 : index
    %35 = vector.load %arg9[%c0_23, %c0_24, %c0_25] : memref<1x1x16xf32, #tpu.memory_space<vmem>>, vector<1x1x16xf32>
    %36 = vector.shape_cast %35 : vector<1x1x16xf32> to vector<1x16xf32>
    %c0_26 = arith.constant 0 : index
    %c0_27 = arith.constant 0 : index
    %c0_28 = arith.constant 0 : index
    %37 = vector.load %arg10[%c0_26, %c0_27, %c0_28] : memref<1x1x16xf32, #tpu.memory_space<vmem>>, vector<1x1x16xf32>
    %38 = vector.shape_cast %37 : vector<1x1x16xf32> to vector<1x16xf32>
    %c0_29 = arith.constant 0 : index
    %c0_30 = arith.constant 0 : index
    %c0_31 = arith.constant 0 : index
    %39 = vector.load %arg11[%c0_29, %c0_30, %c0_31] : memref<1x4x16xf32, #tpu.memory_space<vmem>>, vector<1x4x16xf32>
    %40 = vector.shape_cast %39 : vector<1x4x16xf32> to vector<4x16xf32>
    %c0_32 = arith.constant 0 : index
    %c0_33 = arith.constant 0 : index
    %c0_34 = arith.constant 0 : index
    %41 = vector.load %arg12[%c0_32, %c0_33, %c0_34] : memref<1x4x16xf32, #tpu.memory_space<vmem>>, vector<1x4x16xf32>
    %42 = vector.shape_cast %41 : vector<1x4x16xf32> to vector<4x16xf32>
    %43 = vector.extract_strided_slice %31 {offsets = [0, 0], sizes = [8, 16], strides = [1, 1]} : vector<8x64xf32> to vector<8x16xf32>
    %44 = arith.mulf %43, %43 : vector<8x16xf32>
    %cst_35 = arith.constant dense<0.000000e+00> : vector<8xf32>
    %45 = vector.multi_reduction <add>, %44, %cst_35 [1] : vector<8x16xf32> to vector<8xf32>
    %46 = vector.shape_cast %45 : vector<8xf32> to vector<8x1xf32>
    %cst_36 = arith.constant 1.000000e-24 : f32
    %47 = vector.broadcast %cst_36 : f32 to vector<8x1xf32>
    %48 = arith.maximumf %46, %47 : vector<8x1xf32>
    %49 = math.rsqrt %48 : vector<8x1xf32>
    %50 = vector.broadcast %49 : vector<8x1xf32> to vector<8x16xf32>
    %51 = arith.mulf %43, %50 : vector<8x16xf32>
    %52 = vector.broadcast %36 : vector<1x16xf32> to vector<8x16xf32>
    %53 = arith.mulf %51, %52 : vector<8x16xf32>
    %54 = vector.extract_strided_slice %34 {offsets = [0, 0], sizes = [8, 16], strides = [1, 1]} : vector<8x128xf32> to vector<8x16xf32>
    %55 = arith.mulf %54, %54 : vector<8x16xf32>
    %cst_37 = arith.constant dense<0.000000e+00> : vector<8xf32>
    %56 = vector.multi_reduction <add>, %55, %cst_37 [1] : vector<8x16xf32> to vector<8xf32>
    %57 = vector.shape_cast %56 : vector<8xf32> to vector<8x1xf32>
    %cst_38 = arith.constant 1.000000e-24 : f32
    %58 = vector.broadcast %cst_38 : f32 to vector<8x1xf32>
    %59 = arith.maximumf %57, %58 : vector<8x1xf32>
    %60 = math.rsqrt %59 : vector<8x1xf32>
    %61 = vector.broadcast %60 : vector<8x1xf32> to vector<8x16xf32>
    %62 = arith.mulf %54, %61 : vector<8x16xf32>
    %63 = vector.broadcast %38 : vector<1x16xf32> to vector<8x16xf32>
    %64 = arith.mulf %62, %63 : vector<8x16xf32>
    %65 = vector.extract_strided_slice %34 {offsets = [0, 64], sizes = [8, 16], strides = [1, 1]} : vector<8x128xf32> to vector<8x16xf32>
    %66 = vector.extract_strided_slice %40 {offsets = [0, 0], sizes = [1, 16], strides = [1, 1]} : vector<4x16xf32> to vector<1x16xf32>
    %67 = arith.mulf %66, %66 : vector<1x16xf32>
    %cst_39 = arith.constant dense<0.000000e+00> : vector<1xf32>
    %68 = vector.multi_reduction <add>, %67, %cst_39 [1] : vector<1x16xf32> to vector<1xf32>
    %69 = vector.shape_cast %68 : vector<1xf32> to vector<1x1xf32>
    %cst_40 = arith.constant 1.000000e-24 : f32
    %70 = vector.broadcast %cst_40 : f32 to vector<1x1xf32>
    %71 = arith.maximumf %69, %70 : vector<1x1xf32>
    %72 = math.rsqrt %71 : vector<1x1xf32>
    %73 = vector.broadcast %72 : vector<1x1xf32> to vector<1x16xf32>
    %74 = arith.mulf %66, %73 : vector<1x16xf32>
    %75 = arith.mulf %74, %38 : vector<1x16xf32>
    %76 = vector.extract_strided_slice %42 {offsets = [0, 0], sizes = [1, 16], strides = [1, 1]} : vector<4x16xf32> to vector<1x16xf32>
    %cst_41 = arith.constant dense<0.000000e+00> : vector<8x8xf32>
    %77 = tpu.matmul %53, %64, %cst_41 {dimension_numbers = #tpu.dot_dimension_numbers<[1], [1], [0], [0], [0, 0, 1, 0], [], []>} : vector<8x16xf32>, vector<8x16xf32>, vector<8x8xf32> -> vector<8x8xf32>
    %78 = vector.broadcast %75 : vector<1x16xf32> to vector<8x16xf32>
    %79 = arith.mulf %53, %78 : vector<8x16xf32>
    %cst_42 = arith.constant dense<0.000000e+00> : vector<8xf32>
    %80 = vector.multi_reduction <add>, %79, %cst_42 [1] : vector<8x16xf32> to vector<8xf32>
    %81 = vector.shape_cast %80 : vector<8xf32> to vector<8x1xf32>
    %cst_43 = arith.constant dense<0xFF800000> : vector<8xf32>
    %82 = vector.multi_reduction <maximumf>, %77, %cst_43 [1] : vector<8x8xf32> to vector<8xf32>
    %83 = vector.shape_cast %82 : vector<8xf32> to vector<8x1xf32>
    %84 = arith.maximumf %83, %81 : vector<8x1xf32>
    %85 = vector.broadcast %84 : vector<8x1xf32> to vector<8x8xf32>
    %86 = arith.subf %77, %85 : vector<8x8xf32>
    %87 = math.exp %86 : vector<8x8xf32>
    %88 = arith.subf %81, %84 : vector<8x1xf32>
    %89 = math.exp %88 : vector<8x1xf32>
    %cst_44 = arith.constant dense<0.000000e+00> : vector<8xf32>
    %90 = vector.multi_reduction <add>, %87, %cst_44 [1] : vector<8x8xf32> to vector<8xf32>
    %91 = vector.shape_cast %90 : vector<8xf32> to vector<8x1xf32>
    %92 = arith.addf %91, %89 : vector<8x1xf32>
    %93 = tpu.reciprocal %92 : vector<8x1xf32> -> vector<8x1xf32>
    %cst_45 = arith.constant dense<0.000000e+00> : vector<8x16xf32>
    %94 = tpu.matmul %87, %65, %cst_45 {dimension_numbers = #tpu.dot_dimension_numbers<[1], [0], [0], [1], [0, 0, 1, 1], [], []>} : vector<8x8xf32>, vector<8x16xf32>, vector<8x16xf32> -> vector<8x16xf32>
    %95 = vector.broadcast %89 : vector<8x1xf32> to vector<8x16xf32>
    %96 = vector.broadcast %76 : vector<1x16xf32> to vector<8x16xf32>
    %97 = arith.mulf %95, %96 : vector<8x16xf32>
    %98 = arith.addf %94, %97 : vector<8x16xf32>
    %99 = vector.broadcast %93 : vector<8x1xf32> to vector<8x16xf32>
    %100 = arith.mulf %98, %99 : vector<8x16xf32>
    %c0_46 = arith.constant 0 : index
    %c0_47 = arith.constant 0 : index
    %101 = vector.load %arg28[%c0_46, %c0_47] : memref<8x64xf32, #tpu.memory_space<vmem>>, vector<8x16xf32>
    tpu.vector_store %arg28[%c0_46, %c0_47], %100 {strides = array<i32>} : memref<8x64xf32, #tpu.memory_space<vmem>>, vector<8x16xf32>,
    %102 = vector.extract_strided_slice %31 {offsets = [0, 16], sizes = [8, 16], strides = [1, 1]} : vector<8x64xf32> to vector<8x16xf32>
    %103 = arith.mulf %102, %102 : vector<8x16xf32>
    %cst_48 = arith.constant dense<0.000000e+00> : vector<8xf32>
    %104 = vector.multi_reduction <add>, %103, %cst_48 [1] : vector<8x16xf32> to vector<8xf32>
    %105 = vector.shape_cast %104 : vector<8xf32> to vector<8x1xf32>
    %cst_49 = arith.constant 1.000000e-24 : f32
    %106 = vector.broadcast %cst_49 : f32 to vector<8x1xf32>
    %107 = arith.maximumf %105, %106 : vector<8x1xf32>
    %108 = math.rsqrt %107 : vector<8x1xf32>
    %109 = vector.broadcast %108 : vector<8x1xf32> to vector<8x16xf32>
    %110 = arith.mulf %102, %109 : vector<8x16xf32>
    %111 = vector.broadcast %36 : vector<1x16xf32> to vector<8x16xf32>
    %112 = arith.mulf %110, %111 : vector<8x16xf32>
    %113 = vector.extract_strided_slice %34 {offsets = [0, 16], sizes = [8, 16], strides = [1, 1]} : vector<8x128xf32> to vector<8x16xf32>
    %114 = arith.mulf %113, %113 : vector<8x16xf32>
    %cst_50 = arith.constant dense<0.000000e+00> : vector<8xf32>
    %115 = vector.multi_reduction <add>, %114, %cst_50 [1] : vector<8x16xf32> to vector<8xf32>
    %116 = vector.shape_cast %115 : vector<8xf32> to vector<8x1xf32>
    %cst_51 = arith.constant 1.000000e-24 : f32
    %117 = vector.broadcast %cst_51 : f32 to vector<8x1xf32>
    %118 = arith.maximumf %116, %117 : vector<8x1xf32>
    %119 = math.rsqrt %118 : vector<8x1xf32>
    %120 = vector.broadcast %119 : vector<8x1xf32> to vector<8x16xf32>
    %121 = arith.mulf %113, %120 : vector<8x16xf32>
    %122 = vector.broadcast %38 : vector<1x16xf32> to vector<8x16xf32>
    %123 = arith.mulf %121, %122 : vector<8x16xf32>
    %124 = vector.extract_strided_slice %34 {offsets = [0, 80], sizes = [8, 16], strides = [1, 1]} : vector<8x128xf32> to vector<8x16xf32>
    %125 = vector.extract_strided_slice %40 {offsets = [1, 0], sizes = [1, 16], strides = [1, 1]} : vector<4x16xf32> to vector<1x16xf32>
    %126 = arith.mulf %125, %125 : vector<1x16xf32>
    %cst_52 = arith.constant dense<0.000000e+00> : vector<1xf32>
    %127 = vector.multi_reduction <add>, %126, %cst_52 [1] : vector<1x16xf32> to vector<1xf32>
    %128 = vector.shape_cast %127 : vector<1xf32> to vector<1x1xf32>
    %cst_53 = arith.constant 1.000000e-24 : f32
    %129 = vector.broadcast %cst_53 : f32 to vector<1x1xf32>
    %130 = arith.maximumf %128, %129 : vector<1x1xf32>
    %131 = math.rsqrt %130 : vector<1x1xf32>
    %132 = vector.broadcast %131 : vector<1x1xf32> to vector<1x16xf32>
    %133 = arith.mulf %125, %132 : vector<1x16xf32>
    %134 = arith.mulf %133, %38 : vector<1x16xf32>
    %135 = vector.extract_strided_slice %42 {offsets = [1, 0], sizes = [1, 16], strides = [1, 1]} : vector<4x16xf32> to vector<1x16xf32>
    %cst_54 = arith.constant dense<0.000000e+00> : vector<8x8xf32>
    %136 = tpu.matmul %112, %123, %cst_54 {dimension_numbers = #tpu.dot_dimension_numbers<[1], [1], [0], [0], [0, 0, 1, 0], [], []>} : vector<8x16xf32>, vector<8x16xf32>, vector<8x8xf32> -> vector<8x8xf32>
    %137 = vector.broadcast %134 : vector<1x16xf32> to vector<8x16xf32>
    %138 = arith.mulf %112, %137 : vector<8x16xf32>
    %cst_55 = arith.constant dense<0.000000e+00> : vector<8xf32>
    %139 = vector.multi_reduction <add>, %138, %cst_55 [1] : vector<8x16xf32> to vector<8xf32>
    %140 = vector.shape_cast %139 : vector<8xf32> to vector<8x1xf32>
    %cst_56 = arith.constant dense<0xFF800000> : vector<8xf32>
    %141 = vector.multi_reduction <maximumf>, %136, %cst_56 [1] : vector<8x8xf32> to vector<8xf32>
    %142 = vector.shape_cast %141 : vector<8xf32> to vector<8x1xf32>
    %143 = arith.maximumf %142, %140 : vector<8x1xf32>
    %144 = vector.broadcast %143 : vector<8x1xf32> to vector<8x8xf32>
    %145 = arith.subf %136, %144 : vector<8x8xf32>
    %146 = math.exp %145 : vector<8x8xf32>
    %147 = arith.subf %140, %143 : vector<8x1xf32>
    %148 = math.exp %147 : vector<8x1xf32>
    %cst_57 = arith.constant dense<0.000000e+00> : vector<8xf32>
    %149 = vector.multi_reduction <add>, %146, %cst_57 [1] : vector<8x8xf32> to vector<8xf32>
    %150 = vector.shape_cast %149 : vector<8xf32> to vector<8x1xf32>
    %151 = arith.addf %150, %148 : vector<8x1xf32>
    %152 = tpu.reciprocal %151 : vector<8x1xf32> -> vector<8x1xf32>
    %cst_58 = arith.constant dense<0.000000e+00> : vector<8x16xf32>
    %153 = tpu.matmul %146, %124, %cst_58 {dimension_numbers = #tpu.dot_dimension_numbers<[1], [0], [0], [1], [0, 0, 1, 1], [], []>} : vector<8x8xf32>, vector<8x16xf32>, vector<8x16xf32> -> vector<8x16xf32>
    %154 = vector.broadcast %148 : vector<8x1xf32> to vector<8x16xf32>
    %155 = vector.broadcast %135 : vector<1x16xf32> to vector<8x16xf32>
    %156 = arith.mulf %154, %155 : vector<8x16xf32>
    %157 = arith.addf %153, %156 : vector<8x16xf32>
    %158 = vector.broadcast %152 : vector<8x1xf32> to vector<8x16xf32>
    %159 = arith.mulf %157, %158 : vector<8x16xf32>
    %c0_59 = arith.constant 0 : index
    %c16 = arith.constant 16 : index
    %160 = vector.load %arg28[%c0_59, %c16] : memref<8x64xf32, #tpu.memory_space<vmem>>, vector<8x16xf32>
    tpu.vector_store %arg28[%c0_59, %c16], %159 {strides = array<i32>} : memref<8x64xf32, #tpu.memory_space<vmem>>, vector<8x16xf32>,
    %161 = vector.extract_strided_slice %31 {offsets = [0, 32], sizes = [8, 16], strides = [1, 1]} : vector<8x64xf32> to vector<8x16xf32>
    %162 = arith.mulf %161, %161 : vector<8x16xf32>
    %cst_60 = arith.constant dense<0.000000e+00> : vector<8xf32>
    %163 = vector.multi_reduction <add>, %162, %cst_60 [1] : vector<8x16xf32> to vector<8xf32>
    %164 = vector.shape_cast %163 : vector<8xf32> to vector<8x1xf32>
    %cst_61 = arith.constant 1.000000e-24 : f32
    %165 = vector.broadcast %cst_61 : f32 to vector<8x1xf32>
    %166 = arith.maximumf %164, %165 : vector<8x1xf32>
    %167 = math.rsqrt %166 : vector<8x1xf32>
    %168 = vector.broadcast %167 : vector<8x1xf32> to vector<8x16xf32>
    %169 = arith.mulf %161, %168 : vector<8x16xf32>
    %170 = vector.broadcast %36 : vector<1x16xf32> to vector<8x16xf32>
    %171 = arith.mulf %169, %170 : vector<8x16xf32>
    %172 = vector.extract_strided_slice %34 {offsets = [0, 32], sizes = [8, 16], strides = [1, 1]} : vector<8x128xf32> to vector<8x16xf32>
    %173 = arith.mulf %172, %172 : vector<8x16xf32>
    %cst_62 = arith.constant dense<0.000000e+00> : vector<8xf32>
    %174 = vector.multi_reduction <add>, %173, %cst_62 [1] : vector<8x16xf32> to vector<8xf32>
    %175 = vector.shape_cast %174 : vector<8xf32> to vector<8x1xf32>
    %cst_63 = arith.constant 1.000000e-24 : f32
    %176 = vector.broadcast %cst_63 : f32 to vector<8x1xf32>
    %177 = arith.maximumf %175, %176 : vector<8x1xf32>
    %178 = math.rsqrt %177 : vector<8x1xf32>
    %179 = vector.broadcast %178 : vector<8x1xf32> to vector<8x16xf32>
    %180 = arith.mulf %172, %179 : vector<8x16xf32>
    %181 = vector.broadcast %38 : vector<1x16xf32> to vector<8x16xf32>
    %182 = arith.mulf %180, %181 : vector<8x16xf32>
    %183 = vector.extract_strided_slice %34 {offsets = [0, 96], sizes = [8, 16], strides = [1, 1]} : vector<8x128xf32> to vector<8x16xf32>
    %184 = vector.extract_strided_slice %40 {offsets = [2, 0], sizes = [1, 16], strides = [1, 1]} : vector<4x16xf32> to vector<1x16xf32>
    %185 = arith.mulf %184, %184 : vector<1x16xf32>
    %cst_64 = arith.constant dense<0.000000e+00> : vector<1xf32>
    %186 = vector.multi_reduction <add>, %185, %cst_64 [1] : vector<1x16xf32> to vector<1xf32>
    %187 = vector.shape_cast %186 : vector<1xf32> to vector<1x1xf32>
    %cst_65 = arith.constant 1.000000e-24 : f32
    %188 = vector.broadcast %cst_65 : f32 to vector<1x1xf32>
    %189 = arith.maximumf %187, %188 : vector<1x1xf32>
    %190 = math.rsqrt %189 : vector<1x1xf32>
    %191 = vector.broadcast %190 : vector<1x1xf32> to vector<1x16xf32>
    %192 = arith.mulf %184, %191 : vector<1x16xf32>
    %193 = arith.mulf %192, %38 : vector<1x16xf32>
    %194 = vector.extract_strided_slice %42 {offsets = [2, 0], sizes = [1, 16], strides = [1, 1]} : vector<4x16xf32> to vector<1x16xf32>
    %cst_66 = arith.constant dense<0.000000e+00> : vector<8x8xf32>
    %195 = tpu.matmul %171, %182, %cst_66 {dimension_numbers = #tpu.dot_dimension_numbers<[1], [1], [0], [0], [0, 0, 1, 0], [], []>} : vector<8x16xf32>, vector<8x16xf32>, vector<8x8xf32> -> vector<8x8xf32>
    %196 = vector.broadcast %193 : vector<1x16xf32> to vector<8x16xf32>
    %197 = arith.mulf %171, %196 : vector<8x16xf32>
    %cst_67 = arith.constant dense<0.000000e+00> : vector<8xf32>
    %198 = vector.multi_reduction <add>, %197, %cst_67 [1] : vector<8x16xf32> to vector<8xf32>
    %199 = vector.shape_cast %198 : vector<8xf32> to vector<8x1xf32>
    %cst_68 = arith.constant dense<0xFF800000> : vector<8xf32>
    %200 = vector.multi_reduction <maximumf>, %195, %cst_68 [1] : vector<8x8xf32> to vector<8xf32>
    %201 = vector.shape_cast %200 : vector<8xf32> to vector<8x1xf32>
    %202 = arith.maximumf %201, %199 : vector<8x1xf32>
    %203 = vector.broadcast %202 : vector<8x1xf32> to vector<8x8xf32>
    %204 = arith.subf %195, %203 : vector<8x8xf32>
    %205 = math.exp %204 : vector<8x8xf32>
    %206 = arith.subf %199, %202 : vector<8x1xf32>
    %207 = math.exp %206 : vector<8x1xf32>
    %cst_69 = arith.constant dense<0.000000e+00> : vector<8xf32>
    %208 = vector.multi_reduction <add>, %205, %cst_69 [1] : vector<8x8xf32> to vector<8xf32>
    %209 = vector.shape_cast %208 : vector<8xf32> to vector<8x1xf32>
    %210 = arith.addf %209, %207 : vector<8x1xf32>
    %211 = tpu.reciprocal %210 : vector<8x1xf32> -> vector<8x1xf32>
    %cst_70 = arith.constant dense<0.000000e+00> : vector<8x16xf32>
    %212 = tpu.matmul %205, %183, %cst_70 {dimension_numbers = #tpu.dot_dimension_numbers<[1], [0], [0], [1], [0, 0, 1, 1], [], []>} : vector<8x8xf32>, vector<8x16xf32>, vector<8x16xf32> -> vector<8x16xf32>
    %213 = vector.broadcast %207 : vector<8x1xf32> to vector<8x16xf32>
    %214 = vector.broadcast %194 : vector<1x16xf32> to vector<8x16xf32>
    %215 = arith.mulf %213, %214 : vector<8x16xf32>
    %216 = arith.addf %212, %215 : vector<8x16xf32>
    %217 = vector.broadcast %211 : vector<8x1xf32> to vector<8x16xf32>
    %218 = arith.mulf %216, %217 : vector<8x16xf32>
    %c0_71 = arith.constant 0 : index
    %c32 = arith.constant 32 : index
    %219 = vector.load %arg28[%c0_71, %c32] : memref<8x64xf32, #tpu.memory_space<vmem>>, vector<8x16xf32>
    tpu.vector_store %arg28[%c0_71, %c32], %218 {strides = array<i32>} : memref<8x64xf32, #tpu.memory_space<vmem>>, vector<8x16xf32>,
    %220 = vector.extract_strided_slice %31 {offsets = [0, 48], sizes = [8, 16], strides = [1, 1]} : vector<8x64xf32> to vector<8x16xf32>
    %221 = arith.mulf %220, %220 : vector<8x16xf32>
    %cst_72 = arith.constant dense<0.000000e+00> : vector<8xf32>
    %222 = vector.multi_reduction <add>, %221, %cst_72 [1] : vector<8x16xf32> to vector<8xf32>
    %223 = vector.shape_cast %222 : vector<8xf32> to vector<8x1xf32>
    %cst_73 = arith.constant 1.000000e-24 : f32
    %224 = vector.broadcast %cst_73 : f32 to vector<8x1xf32>
    %225 = arith.maximumf %223, %224 : vector<8x1xf32>
    %226 = math.rsqrt %225 : vector<8x1xf32>
    %227 = vector.broadcast %226 : vector<8x1xf32> to vector<8x16xf32>
    %228 = arith.mulf %220, %227 : vector<8x16xf32>
    %229 = vector.broadcast %36 : vector<1x16xf32> to vector<8x16xf32>
    %230 = arith.mulf %228, %229 : vector<8x16xf32>
    %231 = vector.extract_strided_slice %34 {offsets = [0, 48], sizes = [8, 16], strides = [1, 1]} : vector<8x128xf32> to vector<8x16xf32>
    %232 = arith.mulf %231, %231 : vector<8x16xf32>
    %cst_74 = arith.constant dense<0.000000e+00> : vector<8xf32>
    %233 = vector.multi_reduction <add>, %232, %cst_74 [1] : vector<8x16xf32> to vector<8xf32>
    %234 = vector.shape_cast %233 : vector<8xf32> to vector<8x1xf32>
    %cst_75 = arith.constant 1.000000e-24 : f32
    %235 = vector.broadcast %cst_75 : f32 to vector<8x1xf32>
    %236 = arith.maximumf %234, %235 : vector<8x1xf32>
    %237 = math.rsqrt %236 : vector<8x1xf32>
    %238 = vector.broadcast %237 : vector<8x1xf32> to vector<8x16xf32>
    %239 = arith.mulf %231, %238 : vector<8x16xf32>
    %240 = vector.broadcast %38 : vector<1x16xf32> to vector<8x16xf32>
    %241 = arith.mulf %239, %240 : vector<8x16xf32>
    %242 = vector.extract_strided_slice %34 {offsets = [0, 112], sizes = [8, 16], strides = [1, 1]} : vector<8x128xf32> to vector<8x16xf32>
    %243 = vector.extract_strided_slice %40 {offsets = [3, 0], sizes = [1, 16], strides = [1, 1]} : vector<4x16xf32> to vector<1x16xf32>
    %244 = arith.mulf %243, %243 : vector<1x16xf32>
    %cst_76 = arith.constant dense<0.000000e+00> : vector<1xf32>
    %245 = vector.multi_reduction <add>, %244, %cst_76 [1] : vector<1x16xf32> to vector<1xf32>
    %246 = vector.shape_cast %245 : vector<1xf32> to vector<1x1xf32>
    %cst_77 = arith.constant 1.000000e-24 : f32
    %247 = vector.broadcast %cst_77 : f32 to vector<1x1xf32>
    %248 = arith.maximumf %246, %247 : vector<1x1xf32>
    %249 = math.rsqrt %248 : vector<1x1xf32>
    %250 = vector.broadcast %249 : vector<1x1xf32> to vector<1x16xf32>
    %251 = arith.mulf %243, %250 : vector<1x16xf32>
    %252 = arith.mulf %251, %38 : vector<1x16xf32>
    %253 = vector.extract_strided_slice %42 {offsets = [3, 0], sizes = [1, 16], strides = [1, 1]} : vector<4x16xf32> to vector<1x16xf32>
    %cst_78 = arith.constant dense<0.000000e+00> : vector<8x8xf32>
    %254 = tpu.matmul %230, %241, %cst_78 {dimension_numbers = #tpu.dot_dimension_numbers<[1], [1], [0], [0], [0, 0, 1, 0], [], []>} : vector<8x16xf32>, vector<8x16xf32>, vector<8x8xf32> -> vector<8x8xf32>
    %255 = vector.broadcast %252 : vector<1x16xf32> to vector<8x16xf32>
    %256 = arith.mulf %230, %255 : vector<8x16xf32>
    %cst_79 = arith.constant dense<0.000000e+00> : vector<8xf32>
    %257 = vector.multi_reduction <add>, %256, %cst_79 [1] : vector<8x16xf32> to vector<8xf32>
    %258 = vector.shape_cast %257 : vector<8xf32> to vector<8x1xf32>
    %cst_80 = arith.constant dense<0xFF800000> : vector<8xf32>
    %259 = vector.multi_reduction <maximumf>, %254, %cst_80 [1] : vector<8x8xf32> to vector<8xf32>
    %260 = vector.shape_cast %259 : vector<8xf32> to vector<8x1xf32>
    %261 = arith.maximumf %260, %258 : vector<8x1xf32>
    %262 = vector.broadcast %261 : vector<8x1xf32> to vector<8x8xf32>
    %263 = arith.subf %254, %262 : vector<8x8xf32>
    %264 = math.exp %263 : vector<8x8xf32>
    %265 = arith.subf %258, %261 : vector<8x1xf32>
    %266 = math.exp %265 : vector<8x1xf32>
    %cst_81 = arith.constant dense<0.000000e+00> : vector<8xf32>
    %267 = vector.multi_reduction <add>, %264, %cst_81 [1] : vector<8x8xf32> to vector<8xf32>
    %268 = vector.shape_cast %267 : vector<8xf32> to vector<8x1xf32>
    %269 = arith.addf %268, %266 : vector<8x1xf32>
    %270 = tpu.reciprocal %269 : vector<8x1xf32> -> vector<8x1xf32>
    %cst_82 = arith.constant dense<0.000000e+00> : vector<8x16xf32>
    %271 = tpu.matmul %264, %242, %cst_82 {dimension_numbers = #tpu.dot_dimension_numbers<[1], [0], [0], [1], [0, 0, 1, 1], [], []>} : vector<8x8xf32>, vector<8x16xf32>, vector<8x16xf32> -> vector<8x16xf32>
    %272 = vector.broadcast %266 : vector<8x1xf32> to vector<8x16xf32>
    %273 = vector.broadcast %253 : vector<1x16xf32> to vector<8x16xf32>
    %274 = arith.mulf %272, %273 : vector<8x16xf32>
    %275 = arith.addf %271, %274 : vector<8x16xf32>
    %276 = vector.broadcast %270 : vector<8x1xf32> to vector<8x16xf32>
    %277 = arith.mulf %275, %276 : vector<8x16xf32>
    %c0_83 = arith.constant 0 : index
    %c48 = arith.constant 48 : index
    %278 = vector.load %arg28[%c0_83, %c48] : memref<8x64xf32, #tpu.memory_space<vmem>>, vector<8x16xf32>
    tpu.vector_store %arg28[%c0_83, %c48], %277 {strides = array<i32>} : memref<8x64xf32, #tpu.memory_space<vmem>>, vector<8x16xf32>,
    %c0_84 = arith.constant 0 : index
    %c0_85 = arith.constant 0 : index
    %279 = vector.load %arg28[%c0_84, %c0_85] : memref<8x64xf32, #tpu.memory_space<vmem>>, vector<8x64xf32>
    %c0_86 = arith.constant 0 : index
    %c0_87 = arith.constant 0 : index
    %c0_88 = arith.constant 0 : index
    %280 = vector.load %arg8[%c0_86, %c0_87, %c0_88] : memref<1x64x48xf32, #tpu.memory_space<vmem>>, vector<1x64x48xf32>
    %281 = vector.shape_cast %280 : vector<1x64x48xf32> to vector<64x48xf32>
    %cst_89 = arith.constant dense<0.000000e+00> : vector<8x48xf32>
    %282 = tpu.matmul %279, %281, %cst_89 {dimension_numbers = #tpu.dot_dimension_numbers<[1], [0], [0], [1], [0, 0, 1, 1], [], []>} : vector<8x64xf32>, vector<64x48xf32>, vector<8x48xf32> -> vector<8x48xf32>
    %283 = arith.addf %4, %282 : vector<8x48xf32>
    %c0_90 = arith.constant 0 : index
    %c0_91 = arith.constant 0 : index
    %c0_92 = arith.constant 0 : index
    %284 = vector.load %arg13[%c0_90, %c0_91, %c0_92] : memref<1x1x48xf32, #tpu.memory_space<vmem>>, vector<1x1x48xf32>
    %285 = vector.shape_cast %284 : vector<1x1x48xf32> to vector<1x48xf32>
    %cst_93 = arith.constant dense<0.000000e+00> : vector<8xf32>
    %286 = vector.multi_reduction <add>, %283, %cst_93 [1] : vector<8x48xf32> to vector<8xf32>
    %287 = vector.shape_cast %286 : vector<8xf32> to vector<8x1xf32>
    %cst_94 = arith.constant 4.800000e+01 : f32
    %288 = vector.broadcast %cst_94 : f32 to vector<8x1xf32>
    %289 = arith.divf %287, %288 : vector<8x1xf32>
    %290 = vector.broadcast %289 : vector<8x1xf32> to vector<8x48xf32>
    %291 = arith.subf %283, %290 : vector<8x48xf32>
    %292 = arith.mulf %291, %291 : vector<8x48xf32>
    %cst_95 = arith.constant dense<0.000000e+00> : vector<8xf32>
    %293 = vector.multi_reduction <add>, %292, %cst_95 [1] : vector<8x48xf32> to vector<8xf32>
    %294 = vector.shape_cast %293 : vector<8xf32> to vector<8x1xf32>
    %cst_96 = arith.constant 4.800000e+01 : f32
    %295 = vector.broadcast %cst_96 : f32 to vector<8x1xf32>
    %296 = arith.divf %294, %295 : vector<8x1xf32>
    %cst_97 = arith.constant 9.99999974E-6 : f32
    %297 = vector.broadcast %cst_97 : f32 to vector<8x1xf32>
    %298 = arith.addf %296, %297 : vector<8x1xf32>
    %299 = math.rsqrt %298 : vector<8x1xf32>
    %300 = vector.broadcast %299 : vector<8x1xf32> to vector<8x48xf32>
    %301 = arith.mulf %291, %300 : vector<8x48xf32>
    %302 = vector.broadcast %285 : vector<1x48xf32> to vector<8x48xf32>
    %303 = arith.mulf %301, %302 : vector<8x48xf32>
    %c0_98 = arith.constant 0 : index
    %c0_99 = arith.constant 0 : index
    %c0_100 = arith.constant 0 : index
    %304 = vector.load %arg14[%c0_98, %c0_99, %c0_100] : memref<1x48x64xf32, #tpu.memory_space<vmem>>, vector<1x48x64xf32>
    %305 = vector.shape_cast %304 : vector<1x48x64xf32> to vector<48x64xf32>
    %cst_101 = arith.constant dense<0.000000e+00> : vector<8x64xf32>
    %306 = tpu.matmul %303, %305, %cst_101 {dimension_numbers = #tpu.dot_dimension_numbers<[1], [0], [0], [1], [0, 0, 1, 1], [], []>} : vector<8x48xf32>, vector<48x64xf32>, vector<8x64xf32> -> vector<8x64xf32>
    %c0_102 = arith.constant 0 : index
    %c0_103 = arith.constant 0 : index
    %c0_104 = arith.constant 0 : index
    %307 = vector.load %arg15[%c0_102, %c0_103, %c0_104] : memref<1x48x128xf32, #tpu.memory_space<vmem>>, vector<1x48x128xf32>
    %308 = vector.shape_cast %307 : vector<1x48x128xf32> to vector<48x128xf32>
    %cst_105 = arith.constant dense<0.000000e+00> : vector<8x128xf32>
    %309 = tpu.matmul %6, %308, %cst_105 {dimension_numbers = #tpu.dot_dimension_numbers<[1], [0], [0], [1], [0, 0, 1, 1], [], []>} : vector<8x48xf32>, vector<48x128xf32>, vector<8x128xf32> -> vector<8x128xf32>
    %c0_106 = arith.constant 0 : index
    %c0_107 = arith.constant 0 : index
    %c0_108 = arith.constant 0 : index
    %310 = vector.load %arg17[%c0_106, %c0_107, %c0_108] : memref<1x1x16xf32, #tpu.memory_space<vmem>>, vector<1x1x16xf32>
    %311 = vector.shape_cast %310 : vector<1x1x16xf32> to vector<1x16xf32>
    %c0_109 = arith.constant 0 : index
    %c0_110 = arith.constant 0 : index
    %c0_111 = arith.constant 0 : index
    %312 = vector.load %arg18[%c0_109, %c0_110, %c0_111] : memref<1x1x16xf32, #tpu.memory_space<vmem>>, vector<1x1x16xf32>
    %313 = vector.shape_cast %312 : vector<1x1x16xf32> to vector<1x16xf32>
    %c0_112 = arith.constant 0 : index
    %c0_113 = arith.constant 0 : index
    %c0_114 = arith.constant 0 : index
    %314 = vector.load %arg19[%c0_112, %c0_113, %c0_114] : memref<1x4x16xf32, #tpu.memory_space<vmem>>, vector<1x4x16xf32>
    %315 = vector.shape_cast %314 : vector<1x4x16xf32> to vector<4x16xf32>
    %c0_115 = arith.constant 0 : index
    %c0_116 = arith.constant 0 : index
    %c0_117 = arith.constant 0 : index
    %316 = vector.load %arg20[%c0_115, %c0_116, %c0_117] : memref<1x4x16xf32, #tpu.memory_space<vmem>>, vector<1x4x16xf32>
    %317 = vector.shape_cast %316 : vector<1x4x16xf32> to vector<4x16xf32>
    %318 = vector.extract_strided_slice %306 {offsets = [0, 0], sizes = [8, 16], strides = [1, 1]} : vector<8x64xf32> to vector<8x16xf32>
    %319 = arith.mulf %318, %318 : vector<8x16xf32>
    %cst_118 = arith.constant dense<0.000000e+00> : vector<8xf32>
    %320 = vector.multi_reduction <add>, %319, %cst_118 [1] : vector<8x16xf32> to vector<8xf32>
    %321 = vector.shape_cast %320 : vector<8xf32> to vector<8x1xf32>
    %cst_119 = arith.constant 1.000000e-24 : f32
    %322 = vector.broadcast %cst_119 : f32 to vector<8x1xf32>
    %323 = arith.maximumf %321, %322 : vector<8x1xf32>
    %324 = math.rsqrt %323 : vector<8x1xf32>
    %325 = vector.broadcast %324 : vector<8x1xf32> to vector<8x16xf32>
    %326 = arith.mulf %318, %325 : vector<8x16xf32>
    %327 = vector.broadcast %311 : vector<1x16xf32> to vector<8x16xf32>
    %328 = arith.mulf %326, %327 : vector<8x16xf32>
    %329 = vector.extract_strided_slice %309 {offsets = [0, 0], sizes = [8, 16], strides = [1, 1]} : vector<8x128xf32> to vector<8x16xf32>
    %330 = arith.mulf %329, %329 : vector<8x16xf32>
    %cst_120 = arith.constant dense<0.000000e+00> : vector<8xf32>
    %331 = vector.multi_reduction <add>, %330, %cst_120 [1] : vector<8x16xf32> to vector<8xf32>
    %332 = vector.shape_cast %331 : vector<8xf32> to vector<8x1xf32>
    %cst_121 = arith.constant 1.000000e-24 : f32
    %333 = vector.broadcast %cst_121 : f32 to vector<8x1xf32>
    %334 = arith.maximumf %332, %333 : vector<8x1xf32>
    %335 = math.rsqrt %334 : vector<8x1xf32>
    %336 = vector.broadcast %335 : vector<8x1xf32> to vector<8x16xf32>
    %337 = arith.mulf %329, %336 : vector<8x16xf32>
    %338 = vector.broadcast %313 : vector<1x16xf32> to vector<8x16xf32>
    %339 = arith.mulf %337, %338 : vector<8x16xf32>
    %340 = vector.extract_strided_slice %309 {offsets = [0, 64], sizes = [8, 16], strides = [1, 1]} : vector<8x128xf32> to vector<8x16xf32>
    %341 = vector.extract_strided_slice %315 {offsets = [0, 0], sizes = [1, 16], strides = [1, 1]} : vector<4x16xf32> to vector<1x16xf32>
    %342 = arith.mulf %341, %341 : vector<1x16xf32>
    %cst_122 = arith.constant dense<0.000000e+00> : vector<1xf32>
    %343 = vector.multi_reduction <add>, %342, %cst_122 [1] : vector<1x16xf32> to vector<1xf32>
    %344 = vector.shape_cast %343 : vector<1xf32> to vector<1x1xf32>
    %cst_123 = arith.constant 1.000000e-24 : f32
    %345 = vector.broadcast %cst_123 : f32 to vector<1x1xf32>
    %346 = arith.maximumf %344, %345 : vector<1x1xf32>
    %347 = math.rsqrt %346 : vector<1x1xf32>
    %348 = vector.broadcast %347 : vector<1x1xf32> to vector<1x16xf32>
    %349 = arith.mulf %341, %348 : vector<1x16xf32>
    %350 = arith.mulf %349, %313 : vector<1x16xf32>
    %351 = vector.extract_strided_slice %317 {offsets = [0, 0], sizes = [1, 16], strides = [1, 1]} : vector<4x16xf32> to vector<1x16xf32>
    %cst_124 = arith.constant dense<0.000000e+00> : vector<8x8xf32>
    %352 = tpu.matmul %328, %339, %cst_124 {dimension_numbers = #tpu.dot_dimension_numbers<[1], [1], [0], [0], [0, 0, 1, 0], [], []>} : vector<8x16xf32>, vector<8x16xf32>, vector<8x8xf32> -> vector<8x8xf32>
    %353 = vector.broadcast %8 : vector<1x8xf32> to vector<8x8xf32>
    %354 = arith.addf %352, %353 : vector<8x8xf32>
    %355 = vector.broadcast %350 : vector<1x16xf32> to vector<8x16xf32>
    %356 = arith.mulf %328, %355 : vector<8x16xf32>
    %cst_125 = arith.constant dense<0.000000e+00> : vector<8xf32>
    %357 = vector.multi_reduction <add>, %356, %cst_125 [1] : vector<8x16xf32> to vector<8xf32>
    %358 = vector.shape_cast %357 : vector<8xf32> to vector<8x1xf32>
    %cst_126 = arith.constant dense<0xFF800000> : vector<8xf32>
    %359 = vector.multi_reduction <maximumf>, %354, %cst_126 [1] : vector<8x8xf32> to vector<8xf32>
    %360 = vector.shape_cast %359 : vector<8xf32> to vector<8x1xf32>
    %361 = arith.maximumf %360, %358 : vector<8x1xf32>
    %362 = vector.broadcast %361 : vector<8x1xf32> to vector<8x8xf32>
    %363 = arith.subf %354, %362 : vector<8x8xf32>
    %364 = math.exp %363 : vector<8x8xf32>
    %365 = arith.subf %358, %361 : vector<8x1xf32>
    %366 = math.exp %365 : vector<8x1xf32>
    %cst_127 = arith.constant dense<0.000000e+00> : vector<8xf32>
    %367 = vector.multi_reduction <add>, %364, %cst_127 [1] : vector<8x8xf32> to vector<8xf32>
    %368 = vector.shape_cast %367 : vector<8xf32> to vector<8x1xf32>
    %369 = arith.addf %368, %366 : vector<8x1xf32>
    %370 = tpu.reciprocal %369 : vector<8x1xf32> -> vector<8x1xf32>
    %cst_128 = arith.constant dense<0.000000e+00> : vector<8x16xf32>
    %371 = tpu.matmul %364, %340, %cst_128 {dimension_numbers = #tpu.dot_dimension_numbers<[1], [0], [0], [1], [0, 0, 1, 1], [], []>} : vector<8x8xf32>, vector<8x16xf32>, vector<8x16xf32> -> vector<8x16xf32>
    %372 = vector.broadcast %366 : vector<8x1xf32> to vector<8x16xf32>
    %373 = vector.broadcast %351 : vector<1x16xf32> to vector<8x16xf32>
    %374 = arith.mulf %372, %373 : vector<8x16xf32>
    %375 = arith.addf %371, %374 : vector<8x16xf32>
    %376 = vector.broadcast %370 : vector<8x1xf32> to vector<8x16xf32>
    %377 = arith.mulf %375, %376 : vector<8x16xf32>
    %c0_129 = arith.constant 0 : index
    %c0_130 = arith.constant 0 : index
    %378 = vector.load %arg28[%c0_129, %c0_130] : memref<8x64xf32, #tpu.memory_space<vmem>>, vector<8x16xf32>
    tpu.vector_store %arg28[%c0_129, %c0_130], %377 {strides = array<i32>} : memref<8x64xf32, #tpu.memory_space<vmem>>, vector<8x16xf32>,
    %379 = vector.extract_strided_slice %306 {offsets = [0, 16], sizes = [8, 16], strides = [1, 1]} : vector<8x64xf32> to vector<8x16xf32>
    %380 = arith.mulf %379, %379 : vector<8x16xf32>
    %cst_131 = arith.constant dense<0.000000e+00> : vector<8xf32>
    %381 = vector.multi_reduction <add>, %380, %cst_131 [1] : vector<8x16xf32> to vector<8xf32>
    %382 = vector.shape_cast %381 : vector<8xf32> to vector<8x1xf32>
    %cst_132 = arith.constant 1.000000e-24 : f32
    %383 = vector.broadcast %cst_132 : f32 to vector<8x1xf32>
    %384 = arith.maximumf %382, %383 : vector<8x1xf32>
    %385 = math.rsqrt %384 : vector<8x1xf32>
    %386 = vector.broadcast %385 : vector<8x1xf32> to vector<8x16xf32>
    %387 = arith.mulf %379, %386 : vector<8x16xf32>
    %388 = vector.broadcast %311 : vector<1x16xf32> to vector<8x16xf32>
    %389 = arith.mulf %387, %388 : vector<8x16xf32>
    %390 = vector.extract_strided_slice %309 {offsets = [0, 16], sizes = [8, 16], strides = [1, 1]} : vector<8x128xf32> to vector<8x16xf32>
    %391 = arith.mulf %390, %390 : vector<8x16xf32>
    %cst_133 = arith.constant dense<0.000000e+00> : vector<8xf32>
    %392 = vector.multi_reduction <add>, %391, %cst_133 [1] : vector<8x16xf32> to vector<8xf32>
    %393 = vector.shape_cast %392 : vector<8xf32> to vector<8x1xf32>
    %cst_134 = arith.constant 1.000000e-24 : f32
    %394 = vector.broadcast %cst_134 : f32 to vector<8x1xf32>
    %395 = arith.maximumf %393, %394 : vector<8x1xf32>
    %396 = math.rsqrt %395 : vector<8x1xf32>
    %397 = vector.broadcast %396 : vector<8x1xf32> to vector<8x16xf32>
    %398 = arith.mulf %390, %397 : vector<8x16xf32>
    %399 = vector.broadcast %313 : vector<1x16xf32> to vector<8x16xf32>
    %400 = arith.mulf %398, %399 : vector<8x16xf32>
    %401 = vector.extract_strided_slice %309 {offsets = [0, 80], sizes = [8, 16], strides = [1, 1]} : vector<8x128xf32> to vector<8x16xf32>
    %402 = vector.extract_strided_slice %315 {offsets = [1, 0], sizes = [1, 16], strides = [1, 1]} : vector<4x16xf32> to vector<1x16xf32>
    %403 = arith.mulf %402, %402 : vector<1x16xf32>
    %cst_135 = arith.constant dense<0.000000e+00> : vector<1xf32>
    %404 = vector.multi_reduction <add>, %403, %cst_135 [1] : vector<1x16xf32> to vector<1xf32>
    %405 = vector.shape_cast %404 : vector<1xf32> to vector<1x1xf32>
    %cst_136 = arith.constant 1.000000e-24 : f32
    %406 = vector.broadcast %cst_136 : f32 to vector<1x1xf32>
    %407 = arith.maximumf %405, %406 : vector<1x1xf32>
    %408 = math.rsqrt %407 : vector<1x1xf32>
    %409 = vector.broadcast %408 : vector<1x1xf32> to vector<1x16xf32>
    %410 = arith.mulf %402, %409 : vector<1x16xf32>
    %411 = arith.mulf %410, %313 : vector<1x16xf32>
    %412 = vector.extract_strided_slice %317 {offsets = [1, 0], sizes = [1, 16], strides = [1, 1]} : vector<4x16xf32> to vector<1x16xf32>
    %cst_137 = arith.constant dense<0.000000e+00> : vector<8x8xf32>
    %413 = tpu.matmul %389, %400, %cst_137 {dimension_numbers = #tpu.dot_dimension_numbers<[1], [1], [0], [0], [0, 0, 1, 0], [], []>} : vector<8x16xf32>, vector<8x16xf32>, vector<8x8xf32> -> vector<8x8xf32>
    %414 = vector.broadcast %8 : vector<1x8xf32> to vector<8x8xf32>
    %415 = arith.addf %413, %414 : vector<8x8xf32>
    %416 = vector.broadcast %411 : vector<1x16xf32> to vector<8x16xf32>
    %417 = arith.mulf %389, %416 : vector<8x16xf32>
    %cst_138 = arith.constant dense<0.000000e+00> : vector<8xf32>
    %418 = vector.multi_reduction <add>, %417, %cst_138 [1] : vector<8x16xf32> to vector<8xf32>
    %419 = vector.shape_cast %418 : vector<8xf32> to vector<8x1xf32>
    %cst_139 = arith.constant dense<0xFF800000> : vector<8xf32>
    %420 = vector.multi_reduction <maximumf>, %415, %cst_139 [1] : vector<8x8xf32> to vector<8xf32>
    %421 = vector.shape_cast %420 : vector<8xf32> to vector<8x1xf32>
    %422 = arith.maximumf %421, %419 : vector<8x1xf32>
    %423 = vector.broadcast %422 : vector<8x1xf32> to vector<8x8xf32>
    %424 = arith.subf %415, %423 : vector<8x8xf32>
    %425 = math.exp %424 : vector<8x8xf32>
    %426 = arith.subf %419, %422 : vector<8x1xf32>
    %427 = math.exp %426 : vector<8x1xf32>
    %cst_140 = arith.constant dense<0.000000e+00> : vector<8xf32>
    %428 = vector.multi_reduction <add>, %425, %cst_140 [1] : vector<8x8xf32> to vector<8xf32>
    %429 = vector.shape_cast %428 : vector<8xf32> to vector<8x1xf32>
    %430 = arith.addf %429, %427 : vector<8x1xf32>
    %431 = tpu.reciprocal %430 : vector<8x1xf32> -> vector<8x1xf32>
    %cst_141 = arith.constant dense<0.000000e+00> : vector<8x16xf32>
    %432 = tpu.matmul %425, %401, %cst_141 {dimension_numbers = #tpu.dot_dimension_numbers<[1], [0], [0], [1], [0, 0, 1, 1], [], []>} : vector<8x8xf32>, vector<8x16xf32>, vector<8x16xf32> -> vector<8x16xf32>
    %433 = vector.broadcast %427 : vector<8x1xf32> to vector<8x16xf32>
    %434 = vector.broadcast %412 : vector<1x16xf32> to vector<8x16xf32>
    %435 = arith.mulf %433, %434 : vector<8x16xf32>
    %436 = arith.addf %432, %435 : vector<8x16xf32>
    %437 = vector.broadcast %431 : vector<8x1xf32> to vector<8x16xf32>
    %438 = arith.mulf %436, %437 : vector<8x16xf32>
    %c0_142 = arith.constant 0 : index
    %c16_143 = arith.constant 16 : index
    %439 = vector.load %arg28[%c0_142, %c16_143] : memref<8x64xf32, #tpu.memory_space<vmem>>, vector<8x16xf32>
    tpu.vector_store %arg28[%c0_142, %c16_143], %438 {strides = array<i32>} : memref<8x64xf32, #tpu.memory_space<vmem>>, vector<8x16xf32>,
    %440 = vector.extract_strided_slice %306 {offsets = [0, 32], sizes = [8, 16], strides = [1, 1]} : vector<8x64xf32> to vector<8x16xf32>
    %441 = arith.mulf %440, %440 : vector<8x16xf32>
    %cst_144 = arith.constant dense<0.000000e+00> : vector<8xf32>
    %442 = vector.multi_reduction <add>, %441, %cst_144 [1] : vector<8x16xf32> to vector<8xf32>
    %443 = vector.shape_cast %442 : vector<8xf32> to vector<8x1xf32>
    %cst_145 = arith.constant 1.000000e-24 : f32
    %444 = vector.broadcast %cst_145 : f32 to vector<8x1xf32>
    %445 = arith.maximumf %443, %444 : vector<8x1xf32>
    %446 = math.rsqrt %445 : vector<8x1xf32>
    %447 = vector.broadcast %446 : vector<8x1xf32> to vector<8x16xf32>
    %448 = arith.mulf %440, %447 : vector<8x16xf32>
    %449 = vector.broadcast %311 : vector<1x16xf32> to vector<8x16xf32>
    %450 = arith.mulf %448, %449 : vector<8x16xf32>
    %451 = vector.extract_strided_slice %309 {offsets = [0, 32], sizes = [8, 16], strides = [1, 1]} : vector<8x128xf32> to vector<8x16xf32>
    %452 = arith.mulf %451, %451 : vector<8x16xf32>
    %cst_146 = arith.constant dense<0.000000e+00> : vector<8xf32>
    %453 = vector.multi_reduction <add>, %452, %cst_146 [1] : vector<8x16xf32> to vector<8xf32>
    %454 = vector.shape_cast %453 : vector<8xf32> to vector<8x1xf32>
    %cst_147 = arith.constant 1.000000e-24 : f32
    %455 = vector.broadcast %cst_147 : f32 to vector<8x1xf32>
    %456 = arith.maximumf %454, %455 : vector<8x1xf32>
    %457 = math.rsqrt %456 : vector<8x1xf32>
    %458 = vector.broadcast %457 : vector<8x1xf32> to vector<8x16xf32>
    %459 = arith.mulf %451, %458 : vector<8x16xf32>
    %460 = vector.broadcast %313 : vector<1x16xf32> to vector<8x16xf32>
    %461 = arith.mulf %459, %460 : vector<8x16xf32>
    %462 = vector.extract_strided_slice %309 {offsets = [0, 96], sizes = [8, 16], strides = [1, 1]} : vector<8x128xf32> to vector<8x16xf32>
    %463 = vector.extract_strided_slice %315 {offsets = [2, 0], sizes = [1, 16], strides = [1, 1]} : vector<4x16xf32> to vector<1x16xf32>
    %464 = arith.mulf %463, %463 : vector<1x16xf32>
    %cst_148 = arith.constant dense<0.000000e+00> : vector<1xf32>
    %465 = vector.multi_reduction <add>, %464, %cst_148 [1] : vector<1x16xf32> to vector<1xf32>
    %466 = vector.shape_cast %465 : vector<1xf32> to vector<1x1xf32>
    %cst_149 = arith.constant 1.000000e-24 : f32
    %467 = vector.broadcast %cst_149 : f32 to vector<1x1xf32>
    %468 = arith.maximumf %466, %467 : vector<1x1xf32>
    %469 = math.rsqrt %468 : vector<1x1xf32>
    %470 = vector.broadcast %469 : vector<1x1xf32> to vector<1x16xf32>
    %471 = arith.mulf %463, %470 : vector<1x16xf32>
    %472 = arith.mulf %471, %313 : vector<1x16xf32>
    %473 = vector.extract_strided_slice %317 {offsets = [2, 0], sizes = [1, 16], strides = [1, 1]} : vector<4x16xf32> to vector<1x16xf32>
    %cst_150 = arith.constant dense<0.000000e+00> : vector<8x8xf32>
    %474 = tpu.matmul %450, %461, %cst_150 {dimension_numbers = #tpu.dot_dimension_numbers<[1], [1], [0], [0], [0, 0, 1, 0], [], []>} : vector<8x16xf32>, vector<8x16xf32>, vector<8x8xf32> -> vector<8x8xf32>
    %475 = vector.broadcast %8 : vector<1x8xf32> to vector<8x8xf32>
    %476 = arith.addf %474, %475 : vector<8x8xf32>
    %477 = vector.broadcast %472 : vector<1x16xf32> to vector<8x16xf32>
    %478 = arith.mulf %450, %477 : vector<8x16xf32>
    %cst_151 = arith.constant dense<0.000000e+00> : vector<8xf32>
    %479 = vector.multi_reduction <add>, %478, %cst_151 [1] : vector<8x16xf32> to vector<8xf32>
    %480 = vector.shape_cast %479 : vector<8xf32> to vector<8x1xf32>
    %cst_152 = arith.constant dense<0xFF800000> : vector<8xf32>
    %481 = vector.multi_reduction <maximumf>, %476, %cst_152 [1] : vector<8x8xf32> to vector<8xf32>
    %482 = vector.shape_cast %481 : vector<8xf32> to vector<8x1xf32>
    %483 = arith.maximumf %482, %480 : vector<8x1xf32>
    %484 = vector.broadcast %483 : vector<8x1xf32> to vector<8x8xf32>
    %485 = arith.subf %476, %484 : vector<8x8xf32>
    %486 = math.exp %485 : vector<8x8xf32>
    %487 = arith.subf %480, %483 : vector<8x1xf32>
    %488 = math.exp %487 : vector<8x1xf32>
    %cst_153 = arith.constant dense<0.000000e+00> : vector<8xf32>
    %489 = vector.multi_reduction <add>, %486, %cst_153 [1] : vector<8x8xf32> to vector<8xf32>
    %490 = vector.shape_cast %489 : vector<8xf32> to vector<8x1xf32>
    %491 = arith.addf %490, %488 : vector<8x1xf32>
    %492 = tpu.reciprocal %491 : vector<8x1xf32> -> vector<8x1xf32>
    %cst_154 = arith.constant dense<0.000000e+00> : vector<8x16xf32>
    %493 = tpu.matmul %486, %462, %cst_154 {dimension_numbers = #tpu.dot_dimension_numbers<[1], [0], [0], [1], [0, 0, 1, 1], [], []>} : vector<8x8xf32>, vector<8x16xf32>, vector<8x16xf32> -> vector<8x16xf32>
    %494 = vector.broadcast %488 : vector<8x1xf32> to vector<8x16xf32>
    %495 = vector.broadcast %473 : vector<1x16xf32> to vector<8x16xf32>
    %496 = arith.mulf %494, %495 : vector<8x16xf32>
    %497 = arith.addf %493, %496 : vector<8x16xf32>
    %498 = vector.broadcast %492 : vector<8x1xf32> to vector<8x16xf32>
    %499 = arith.mulf %497, %498 : vector<8x16xf32>
    %c0_155 = arith.constant 0 : index
    %c32_156 = arith.constant 32 : index
    %500 = vector.load %arg28[%c0_155, %c32_156] : memref<8x64xf32, #tpu.memory_space<vmem>>, vector<8x16xf32>
    tpu.vector_store %arg28[%c0_155, %c32_156], %499 {strides = array<i32>} : memref<8x64xf32, #tpu.memory_space<vmem>>, vector<8x16xf32>,
    %501 = vector.extract_strided_slice %306 {offsets = [0, 48], sizes = [8, 16], strides = [1, 1]} : vector<8x64xf32> to vector<8x16xf32>
    %502 = arith.mulf %501, %501 : vector<8x16xf32>
    %cst_157 = arith.constant dense<0.000000e+00> : vector<8xf32>
    %503 = vector.multi_reduction <add>, %502, %cst_157 [1] : vector<8x16xf32> to vector<8xf32>
    %504 = vector.shape_cast %503 : vector<8xf32> to vector<8x1xf32>
    %cst_158 = arith.constant 1.000000e-24 : f32
    %505 = vector.broadcast %cst_158 : f32 to vector<8x1xf32>
    %506 = arith.maximumf %504, %505 : vector<8x1xf32>
    %507 = math.rsqrt %506 : vector<8x1xf32>
    %508 = vector.broadcast %507 : vector<8x1xf32> to vector<8x16xf32>
    %509 = arith.mulf %501, %508 : vector<8x16xf32>
    %510 = vector.broadcast %311 : vector<1x16xf32> to vector<8x16xf32>
    %511 = arith.mulf %509, %510 : vector<8x16xf32>
    %512 = vector.extract_strided_slice %309 {offsets = [0, 48], sizes = [8, 16], strides = [1, 1]} : vector<8x128xf32> to vector<8x16xf32>
    %513 = arith.mulf %512, %512 : vector<8x16xf32>
    %cst_159 = arith.constant dense<0.000000e+00> : vector<8xf32>
    %514 = vector.multi_reduction <add>, %513, %cst_159 [1] : vector<8x16xf32> to vector<8xf32>
    %515 = vector.shape_cast %514 : vector<8xf32> to vector<8x1xf32>
    %cst_160 = arith.constant 1.000000e-24 : f32
    %516 = vector.broadcast %cst_160 : f32 to vector<8x1xf32>
    %517 = arith.maximumf %515, %516 : vector<8x1xf32>
    %518 = math.rsqrt %517 : vector<8x1xf32>
    %519 = vector.broadcast %518 : vector<8x1xf32> to vector<8x16xf32>
    %520 = arith.mulf %512, %519 : vector<8x16xf32>
    %521 = vector.broadcast %313 : vector<1x16xf32> to vector<8x16xf32>
    %522 = arith.mulf %520, %521 : vector<8x16xf32>
    %523 = vector.extract_strided_slice %309 {offsets = [0, 112], sizes = [8, 16], strides = [1, 1]} : vector<8x128xf32> to vector<8x16xf32>
    %524 = vector.extract_strided_slice %315 {offsets = [3, 0], sizes = [1, 16], strides = [1, 1]} : vector<4x16xf32> to vector<1x16xf32>
    %525 = arith.mulf %524, %524 : vector<1x16xf32>
    %cst_161 = arith.constant dense<0.000000e+00> : vector<1xf32>
    %526 = vector.multi_reduction <add>, %525, %cst_161 [1] : vector<1x16xf32> to vector<1xf32>
    %527 = vector.shape_cast %526 : vector<1xf32> to vector<1x1xf32>
    %cst_162 = arith.constant 1.000000e-24 : f32
    %528 = vector.broadcast %cst_162 : f32 to vector<1x1xf32>
    %529 = arith.maximumf %527, %528 : vector<1x1xf32>
    %530 = math.rsqrt %529 : vector<1x1xf32>
    %531 = vector.broadcast %530 : vector<1x1xf32> to vector<1x16xf32>
    %532 = arith.mulf %524, %531 : vector<1x16xf32>
    %533 = arith.mulf %532, %313 : vector<1x16xf32>
    %534 = vector.extract_strided_slice %317 {offsets = [3, 0], sizes = [1, 16], strides = [1, 1]} : vector<4x16xf32> to vector<1x16xf32>
    %cst_163 = arith.constant dense<0.000000e+00> : vector<8x8xf32>
    %535 = tpu.matmul %511, %522, %cst_163 {dimension_numbers = #tpu.dot_dimension_numbers<[1], [1], [0], [0], [0, 0, 1, 0], [], []>} : vector<8x16xf32>, vector<8x16xf32>, vector<8x8xf32> -> vector<8x8xf32>
    %536 = vector.broadcast %8 : vector<1x8xf32> to vector<8x8xf32>
    %537 = arith.addf %535, %536 : vector<8x8xf32>
    %538 = vector.broadcast %533 : vector<1x16xf32> to vector<8x16xf32>
    %539 = arith.mulf %511, %538 : vector<8x16xf32>
    %cst_164 = arith.constant dense<0.000000e+00> : vector<8xf32>
    %540 = vector.multi_reduction <add>, %539, %cst_164 [1] : vector<8x16xf32> to vector<8xf32>
    %541 = vector.shape_cast %540 : vector<8xf32> to vector<8x1xf32>
    %cst_165 = arith.constant dense<0xFF800000> : vector<8xf32>
    %542 = vector.multi_reduction <maximumf>, %537, %cst_165 [1] : vector<8x8xf32> to vector<8xf32>
    %543 = vector.shape_cast %542 : vector<8xf32> to vector<8x1xf32>
    %544 = arith.maximumf %543, %541 : vector<8x1xf32>
    %545 = vector.broadcast %544 : vector<8x1xf32> to vector<8x8xf32>
    %546 = arith.subf %537, %545 : vector<8x8xf32>
    %547 = math.exp %546 : vector<8x8xf32>
    %548 = arith.subf %541, %544 : vector<8x1xf32>
    %549 = math.exp %548 : vector<8x1xf32>
    %cst_166 = arith.constant dense<0.000000e+00> : vector<8xf32>
    %550 = vector.multi_reduction <add>, %547, %cst_166 [1] : vector<8x8xf32> to vector<8xf32>
    %551 = vector.shape_cast %550 : vector<8xf32> to vector<8x1xf32>
    %552 = arith.addf %551, %549 : vector<8x1xf32>
    %553 = tpu.reciprocal %552 : vector<8x1xf32> -> vector<8x1xf32>
    %cst_167 = arith.constant dense<0.000000e+00> : vector<8x16xf32>
    %554 = tpu.matmul %547, %523, %cst_167 {dimension_numbers = #tpu.dot_dimension_numbers<[1], [0], [0], [1], [0, 0, 1, 1], [], []>} : vector<8x8xf32>, vector<8x16xf32>, vector<8x16xf32> -> vector<8x16xf32>
    %555 = vector.broadcast %549 : vector<8x1xf32> to vector<8x16xf32>
    %556 = vector.broadcast %534 : vector<1x16xf32> to vector<8x16xf32>
    %557 = arith.mulf %555, %556 : vector<8x16xf32>
    %558 = arith.addf %554, %557 : vector<8x16xf32>
    %559 = vector.broadcast %553 : vector<8x1xf32> to vector<8x16xf32>
    %560 = arith.mulf %558, %559 : vector<8x16xf32>
    %c0_168 = arith.constant 0 : index
    %c48_169 = arith.constant 48 : index
    %561 = vector.load %arg28[%c0_168, %c48_169] : memref<8x64xf32, #tpu.memory_space<vmem>>, vector<8x16xf32>
    tpu.vector_store %arg28[%c0_168, %c48_169], %560 {strides = array<i32>} : memref<8x64xf32, #tpu.memory_space<vmem>>, vector<8x16xf32>,
    %c0_170 = arith.constant 0 : index
    %c0_171 = arith.constant 0 : index
    %562 = vector.load %arg28[%c0_170, %c0_171] : memref<8x64xf32, #tpu.memory_space<vmem>>, vector<8x64xf32>
    %c0_172 = arith.constant 0 : index
    %c0_173 = arith.constant 0 : index
    %c0_174 = arith.constant 0 : index
    %563 = vector.load %arg16[%c0_172, %c0_173, %c0_174] : memref<1x64x48xf32, #tpu.memory_space<vmem>>, vector<1x64x48xf32>
    %564 = vector.shape_cast %563 : vector<1x64x48xf32> to vector<64x48xf32>
    %cst_175 = arith.constant dense<0.000000e+00> : vector<8x48xf32>
    %565 = tpu.matmul %562, %564, %cst_175 {dimension_numbers = #tpu.dot_dimension_numbers<[1], [0], [0], [1], [0, 0, 1, 1], [], []>} : vector<8x64xf32>, vector<64x48xf32>, vector<8x48xf32> -> vector<8x48xf32>
    %566 = arith.addf %283, %565 : vector<8x48xf32>
    %c0_176 = arith.constant 0 : index
    %c0_177 = arith.constant 0 : index
    %c0_178 = arith.constant 0 : index
    %567 = vector.load %arg21[%c0_176, %c0_177, %c0_178] : memref<1x1x48xf32, #tpu.memory_space<vmem>>, vector<1x1x48xf32>
    %568 = vector.shape_cast %567 : vector<1x1x48xf32> to vector<1x48xf32>
    %cst_179 = arith.constant dense<0.000000e+00> : vector<8xf32>
    %569 = vector.multi_reduction <add>, %566, %cst_179 [1] : vector<8x48xf32> to vector<8xf32>
    %570 = vector.shape_cast %569 : vector<8xf32> to vector<8x1xf32>
    %cst_180 = arith.constant 4.800000e+01 : f32
    %571 = vector.broadcast %cst_180 : f32 to vector<8x1xf32>
    %572 = arith.divf %570, %571 : vector<8x1xf32>
    %573 = vector.broadcast %572 : vector<8x1xf32> to vector<8x48xf32>
    %574 = arith.subf %566, %573 : vector<8x48xf32>
    %575 = arith.mulf %574, %574 : vector<8x48xf32>
    %cst_181 = arith.constant dense<0.000000e+00> : vector<8xf32>
    %576 = vector.multi_reduction <add>, %575, %cst_181 [1] : vector<8x48xf32> to vector<8xf32>
    %577 = vector.shape_cast %576 : vector<8xf32> to vector<8x1xf32>
    %cst_182 = arith.constant 4.800000e+01 : f32
    %578 = vector.broadcast %cst_182 : f32 to vector<8x1xf32>
    %579 = arith.divf %577, %578 : vector<8x1xf32>
    %cst_183 = arith.constant 9.99999974E-6 : f32
    %580 = vector.broadcast %cst_183 : f32 to vector<8x1xf32>
    %581 = arith.addf %579, %580 : vector<8x1xf32>
    %582 = math.rsqrt %581 : vector<8x1xf32>
    %583 = vector.broadcast %582 : vector<8x1xf32> to vector<8x48xf32>
    %584 = arith.mulf %574, %583 : vector<8x48xf32>
    %585 = vector.broadcast %568 : vector<1x48xf32> to vector<8x48xf32>
    %586 = arith.mulf %584, %585 : vector<8x48xf32>
    %c0_184 = arith.constant 0 : index
    %c0_185 = arith.constant 0 : index
    %c0_186 = arith.constant 0 : index
    %587 = vector.load %arg22[%c0_184, %c0_185, %c0_186] : memref<1x48x256xf32, #tpu.memory_space<vmem>>, vector<1x48x256xf32>
    %588 = vector.shape_cast %587 : vector<1x48x256xf32> to vector<48x256xf32>
    %cst_187 = arith.constant dense<0.000000e+00> : vector<8x256xf32>
    %589 = tpu.matmul %586, %588, %cst_187 {dimension_numbers = #tpu.dot_dimension_numbers<[1], [0], [0], [1], [0, 0, 1, 1], [], []>} : vector<8x48xf32>, vector<48x256xf32>, vector<8x256xf32> -> vector<8x256xf32>
    %590 = vector.extract_strided_slice %589 {offsets = [0, 0], sizes = [8, 128], strides = [1, 1]} : vector<8x256xf32> to vector<8x128xf32>
    %591 = vector.extract_strided_slice %589 {offsets = [0, 128], sizes = [8, 128], strides = [1, 1]} : vector<8x256xf32> to vector<8x128xf32>
    %cst_188 = arith.constant 5.000000e-01 : f32
    %592 = vector.broadcast %cst_188 : f32 to vector<8x128xf32>
    %593 = arith.mulf %592, %590 : vector<8x128xf32>
    %cst_189 = arith.constant 0.707106769 : f32
    %594 = vector.broadcast %cst_189 : f32 to vector<8x128xf32>
    %595 = arith.mulf %590, %594 : vector<8x128xf32>
    %596 = math.erf %595 : vector<8x128xf32>
    %cst_190 = arith.constant 1.000000e+00 : f32
    %597 = vector.broadcast %cst_190 : f32 to vector<8x128xf32>
    %598 = arith.addf %597, %596 : vector<8x128xf32>
    %599 = arith.mulf %593, %598 : vector<8x128xf32>
    %600 = arith.mulf %591, %599 : vector<8x128xf32>
    %c0_191 = arith.constant 0 : index
    %c0_192 = arith.constant 0 : index
    %c0_193 = arith.constant 0 : index
    %601 = vector.load %arg23[%c0_191, %c0_192, %c0_193] : memref<1x1x128xf32, #tpu.memory_space<vmem>>, vector<1x1x128xf32>
    %602 = vector.shape_cast %601 : vector<1x1x128xf32> to vector<1x128xf32>
    %cst_194 = arith.constant dense<0.000000e+00> : vector<8xf32>
    %603 = vector.multi_reduction <add>, %600, %cst_194 [1] : vector<8x128xf32> to vector<8xf32>
    %604 = vector.shape_cast %603 : vector<8xf32> to vector<8x1xf32>
    %cst_195 = arith.constant 1.280000e+02 : f32
    %605 = vector.broadcast %cst_195 : f32 to vector<8x1xf32>
    %606 = arith.divf %604, %605 : vector<8x1xf32>
    %607 = vector.broadcast %606 : vector<8x1xf32> to vector<8x128xf32>
    %608 = arith.subf %600, %607 : vector<8x128xf32>
    %609 = arith.mulf %608, %608 : vector<8x128xf32>
    %cst_196 = arith.constant dense<0.000000e+00> : vector<8xf32>
    %610 = vector.multi_reduction <add>, %609, %cst_196 [1] : vector<8x128xf32> to vector<8xf32>
    %611 = vector.shape_cast %610 : vector<8xf32> to vector<8x1xf32>
    %cst_197 = arith.constant 1.280000e+02 : f32
    %612 = vector.broadcast %cst_197 : f32 to vector<8x1xf32>
    %613 = arith.divf %611, %612 : vector<8x1xf32>
    %cst_198 = arith.constant 9.99999974E-6 : f32
    %614 = vector.broadcast %cst_198 : f32 to vector<8x1xf32>
    %615 = arith.addf %613, %614 : vector<8x1xf32>
    %616 = math.rsqrt %615 : vector<8x1xf32>
    %617 = vector.broadcast %616 : vector<8x1xf32> to vector<8x128xf32>
    %618 = arith.mulf %608, %617 : vector<8x128xf32>
    %619 = vector.broadcast %602 : vector<1x128xf32> to vector<8x128xf32>
    %620 = arith.mulf %618, %619 : vector<8x128xf32>
    %c0_199 = arith.constant 0 : index
    %c0_200 = arith.constant 0 : index
    %c0_201 = arith.constant 0 : index
    %621 = vector.load %arg24[%c0_199, %c0_200, %c0_201] : memref<1x128x48xf32, #tpu.memory_space<vmem>>, vector<1x128x48xf32>
    %622 = vector.shape_cast %621 : vector<1x128x48xf32> to vector<128x48xf32>
    %cst_202 = arith.constant dense<0.000000e+00> : vector<8x48xf32>
    %623 = tpu.matmul %620, %622, %cst_202 {dimension_numbers = #tpu.dot_dimension_numbers<[1], [0], [0], [1], [0, 0, 1, 1], [], []>} : vector<8x128xf32>, vector<128x48xf32>, vector<8x48xf32> -> vector<8x48xf32>
    %624 = arith.addf %566, %623 : vector<8x48xf32>
    %c0_203 = arith.constant 0 : index
    %c0_204 = arith.constant 0 : index
    %625 = vector.load %arg27[%c0_203, %c0_204] : memref<8x48xf32, #tpu.memory_space<vmem>>, vector<8x48xf32>
    tpu.vector_store %arg27[%c0_203, %c0_204], %624 {strides = array<i32>} : memref<8x48xf32, #tpu.memory_space<vmem>>, vector<8x48xf32>,
    %626 = arith.extui %0 : i1 to i32
    %c0_i32_205 = arith.constant 0 : i32
    %627 = arith.cmpi ne, %626, %c0_i32_205 : i32
    scf.if %627 {
      %c0_206 = arith.constant 0 : index
      %c0_207 = arith.constant 0 : index
      %628 = vector.load %arg25[%c0_206, %c0_207] : memref<1x48xf32, #tpu.memory_space<vmem>>, vector<1x48xf32>
      %cst_208 = arith.constant dense<0.000000e+00> : vector<8xf32>
      %629 = vector.multi_reduction <add>, %624, %cst_208 [1] : vector<8x48xf32> to vector<8xf32>
      %630 = vector.shape_cast %629 : vector<8xf32> to vector<8x1xf32>
      %cst_209 = arith.constant 4.800000e+01 : f32
      %631 = vector.broadcast %cst_209 : f32 to vector<8x1xf32>
      %632 = arith.divf %630, %631 : vector<8x1xf32>
      %633 = vector.broadcast %632 : vector<8x1xf32> to vector<8x48xf32>
      %634 = arith.subf %624, %633 : vector<8x48xf32>
      %635 = arith.mulf %634, %634 : vector<8x48xf32>
      %cst_210 = arith.constant dense<0.000000e+00> : vector<8xf32>
      %636 = vector.multi_reduction <add>, %635, %cst_210 [1] : vector<8x48xf32> to vector<8xf32>
      %637 = vector.shape_cast %636 : vector<8xf32> to vector<8x1xf32>
      %cst_211 = arith.constant 4.800000e+01 : f32
      %638 = vector.broadcast %cst_211 : f32 to vector<8x1xf32>
      %639 = arith.divf %637, %638 : vector<8x1xf32>
      %cst_212 = arith.constant 9.99999974E-6 : f32
      %640 = vector.broadcast %cst_212 : f32 to vector<8x1xf32>
      %641 = arith.addf %639, %640 : vector<8x1xf32>
      %642 = math.rsqrt %641 : vector<8x1xf32>
      %643 = vector.broadcast %642 : vector<8x1xf32> to vector<8x48xf32>
      %644 = arith.mulf %634, %643 : vector<8x48xf32>
      %645 = vector.broadcast %628 : vector<1x48xf32> to vector<8x48xf32>
      %646 = arith.mulf %644, %645 : vector<8x48xf32>
      %c0_213 = arith.constant 0 : index
      %c0_214 = arith.constant 0 : index
      %c0_215 = arith.constant 0 : index
      %647 = vector.load %arg26[%c0_213, %c0_214, %c0_215] : memref<1x8x48xf32, #tpu.memory_space<vmem>>, vector<1x8x48xf32>
      %648 = vector.shape_cast %647 : vector<1x8x48xf32> to vector<8x48xf32>
      %649 = vector.shape_cast %646 : vector<8x48xf32> to vector<1x8x48xf32>
      tpu.vector_store %arg26[%c0_213, %c0_214, %c0_215], %649 {strides = array<i32>} : memref<1x8x48xf32, #tpu.memory_space<vmem>>, vector<1x8x48xf32>,
    } else {
    }
    return
  }
  func.func @transform_0(%arg0: i32, %arg1: i32) -> (i32, i32, i32) {
    %c0_i32 = arith.constant 0 : i32
    %c0_i32_0 = arith.constant 0 : i32
    %c0_i32_1 = arith.constant 0 : i32
    return %arg0, %c0_i32, %c0_i32_0 : i32, i32, i32
  }
  func.func @transform_1(%arg0: i32, %arg1: i32) -> (i32, i32, i32) {
    %c0_i32 = arith.constant 0 : i32
    %c0_i32_0 = arith.constant 0 : i32
    %c0_i32_1 = arith.constant 0 : i32
    return %arg0, %c0_i32, %c0_i32_0 : i32, i32, i32
  }
  func.func @transform_2(%arg0: i32, %arg1: i32) -> (i32, i32, i32) {
    %c0_i32 = arith.constant 0 : i32
    %c0_i32_0 = arith.constant 0 : i32
    %c0_i32_1 = arith.constant 0 : i32
    return %arg0, %c0_i32, %c0_i32_0 : i32, i32, i32
  }
  func.func @transform_3(%arg0: i32, %arg1: i32) -> (i32, i32, i32) {
    %c0_i32 = arith.constant 0 : i32
    %c0_i32_0 = arith.constant 0 : i32
    %c0_i32_1 = arith.constant 0 : i32
    return %arg1, %c0_i32, %c0_i32_0 : i32, i32, i32
  }
  func.func @transform_4(%arg0: i32, %arg1: i32) -> (i32, i32, i32) {
    %c0_i32 = arith.constant 0 : i32
    %c0_i32_0 = arith.constant 0 : i32
    %c0_i32_1 = arith.constant 0 : i32
    return %arg1, %c0_i32, %c0_i32_0 : i32, i32, i32
  }
  func.func @transform_5(%arg0: i32, %arg1: i32) -> (i32, i32, i32) {
    %c0_i32 = arith.constant 0 : i32
    %c0_i32_0 = arith.constant 0 : i32
    %c0_i32_1 = arith.constant 0 : i32
    return %arg1, %c0_i32, %c0_i32_0 : i32, i32, i32
  }
  func.func @transform_6(%arg0: i32, %arg1: i32) -> (i32, i32, i32) {
    %c0_i32 = arith.constant 0 : i32
    %c0_i32_0 = arith.constant 0 : i32
    %c0_i32_1 = arith.constant 0 : i32
    return %arg1, %c0_i32, %c0_i32_0 : i32, i32, i32
  }
  func.func @transform_7(%arg0: i32, %arg1: i32) -> (i32, i32, i32) {
    %c0_i32 = arith.constant 0 : i32
    %c0_i32_0 = arith.constant 0 : i32
    %c0_i32_1 = arith.constant 0 : i32
    return %arg1, %c0_i32, %c0_i32_0 : i32, i32, i32
  }
  func.func @transform_8(%arg0: i32, %arg1: i32) -> (i32, i32, i32) {
    %c0_i32 = arith.constant 0 : i32
    %c0_i32_0 = arith.constant 0 : i32
    %c0_i32_1 = arith.constant 0 : i32
    return %arg1, %c0_i32, %c0_i32_0 : i32, i32, i32
  }
  func.func @transform_9(%arg0: i32, %arg1: i32) -> (i32, i32, i32) {
    %c0_i32 = arith.constant 0 : i32
    %c0_i32_0 = arith.constant 0 : i32
    %c0_i32_1 = arith.constant 0 : i32
    return %arg1, %c0_i32, %c0_i32_0 : i32, i32, i32
  }
  func.func @transform_10(%arg0: i32, %arg1: i32) -> (i32, i32, i32) {
    %c0_i32 = arith.constant 0 : i32
    %c0_i32_0 = arith.constant 0 : i32
    %c0_i32_1 = arith.constant 0 : i32
    return %arg1, %c0_i32, %c0_i32_0 : i32, i32, i32
  }
  func.func @transform_11(%arg0: i32, %arg1: i32) -> (i32, i32, i32) {
    %c0_i32 = arith.constant 0 : i32
    %c0_i32_0 = arith.constant 0 : i32
    %c0_i32_1 = arith.constant 0 : i32
    return %arg1, %c0_i32, %c0_i32_0 : i32, i32, i32
  }
  func.func @transform_12(%arg0: i32, %arg1: i32) -> (i32, i32, i32) {
    %c0_i32 = arith.constant 0 : i32
    %c0_i32_0 = arith.constant 0 : i32
    %c0_i32_1 = arith.constant 0 : i32
    return %arg1, %c0_i32, %c0_i32_0 : i32, i32, i32
  }
  func.func @transform_13(%arg0: i32, %arg1: i32) -> (i32, i32, i32) {
    %c0_i32 = arith.constant 0 : i32
    %c0_i32_0 = arith.constant 0 : i32
    %c0_i32_1 = arith.constant 0 : i32
    return %arg1, %c0_i32, %c0_i32_0 : i32, i32, i32
  }
  func.func @transform_14(%arg0: i32, %arg1: i32) -> (i32, i32, i32) {
    %c0_i32 = arith.constant 0 : i32
    %c0_i32_0 = arith.constant 0 : i32
    %c0_i32_1 = arith.constant 0 : i32
    return %arg1, %c0_i32, %c0_i32_0 : i32, i32, i32
  }
  func.func @transform_15(%arg0: i32, %arg1: i32) -> (i32, i32, i32) {
    %c0_i32 = arith.constant 0 : i32
    %c0_i32_0 = arith.constant 0 : i32
    %c0_i32_1 = arith.constant 0 : i32
    return %arg1, %c0_i32, %c0_i32_0 : i32, i32, i32
  }
  func.func @transform_16(%arg0: i32, %arg1: i32) -> (i32, i32, i32) {
    %c0_i32 = arith.constant 0 : i32
    %c0_i32_0 = arith.constant 0 : i32
    %c0_i32_1 = arith.constant 0 : i32
    return %arg1, %c0_i32, %c0_i32_0 : i32, i32, i32
  }
  func.func @transform_17(%arg0: i32, %arg1: i32) -> (i32, i32, i32) {
    %c0_i32 = arith.constant 0 : i32
    %c0_i32_0 = arith.constant 0 : i32
    %c0_i32_1 = arith.constant 0 : i32
    return %arg1, %c0_i32, %c0_i32_0 : i32, i32, i32
  }
  func.func @transform_18(%arg0: i32, %arg1: i32) -> (i32, i32, i32) {
    %c0_i32 = arith.constant 0 : i32
    %c0_i32_0 = arith.constant 0 : i32
    %c0_i32_1 = arith.constant 0 : i32
    return %arg1, %c0_i32, %c0_i32_0 : i32, i32, i32
  }
  func.func @transform_19(%arg0: i32, %arg1: i32) -> (i32, i32, i32) {
    %c0_i32 = arith.constant 0 : i32
    %c0_i32_0 = arith.constant 0 : i32
    %c0_i32_1 = arith.constant 0 : i32
    return %arg1, %c0_i32, %c0_i32_0 : i32, i32, i32
  }
  func.func @transform_20(%arg0: i32, %arg1: i32) -> (i32, i32, i32) {
    %c0_i32 = arith.constant 0 : i32
    %c0_i32_0 = arith.constant 0 : i32
    %c0_i32_1 = arith.constant 0 : i32
    return %arg1, %c0_i32, %c0_i32_0 : i32, i32, i32
  }
  func.func @transform_21(%arg0: i32, %arg1: i32) -> (i32, i32, i32) {
    %c0_i32 = arith.constant 0 : i32
    %c0_i32_0 = arith.constant 0 : i32
    %c0_i32_1 = arith.constant 0 : i32
    return %arg1, %c0_i32, %c0_i32_0 : i32, i32, i32
  }
  func.func @transform_22(%arg0: i32, %arg1: i32) -> (i32, i32, i32) {
    %c0_i32 = arith.constant 0 : i32
    %c0_i32_0 = arith.constant 0 : i32
    %c0_i32_1 = arith.constant 0 : i32
    return %arg1, %c0_i32, %c0_i32_0 : i32, i32, i32
  }
  func.func @transform_23(%arg0: i32, %arg1: i32) -> (i32, i32) {
    %c0_i32 = arith.constant 0 : i32
    %c0_i32_0 = arith.constant 0 : i32
    %c0_i32_1 = arith.constant 0 : i32
    return %c0_i32, %c0_i32_0 : i32, i32
  }
  func.func @transform_24(%arg0: i32, %arg1: i32) -> (i32, i32, i32) {
    %c0_i32 = arith.constant 0 : i32
    %c0_i32_0 = arith.constant 0 : i32
    %c0_i32_1 = arith.constant 0 : i32
    return %arg0, %c0_i32, %c0_i32_0 : i32, i32, i32
  }
}

</mosaic_0001>

<llo_original>
// kernel: transformer_blocks.1
$region0: #{transformer_blocks.1}
  #allocation0 [shape = 'u32[]', space=smem, size = 0x4, offset = 0x4, fixed_abs, tag = 'smem constant byte address 0x4 - core index']
  #allocation1 [shape = 'u32[144,128]{1,0:T(1,128)}', space=vmem, size = 0x12000, scoped, tag = 'internal scratch']
  #allocation2 [shape = 'f32[8,48]{1,0:T(8,128)}', space=vmem, size = 0x1000, scoped, tag = 'scratch operand']
  #allocation3 [shape = 'f32[8,64]{1,0:T(8,128)}', space=vmem, size = 0x1000, scoped, tag = 'scratch operand']
  %s0 = inlined_call_operand.vmem [shape: f32[2,8,48], index: 0, kind: input, shape index: {}]
  %s1 = inlined_call_operand.vmem [shape: f32[2,8,48], index: 1, kind: input, shape index: {}]
  %s2 = inlined_call_operand.vmem [shape: f32[2,1,8], index: 2, kind: input, shape index: {}]
  %s3 = inlined_call_operand.vmem [shape: f32[2,1,48], index: 3, kind: input, shape index: {}]
  %s4 = inlined_call_operand.vmem [shape: f32[2,48,64], index: 4, kind: input, shape index: {}]
  %s5 = inlined_call_operand.vmem [shape: f32[2,48,128], index: 5, kind: input, shape index: {}]
  %s6 = inlined_call_operand.vmem [shape: f32[2,64,48], index: 6, kind: input, shape index: {}]
  %s7 = inlined_call_operand.vmem [shape: f32[2,1,16], index: 7, kind: input, shape index: {}]
  %s8 = inlined_call_operand.vmem [shape: f32[2,1,16], index: 8, kind: input, shape index: {}]
  %s9 = inlined_call_operand.vmem [shape: f32[2,4,16], index: 9, kind: input, shape index: {}]
  %s10 = inlined_call_operand.vmem [shape: f32[2,4,16], index: 10, kind: input, shape index: {}]
  %s11 = inlined_call_operand.hbm [shape: f32[2,1,48], index: 11, kind: input, shape index: {}]
  %s12 = inlined_call_operand.vmem [shape: f32[2,48,64], index: 12, kind: input, shape index: {}]
  %s13 = inlined_call_operand.vmem [shape: f32[2,48,128], index: 13, kind: input, shape index: {}]
  %s14 = inlined_call_operand.vmem [shape: f32[2,64,48], index: 14, kind: input, shape index: {}]
  %s15 = inlined_call_operand.hbm [shape: f32[2,1,16], index: 15, kind: input, shape index: {}]
  %s16 = inlined_call_operand.hbm [shape: f32[2,1,16], index: 16, kind: input, shape index: {}]
  %s17 = inlined_call_operand.hbm [shape: f32[2,4,16], index: 17, kind: input, shape index: {}]
  %s18 = inlined_call_operand.hbm [shape: f32[2,4,16], index: 18, kind: input, shape index: {}]
  %s19 = inlined_call_operand.hbm [shape: f32[2,1,48], index: 19, kind: input, shape index: {}]
  %s20 = inlined_call_operand.vmem [shape: f32[2,48,256], index: 20, kind: input, shape index: {}]
  %s21 = inlined_call_operand.hbm [shape: f32[2,1,128], index: 21, kind: input, shape index: {}]
  %s22 = inlined_call_operand.vmem [shape: f32[2,128,48], index: 22, kind: input, shape index: {}]
  %s23 = inlined_call_operand.vmem [shape: f32[1,48], index: 23, kind: input, shape index: {}]
  %s24 = inlined_call_operand.hbm [shape: f32[2,8,48], index: 24, kind: output, shape index: {}]
  %s25 = sld [smem:[#allocation0]]
  $region165: #{transformer_blocks.1} parent=0
    _
  %s27 = ssub.s32 1, %s25
  %s28 = scalar_select 0, %s27, %s25
  $region1: #{transformer_blocks.1} parent=0
    #allocation4 [shape = 'u8[1024]{0}', space=vmem, size = 0x400, scoped, tag = 'input window, operand 11']
    #allocation5 [shape = 's32[2]{0}', space=sflag, size = 0x8, scoped, tag = 'scoped memory for transformer_blocks.1']
    #allocation6 [shape = 's32[2]{0}', space=sflag, size = 0x8, scoped, tag = 'scoped memory for transformer_blocks.1']
    #allocation7 [shape = 'u8[1024]{0}', space=vmem, size = 0x400, scoped, tag = 'input window, operand 15']
    #allocation8 [shape = 's32[2]{0}', space=sflag, size = 0x8, scoped, tag = 'scoped memory for transformer_blocks.1']
    #allocation9 [shape = 'u8[1024]{0}', space=vmem, size = 0x400, scoped, tag = 'input window, operand 16']
    #allocation10 [shape = 'u8[4096]{0}', space=vmem, size = 0x1000, scoped, tag = 'input window, operand 17']
    #allocation11 [shape = 's32[2]{0}', space=sflag, size = 0x8, scoped, tag = 'scoped memory for transformer_blocks.1']
    #allocation12 [shape = 'u8[4096]{0}', space=vmem, size = 0x1000, scoped, tag = 'input window, operand 18']
    #allocation13 [shape = 'u8[1024]{0}', space=vmem, size = 0x400, scoped, tag = 'input window, operand 19']
    #allocation14 [shape = 's32[2]{0}', space=sflag, size = 0x8, scoped, tag = 'scoped memory for transformer_blocks.1']
    #allocation15 [shape = 'u8[1024]{0}', space=vmem, size = 0x400, scoped, tag = 'input window, operand 21']
    #allocation16 [shape = 'u8[8192]{0}', space=vmem, size = 0x2000, scoped, tag = 'output window, operand 0']
    %29 = vsyncpa [#allocation5], 0
    %s30 = scalar_lea.sflag [#allocation5], 1
    %31 = vsyncpa %s30, 0
    %32 = vsyncpa [#allocation8], 0
    %s33 = scalar_lea.sflag [#allocation8], 1
    %34 = vsyncpa %s33, 0
    %35 = vsyncpa [#allocation11], 0
    %s36 = scalar_lea.sflag [#allocation11], 1
    %37 = vsyncpa %s36, 0
    %38 = vsyncpa [#allocation14], 0
    %s39 = scalar_lea.sflag [#allocation14], 1
    %40 = vsyncpa %s39, 0
    %41 = vsyncpa [#allocation6], 0
    %s42 = scalar_lea.sflag [#allocation6], 1
    %43 = vsyncpa %s42, 0
    loop: start=0, step=1, limit=6
    $region2: #{transformer_blocks.1} parent=1 // loop_pre_header
      _
    $region3: #{transformer_blocks.1} parent=1 // loop_header
      %s45 = sphi 0, %s49
      %p46 = scmp.ge.s32.totalorder %s45, 6
      %s52 = sphi 0, %s64
      %s53 = sphi 0, %s60
      %s54 = sphi 0, %s52
      %s55 = sphi 0, %s53
      %s56 = sphi 0, %s54
      %s57 = sphi 0, %s55
      %s67 = sphi 0, %s69
      %s70 = sphi 0, %s67
      %s71 = sphi 0, %s70
      %s87 = sphi 0, %s71
      %s93 = sphi 0, %s95
      %s96 = sphi 0, %s93
      %s97 = sphi 0, %s96
      %s113 = sphi 0, %s97
      %s119 = sphi 0, %s121
      %s122 = sphi 0, %s119
      %s123 = sphi 0, %s122
      %s139 = sphi 0, %s123
      %s145 = sphi 0, %s147
      %s148 = sphi 0, %s145
      %s149 = sphi 0, %s148
      %s165 = sphi 0, %s149
      %s171 = sphi 0, %s173
      %s174 = sphi 0, %s171
      %s175 = sphi 0, %s174
      %s191 = sphi 0, %s175
      %s197 = sphi 0, %s199
      %s200 = sphi 0, %s197
      %s201 = sphi 0, %s200
      %s217 = sphi 0, %s201
      %s223 = sphi 0, %s225
      %s226 = sphi 0, %s223
      %s227 = sphi 0, %s226
      %s243 = sphi 0, %s227
      %s249 = sphi 0, %s251
      %s252 = sphi 0, %s249
      %s253 = sphi 0, %s252
      %s269 = sphi 0, %s253
      %s275 = sphi 0, %s277
      %s278 = sphi 0, %s275
      %s279 = sphi 0, %s278
      %s295 = sphi 0, %s279
      %s301 = sphi 0, %s303
      %s304 = sphi 0, %s301
      %s305 = sphi 0, %s304
      %s321 = sphi 0, %s305
      %s327 = sphi 0, %s329
      %s330 = sphi 0, %s327
      %s331 = sphi 0, %s330
      %s347 = sphi 0, %s331
      %s353 = sphi 0, %s355
      %s356 = sphi 0, %s353
      %s357 = sphi 0, %s356
      %s373 = sphi 0, %s357
      %s379 = sphi 0, %s381
      %s382 = sphi 0, %s379
      %s383 = sphi 0, %s382
      %s399 = sphi 0, %s383
      %s405 = sphi 0, %s407
      %s408 = sphi 0, %s405
      %s409 = sphi 0, %s408
      %s425 = sphi 0, %s409
      %s431 = sphi 0, %s433
      %s434 = sphi 0, %s431
      %s435 = sphi 0, %s434
      %s451 = sphi 0, %s435
      %s457 = sphi 0, %s459
      %s460 = sphi 0, %s457
      %s461 = sphi 0, %s460
      %s477 = sphi 0, %s461
      %s483 = sphi 0, %s485
      %s486 = sphi 0, %s483
      %s487 = sphi 0, %s486
      %s503 = sphi 0, %s487
      %s509 = sphi 0, %s511
      %s512 = sphi 0, %s509
      %s513 = sphi 0, %s512
      %s529 = sphi 0, %s513
      %s535 = sphi 0, %s537
      %s538 = sphi 0, %s535
      %s539 = sphi 0, %s538
      %s555 = sphi 0, %s539
      %s561 = sphi 0, %s563
      %s564 = sphi 0, %s561
      %s565 = sphi 0, %s564
      %s581 = sphi 0, %s565
      %s587 = sphi 0, %s589
      %s590 = sphi 0, %s587
      %s591 = sphi 0, %s590
      %s607 = sphi 0, %s591
      %s613 = sphi 0, %s615
      %s616 = sphi 0, %s613
      %s617 = sphi 0, %s616
      %s633 = sphi 0, %s617
      %s639 = sphi 0, %s641
      %s642 = sphi 0, %s639
      %s643 = sphi 0, %s642
      %s659 = sphi 0, %s643
      %s663 = sphi 0, %s663
      %s665 = sphi 0, %s663
      %s666 = sphi 0, %s665
      %s680 = sphi 0, %s666
      %s686 = sphi 0, %s688
      %s689 = sphi 0, %s686
      %s690 = sphi 0, %s689
      %s706 = sphi 0, %s690
    $region4: #{transformer_blocks.1} parent=1 // loop_header_branch
      %48 = sbr.rel (%p46) target = $region8
    $region5: #{transformer_blocks.1} parent=1 // loop_body
      %s50 = ssub.s32 %s45, 1
      %s51 = ssub.s32 %s45, 2
      %s58 = sadd.s32 1, %s53
      %p59 = scmp.ge.s32.totalorder %s58, 2
      %s60 = scalar_select %p59, 0, %s58
      %s61 = sadd.s32 1, %s52
      %s62 = scalar_select %p59, %s61, %s52
      %p63 = scmp.ge.s32.totalorder %s62, 2
      %s64 = scalar_select %p63, 0, %s62
      %s65 = ssub.s32 %s52, %s64
      %p66 = scmp.eq.s32.totalorder %s65, 0
      %s68 = sadd.s32 %s67, 1
      %s69 = scalar_select %p66, %s67, %s68
      %p72 = pneg %p66
      %p73 = scmp.eq.s32.totalorder %s45, 3
      %p74 = por %p72, %p73
      %p75 = scmp.ne.s32.totalorder %s67, %s70
      %p76 = scmp.eq.s32.totalorder %s45, 0
      %p77 = por %p75, %p76
      %p78 = scmp.ne.s32.totalorder %s67, %s70
      %p79 = scmp.eq.s32.totalorder %s50, 3
      %p80 = por %p78, %p79
      %p81 = scmp.ne.s32.totalorder %s70, %s71
      %p82 = scmp.eq.s32.totalorder %s50, 0
      %p83 = por %p81, %p82
      %p84 = scmp.ne.s32.totalorder %s70, %s71
      %p85 = scmp.eq.s32.totalorder %s51, 3
      %p86 = por %p84, %p85
      %p88 = scmp.ne.s32.totalorder %s71, %s87
      %p89 = scmp.eq.s32.totalorder %s51, 0
      %p90 = por %p88, %p89
      %s91 = ssub.s32 %s52, %s64
      %p92 = scmp.eq.s32.totalorder %s91, 0
      %s94 = sadd.s32 %s93, 1
      %s95 = scalar_select %p92, %s93, %s94
      %p98 = pneg %p92
      %p99 = scmp.eq.s32.totalorder %s45, 3
      %p100 = por %p98, %p99
      %p101 = scmp.ne.s32.totalorder %s93, %s96
      %p102 = scmp.eq.s32.totalorder %s45, 0
      %p103 = por %p101, %p102
      %p104 = scmp.ne.s32.totalorder %s93, %s96
      %p105 = scmp.eq.s32.totalorder %s50, 3
      %p106 = por %p104, %p105
      %p107 = scmp.ne.s32.totalorder %s96, %s97
      %p108 = scmp.eq.s32.totalorder %s50, 0
      %p109 = por %p107, %p108
      %p110 = scmp.ne.s32.totalorder %s96, %s97
      %p111 = scmp.eq.s32.totalorder %s51, 3
      %p112 = por %p110, %p111
      %p114 = scmp.ne.s32.totalorder %s97, %s113
      %p115 = scmp.eq.s32.totalorder %s51, 0
      %p116 = por %p114, %p115
      %s117 = ssub.s32 %s52, %s64
      %p118 = scmp.eq.s32.totalorder %s117, 0
      %s120 = sadd.s32 %s119, 1
      %s121 = scalar_select %p118, %s119, %s120
      %p124 = pneg %p118
      %p125 = scmp.eq.s32.totalorder %s45, 3
      %p126 = por %p124, %p125
      %p127 = scmp.ne.s32.totalorder %s119, %s122
      %p128 = scmp.eq.s32.totalorder %s45, 0
      %p129 = por %p127, %p128
      %p130 = scmp.ne.s32.totalorder %s119, %s122
      %p131 = scmp.eq.s32.totalorder %s50, 3
      %p132 = por %p130, %p131
      %p133 = scmp.ne.s32.totalorder %s122, %s123
      %p134 = scmp.eq.s32.totalorder %s50, 0
      %p135 = por %p133, %p134
      %p136 = scmp.ne.s32.totalorder %s122, %s123
      %p137 = scmp.eq.s32.totalorder %s51, 3
      %p138 = por %p136, %p137
      %p140 = scmp.ne.s32.totalorder %s123, %s139
      %p141 = scmp.eq.s32.totalorder %s51, 0
      %p142 = por %p140, %p141
      %s143 = ssub.s32 %s53, %s60
      %p144 = scmp.eq.s32.totalorder %s143, 0
      %s146 = sadd.s32 %s145, 1
      %s147 = scalar_select %p144, %s145, %s146
      %p150 = pneg %p144
      %p151 = scmp.eq.s32.totalorder %s45, 3
      %p152 = por %p150, %p151
      %p153 = scmp.ne.s32.totalorder %s145, %s148
      %p154 = scmp.eq.s32.totalorder %s45, 0
      %p155 = por %p153, %p154
      %p156 = scmp.ne.s32.totalorder %s145, %s148
      %p157 = scmp.eq.s32.totalorder %s50, 3
      %p158 = por %p156, %p157
      %p159 = scmp.ne.s32.totalorder %s148, %s149
      %p160 = scmp.eq.s32.totalorder %s50, 0
      %p161 = por %p159, %p160
      %p162 = scmp.ne.s32.totalorder %s148, %s149
      %p163 = scmp.eq.s32.totalorder %s51, 3
      %p164 = por %p162, %p163
      %p166 = scmp.ne.s32.totalorder %s149, %s165
      %p167 = scmp.eq.s32.totalorder %s51, 0
      %p168 = por %p166, %p167
      %s169 = ssub.s32 %s53, %s60
      %p170 = scmp.eq.s32.totalorder %s169, 0
      %s172 = sadd.s32 %s171, 1
      %s173 = scalar_select %p170, %s171, %s172
      %p176 = pneg %p170
      %p177 = scmp.eq.s32.totalorder %s45, 3
      %p178 = por %p176, %p177
      %p179 = scmp.ne.s32.totalorder %s171, %s174
      %p180 = scmp.eq.s32.totalorder %s45, 0
      %p181 = por %p179, %p180
      %p182 = scmp.ne.s32.totalorder %s171, %s174
      %p183 = scmp.eq.s32.totalorder %s50, 3
      %p184 = por %p182, %p183
      %p185 = scmp.ne.s32.totalorder %s174, %s175
      %p186 = scmp.eq.s32.totalorder %s50, 0
      %p187 = por %p185, %p186
      %p188 = scmp.ne.s32.totalorder %s174, %s175
      %p189 = scmp.eq.s32.totalorder %s51, 3
      %p190 = por %p188, %p189
      %p192 = scmp.ne.s32.totalorder %s175, %s191
      %p193 = scmp.eq.s32.totalorder %s51, 0
      %p194 = por %p192, %p193
      %s195 = ssub.s32 %s53, %s60
      %p196 = scmp.eq.s32.totalorder %s195, 0
      %s198 = sadd.s32 %s197, 1
      %s199 = scalar_select %p196, %s197, %s198
      %p202 = pneg %p196
      %p203 = scmp.eq.s32.totalorder %s45, 3
      %p204 = por %p202, %p203
      %p205 = scmp.ne.s32.totalorder %s197, %s200
      %p206 = scmp.eq.s32.totalorder %s45, 0
      %p207 = por %p205, %p206
      %p208 = scmp.ne.s32.totalorder %s197, %s200
      %p209 = scmp.eq.s32.totalorder %s50, 3
      %p210 = por %p208, %p209
      %p211 = scmp.ne.s32.totalorder %s200, %s201
      %p212 = scmp.eq.s32.totalorder %s50, 0
      %p213 = por %p211, %p212
      %p214 = scmp.ne.s32.totalorder %s200, %s201
      %p215 = scmp.eq.s32.totalorder %s51, 3
      %p216 = por %p214, %p215
      %p218 = scmp.ne.s32.totalorder %s201, %s217
      %p219 = scmp.eq.s32.totalorder %s51, 0
      %p220 = por %p218, %p219
      %s221 = ssub.s32 %s53, %s60
      %p222 = scmp.eq.s32.totalorder %s221, 0
      %s224 = sadd.s32 %s223, 1
      %s225 = scalar_select %p222, %s223, %s224
      %p228 = pneg %p222
      %p229 = scmp.eq.s32.totalorder %s45, 3
      %p230 = por %p228, %p229
      %p231 = scmp.ne.s32.totalorder %s223, %s226
      %p232 = scmp.eq.s32.totalorder %s45, 0
      %p233 = por %p231, %p232
      %p234 = scmp.ne.s32.totalorder %s223, %s226
      %p235 = scmp.eq.s32.totalorder %s50, 3
      %p236 = por %p234, %p235
      %p237 = scmp.ne.s32.totalorder %s226, %s227
      %p238 = scmp.eq.s32.totalorder %s50, 0
      %p239 = por %p237, %p238
      %p240 = scmp.ne.s32.totalorder %s226, %s227
      %p241 = scmp.eq.s32.totalorder %s51, 3
      %p242 = por %p240, %p241
      %p244 = scmp.ne.s32.totalorder %s227, %s243
      %p245 = scmp.eq.s32.totalorder %s51, 0
      %p246 = por %p244, %p245
      %s247 = ssub.s32 %s53, %s60
      %p248 = scmp.eq.s32.totalorder %s247, 0
      %s250 = sadd.s32 %s249, 1
      %s251 = scalar_select %p248, %s249, %s250
      %p254 = pneg %p248
      %p255 = scmp.eq.s32.totalorder %s45, 3
      %p256 = por %p254, %p255
      %p257 = scmp.ne.s32.totalorder %s249, %s252
      %p258 = scmp.eq.s32.totalorder %s45, 0
      %p259 = por %p257, %p258
      %p260 = scmp.ne.s32.totalorder %s249, %s252
      %p261 = scmp.eq.s32.totalorder %s50, 3
      %p262 = por %p260, %p261
      %p263 = scmp.ne.s32.totalorder %s252, %s253
      %p264 = scmp.eq.s32.totalorder %s50, 0
      %p265 = por %p263, %p264
      %p266 = scmp.ne.s32.totalorder %s252, %s253
      %p267 = scmp.eq.s32.totalorder %s51, 3
      %p268 = por %p266, %p267
      %p270 = scmp.ne.s32.totalorder %s253, %s269
      %p271 = scmp.eq.s32.totalorder %s51, 0
      %p272 = por %p270, %p271
      %s273 = ssub.s32 %s53, %s60
      %p274 = scmp.eq.s32.totalorder %s273, 0
      %s276 = sadd.s32 %s275, 1
      %s277 = scalar_select %p274, %s275, %s276
      %p280 = pneg %p274
      %p281 = scmp.eq.s32.totalorder %s45, 3
      %p282 = por %p280, %p281
      %p283 = scmp.ne.s32.totalorder %s275, %s278
      %p284 = scmp.eq.s32.totalorder %s45, 0
      %p285 = por %p283, %p284
      %p286 = scmp.ne.s32.totalorder %s275, %s278
      %p287 = scmp.eq.s32.totalorder %s50, 3
      %p288 = por %p286, %p287
      %p289 = scmp.ne.s32.totalorder %s278, %s279
      %p290 = scmp.eq.s32.totalorder %s50, 0
      %p291 = por %p289, %p290
      %p292 = scmp.ne.s32.totalorder %s278, %s279
      %p293 = scmp.eq.s32.totalorder %s51, 3
      %p294 = por %p292, %p293
      %p296 = scmp.ne.s32.totalorder %s279, %s295
      %p297 = scmp.eq.s32.totalorder %s51, 0
      %p298 = por %p296, %p297
      %s299 = ssub.s32 %s53, %s60
      %p300 = scmp.eq.s32.totalorder %s299, 0
      %s302 = sadd.s32 %s301, 1
      %s303 = scalar_select %p300, %s301, %s302
      %p306 = pneg %p300
      %p307 = scmp.eq.s32.totalorder %s45, 3
      %p308 = por %p306, %p307
      %p309 = scmp.ne.s32.totalorder %s301, %s304
      %p310 = scmp.eq.s32.totalorder %s45, 0
      %p311 = por %p309, %p310
      %p312 = scmp.ne.s32.totalorder %s301, %s304
      %p313 = scmp.eq.s32.totalorder %s50, 3
      %p314 = por %p312, %p313
      %p315 = scmp.ne.s32.totalorder %s304, %s305
      %p316 = scmp.eq.s32.totalorder %s50, 0
      %p317 = por %p315, %p316
      %p318 = scmp.ne.s32.totalorder %s304, %s305
      %p319 = scmp.eq.s32.totalorder %s51, 3
      %p320 = por %p318, %p319
      %p322 = scmp.ne.s32.totalorder %s305, %s321
      %p323 = scmp.eq.s32.totalorder %s51, 0
      %p324 = por %p322, %p323
      %s325 = ssub.s32 %s53, %s60
      %p326 = scmp.eq.s32.totalorder %s325, 0
      %s328 = sadd.s32 %s327, 1
      %s329 = scalar_select %p326, %s327, %s328
      %p332 = pneg %p326
      %p333 = scmp.eq.s32.totalorder %s45, 3
      %p334 = por %p332, %p333
      %p335 = scmp.ne.s32.totalorder %s327, %s330
      %p336 = scmp.eq.s32.totalorder %s45, 0
      %p337 = por %p335, %p336
      %p338 = scmp.ne.s32.totalorder %s327, %s330
      %p339 = scmp.eq.s32.totalorder %s50, 3
      %p340 = por %p338, %p339
      %p341 = scmp.ne.s32.totalorder %s330, %s331
      %p342 = scmp.eq.s32.totalorder %s50, 0
      %p343 = por %p341, %p342
      %p344 = scmp.ne.s32.totalorder %s330, %s331
      %p345 = scmp.eq.s32.totalorder %s51, 3
      %p346 = por %p344, %p345
      %p348 = scmp.ne.s32.totalorder %s331, %s347
      %p349 = scmp.eq.s32.totalorder %s51, 0
      %p350 = por %p348, %p349
      %s351 = ssub.s32 %s53, %s60
      %p352 = scmp.eq.s32.totalorder %s351, 0
      %s354 = sadd.s32 %s353, 1
      %s355 = scalar_select %p352, %s353, %s354
      %p358 = pneg %p352
      %p359 = scmp.eq.s32.totalorder %s45, 3
      %p360 = por %p358, %p359
      %p361 = scmp.ne.s32.totalorder %s353, %s356
      %p362 = scmp.eq.s32.totalorder %s45, 0
      %p363 = por %p361, %p362
      %p364 = scmp.ne.s32.totalorder %s353, %s356
      %p365 = scmp.eq.s32.totalorder %s50, 3
      %p366 = por %p364, %p365
      %p367 = scmp.ne.s32.totalorder %s356, %s357
      %p368 = scmp.eq.s32.totalorder %s50, 0
      %p369 = por %p367, %p368
      %p370 = scmp.ne.s32.totalorder %s356, %s357
      %p371 = scmp.eq.s32.totalorder %s51, 3
      %p372 = por %p370, %p371
      %p374 = scmp.ne.s32.totalorder %s357, %s373
      %p375 = scmp.eq.s32.totalorder %s51, 0
      %p376 = por %p374, %p375
      %s377 = ssub.s32 %s53, %s60
      %p378 = scmp.eq.s32.totalorder %s377, 0
      %s380 = sadd.s32 %s379, 1
      %s381 = scalar_select %p378, %s379, %s380
      %p384 = pneg %p378
      %p385 = scmp.eq.s32.totalorder %s45, 3
      %p386 = por %p384, %p385
      %p387 = scmp.ne.s32.totalorder %s379, %s382
      %p388 = scmp.eq.s32.totalorder %s45, 0
      %p389 = por %p387, %p388
      %p390 = scmp.ne.s32.totalorder %s379, %s382
      %p391 = scmp.eq.s32.totalorder %s50, 3
      %p392 = por %p390, %p391
      %p393 = scmp.ne.s32.totalorder %s382, %s383
      %p394 = scmp.eq.s32.totalorder %s50, 0
      %p395 = por %p393, %p394
      %p396 = scmp.ne.s32.totalorder %s382, %s383
      %p397 = scmp.eq.s32.totalorder %s51, 3
      %p398 = por %p396, %p397
      %p400 = scmp.ne.s32.totalorder %s383, %s399
      %p401 = scmp.eq.s32.totalorder %s51, 0
      %p402 = por %p400, %p401
      %s403 = ssub.s32 %s53, %s60
      %p404 = scmp.eq.s32.totalorder %s403, 0
      %s406 = sadd.s32 %s405, 1
      %s407 = scalar_select %p404, %s405, %s406
      %p410 = pneg %p404
      %p411 = scmp.eq.s32.totalorder %s45, 3
      %p412 = por %p410, %p411
      %p413 = scmp.ne.s32.totalorder %s405, %s408
      %p414 = scmp.eq.s32.totalorder %s45, 0
      %p415 = por %p413, %p414
      %p416 = scmp.ne.s32.totalorder %s405, %s408
      %p417 = scmp.eq.s32.totalorder %s50, 3
      %p418 = por %p416, %p417
      %p419 = scmp.ne.s32.totalorder %s408, %s409
      %p420 = scmp.eq.s32.totalorder %s50, 0
      %p421 = por %p419, %p420
      %p422 = scmp.ne.s32.totalorder %s408, %s409
      %p423 = scmp.eq.s32.totalorder %s51, 3
      %p424 = por %p422, %p423
      %p426 = scmp.ne.s32.totalorder %s409, %s425
      %p427 = scmp.eq.s32.totalorder %s51, 0
      %p428 = por %p426, %p427
      %s429 = ssub.s32 %s53, %s60
      %p430 = scmp.eq.s32.totalorder %s429, 0
      %s432 = sadd.s32 %s431, 1
      %s433 = scalar_select %p430, %s431, %s432
      %p436 = pneg %p430
      %p437 = scmp.eq.s32.totalorder %s45, 3
      %p438 = por %p436, %p437
      %p439 = scmp.ne.s32.totalorder %s431, %s434
      %p440 = scmp.eq.s32.totalorder %s45, 0
      %p441 = por %p439, %p440
      %p442 = scmp.ne.s32.totalorder %s431, %s434
      %p443 = scmp.eq.s32.totalorder %s50, 3
      %p444 = por %p442, %p443
      %p445 = scmp.ne.s32.totalorder %s434, %s435
      %p446 = scmp.eq.s32.totalorder %s50, 0
      %p447 = por %p445, %p446
      %p448 = scmp.ne.s32.totalorder %s434, %s435
      %p449 = scmp.eq.s32.totalorder %s51, 3
      %p450 = por %p448, %p449
      %p452 = scmp.ne.s32.totalorder %s435, %s451
      %p453 = scmp.eq.s32.totalorder %s51, 0
      %p454 = por %p452, %p453
      %s455 = ssub.s32 %s53, %s60
      %p456 = scmp.eq.s32.totalorder %s455, 0
      %s458 = sadd.s32 %s457, 1
      %s459 = scalar_select %p456, %s457, %s458
      %p462 = pneg %p456
      %p463 = scmp.eq.s32.totalorder %s45, 3
      %p464 = por %p462, %p463
      %p465 = scmp.ne.s32.totalorder %s457, %s460
      %p466 = scmp.eq.s32.totalorder %s45, 0
      %p467 = por %p465, %p466
      %p468 = scmp.ne.s32.totalorder %s457, %s460
      %p469 = scmp.eq.s32.totalorder %s50, 3
      %p470 = por %p468, %p469
      %p471 = scmp.ne.s32.totalorder %s460, %s461
      %p472 = scmp.eq.s32.totalorder %s50, 0
      %p473 = por %p471, %p472
      %p474 = scmp.ne.s32.totalorder %s460, %s461
      %p475 = scmp.eq.s32.totalorder %s51, 3
      %p476 = por %p474, %p475
      %p478 = scmp.ne.s32.totalorder %s461, %s477
      %p479 = scmp.eq.s32.totalorder %s51, 0
      %p480 = por %p478, %p479
      %s481 = ssub.s32 %s53, %s60
      %p482 = scmp.eq.s32.totalorder %s481, 0
      %s484 = sadd.s32 %s483, 1
      %s485 = scalar_select %p482, %s483, %s484
      %p488 = pneg %p482
      %p489 = scmp.eq.s32.totalorder %s45, 3
      %p490 = por %p488, %p489
      %p491 = scmp.ne.s32.totalorder %s483, %s486
      %p492 = scmp.eq.s32.totalorder %s45, 0
      %p493 = por %p491, %p492
      %p494 = scmp.ne.s32.totalorder %s483, %s486
      %p495 = scmp.eq.s32.totalorder %s50, 3
      %p496 = por %p494, %p495
      %p497 = scmp.ne.s32.totalorder %s486, %s487
      %p498 = scmp.eq.s32.totalorder %s50, 0
      %p499 = por %p497, %p498
      %p500 = scmp.ne.s32.totalorder %s486, %s487
      %p501 = scmp.eq.s32.totalorder %s51, 3
      %p502 = por %p500, %p501
      %p504 = scmp.ne.s32.totalorder %s487, %s503
      %p505 = scmp.eq.s32.totalorder %s51, 0
      %p506 = por %p504, %p505
      %s507 = ssub.s32 %s53, %s60
      %p508 = scmp.eq.s32.totalorder %s507, 0
      %s510 = sadd.s32 %s509, 1
      %s511 = scalar_select %p508, %s509, %s510
      %p514 = pneg %p508
      %p515 = scmp.eq.s32.totalorder %s45, 3
      %p516 = por %p514, %p515
      %p517 = scmp.ne.s32.totalorder %s509, %s512
      %p518 = scmp.eq.s32.totalorder %s45, 0
      %p519 = por %p517, %p518
      %p520 = scmp.ne.s32.totalorder %s509, %s512
      %p521 = scmp.eq.s32.totalorder %s50, 3
      %p522 = por %p520, %p521
      %p523 = scmp.ne.s32.totalorder %s512, %s513
      %p524 = scmp.eq.s32.totalorder %s50, 0
      %p525 = por %p523, %p524
      %p526 = scmp.ne.s32.totalorder %s512, %s513
      %p527 = scmp.eq.s32.totalorder %s51, 3
      %p528 = por %p526, %p527
      %p530 = scmp.ne.s32.totalorder %s513, %s529
      %p531 = scmp.eq.s32.totalorder %s51, 0
      %p532 = por %p530, %p531
      %s533 = ssub.s32 %s53, %s60
      %p534 = scmp.eq.s32.totalorder %s533, 0
      %s536 = sadd.s32 %s535, 1
      %s537 = scalar_select %p534, %s535, %s536
      %p540 = pneg %p534
      %p541 = scmp.eq.s32.totalorder %s45, 3
      %p542 = por %p540, %p541
      %p543 = scmp.ne.s32.totalorder %s535, %s538
      %p544 = scmp.eq.s32.totalorder %s45, 0
      %p545 = por %p543, %p544
      %p546 = scmp.ne.s32.totalorder %s535, %s538
      %p547 = scmp.eq.s32.totalorder %s50, 3
      %p548 = por %p546, %p547
      %p549 = scmp.ne.s32.totalorder %s538, %s539
      %p550 = scmp.eq.s32.totalorder %s50, 0
      %p551 = por %p549, %p550
      %p552 = scmp.ne.s32.totalorder %s538, %s539
      %p553 = scmp.eq.s32.totalorder %s51, 3
      %p554 = por %p552, %p553
      %p556 = scmp.ne.s32.totalorder %s539, %s555
      %p557 = scmp.eq.s32.totalorder %s51, 0
      %p558 = por %p556, %p557
      %s559 = ssub.s32 %s53, %s60
      %p560 = scmp.eq.s32.totalorder %s559, 0
      %s562 = sadd.s32 %s561, 1
      %s563 = scalar_select %p560, %s561, %s562
      %p566 = pneg %p560
      %p567 = scmp.eq.s32.totalorder %s45, 3
      %p568 = por %p566, %p567
      %p569 = scmp.ne.s32.totalorder %s561, %s564
      %p570 = scmp.eq.s32.totalorder %s45, 0
      %p571 = por %p569, %p570
      %p572 = scmp.ne.s32.totalorder %s561, %s564
      %p573 = scmp.eq.s32.totalorder %s50, 3
      %p574 = por %p572, %p573
      %p575 = scmp.ne.s32.totalorder %s564, %s565
      %p576 = scmp.eq.s32.totalorder %s50, 0
      %p577 = por %p575, %p576
      %p578 = scmp.ne.s32.totalorder %s564, %s565
      %p579 = scmp.eq.s32.totalorder %s51, 3
      %p580 = por %p578, %p579
      %p582 = scmp.ne.s32.totalorder %s565, %s581
      %p583 = scmp.eq.s32.totalorder %s51, 0
      %p584 = por %p582, %p583
      %s585 = ssub.s32 %s53, %s60
      %p586 = scmp.eq.s32.totalorder %s585, 0
      %s588 = sadd.s32 %s587, 1
      %s589 = scalar_select %p586, %s587, %s588
      %p592 = pneg %p586
      %p593 = scmp.eq.s32.totalorder %s45, 3
      %p594 = por %p592, %p593
      %p595 = scmp.ne.s32.totalorder %s587, %s590
      %p596 = scmp.eq.s32.totalorder %s45, 0
      %p597 = por %p595, %p596
      %p598 = scmp.ne.s32.totalorder %s587, %s590
      %p599 = scmp.eq.s32.totalorder %s50, 3
      %p600 = por %p598, %p599
      %p601 = scmp.ne.s32.totalorder %s590, %s591
      %p602 = scmp.eq.s32.totalorder %s50, 0
      %p603 = por %p601, %p602
      %p604 = scmp.ne.s32.totalorder %s590, %s591
      %p605 = scmp.eq.s32.totalorder %s51, 3
      %p606 = por %p604, %p605
      %p608 = scmp.ne.s32.totalorder %s591, %s607
      %p609 = scmp.eq.s32.totalorder %s51, 0
      %p610 = por %p608, %p609
      %s611 = ssub.s32 %s53, %s60
      %p612 = scmp.eq.s32.totalorder %s611, 0
      %s614 = sadd.s32 %s613, 1
      %s615 = scalar_select %p612, %s613, %s614
      %p618 = pneg %p612
      %p619 = scmp.eq.s32.totalorder %s45, 3
      %p620 = por %p618, %p619
      %p621 = scmp.ne.s32.totalorder %s613, %s616
      %p622 = scmp.eq.s32.totalorder %s45, 0
      %p623 = por %p621, %p622
      %p624 = scmp.ne.s32.totalorder %s613, %s616
      %p625 = scmp.eq.s32.totalorder %s50, 3
      %p626 = por %p624, %p625
      %p627 = scmp.ne.s32.totalorder %s616, %s617
      %p628 = scmp.eq.s32.totalorder %s50, 0
      %p629 = por %p627, %p628
      %p630 = scmp.ne.s32.totalorder %s616, %s617
      %p631 = scmp.eq.s32.totalorder %s51, 3
      %p632 = por %p630, %p631
      %p634 = scmp.ne.s32.totalorder %s617, %s633
      %p635 = scmp.eq.s32.totalorder %s51, 0
      %p636 = por %p634, %p635
      %s637 = ssub.s32 %s53, %s60
      %p638 = scmp.eq.s32.totalorder %s637, 0
      %s640 = sadd.s32 %s639, 1
      %s641 = scalar_select %p638, %s639, %s640
      %p644 = pneg %p638
      %p645 = scmp.eq.s32.totalorder %s45, 3
      %p646 = por %p644, %p645
      %p647 = scmp.ne.s32.totalorder %s639, %s642
      %p648 = scmp.eq.s32.totalorder %s45, 0
      %p649 = por %p647, %p648
      %p650 = scmp.ne.s32.totalorder %s639, %s642
      %p651 = scmp.eq.s32.totalorder %s50, 3
      %p652 = por %p650, %p651
      %p653 = scmp.ne.s32.totalorder %s642, %s643
      %p654 = scmp.eq.s32.totalorder %s50, 0
      %p655 = por %p653, %p654
      %p656 = scmp.ne.s32.totalorder %s642, %s643
      %p657 = scmp.eq.s32.totalorder %s51, 3
      %p658 = por %p656, %p657
      %p660 = scmp.ne.s32.totalorder %s643, %s659
      %p661 = scmp.eq.s32.totalorder %s51, 0
      %p662 = por %p660, %p661
      %s664 = sadd.s32 %s663, 1
      %p667 = scmp.eq.s32.totalorder %s45, 3
      %p668 = scmp.ne.s32.totalorder %s663, %s665
      %p669 = scmp.eq.s32.totalorder %s45, 0
      %p670 = por %p668, %p669
      %p671 = scmp.ne.s32.totalorder %s663, %s665
      %p672 = scmp.eq.s32.totalorder %s50, 3
      %p673 = por %p671, %p672
      %p674 = scmp.ne.s32.totalorder %s665, %s666
      %p675 = scmp.eq.s32.totalorder %s50, 0
      %p676 = por %p674, %p675
      %p677 = scmp.ne.s32.totalorder %s665, %s666
      %p678 = scmp.eq.s32.totalorder %s51, 3
      %p679 = por %p677, %p678
      %p681 = scmp.ne.s32.totalorder %s666, %s680
      %p682 = scmp.eq.s32.totalorder %s51, 0
      %p683 = por %p681, %p682
      %s684 = ssub.s32 %s52, %s64
      %p685 = scmp.eq.s32.totalorder %s684, 0
      %s687 = sadd.s32 %s686, 1
      %s688 = scalar_select %p685, %s686, %s687
      %p691 = pneg %p685
      %p692 = scmp.eq.s32.totalorder %s45, 3
      %p693 = por %p691, %p692
      %p694 = scmp.ne.s32.totalorder %s686, %s689
      %p695 = scmp.eq.s32.totalorder %s45, 0
      %p696 = por %p694, %p695
      %p697 = scmp.ne.s32.totalorder %s686, %s689
      %p698 = scmp.eq.s32.totalorder %s50, 3
      %p699 = por %p697, %p698
      %p700 = scmp.ne.s32.totalorder %s689, %s690
      %p701 = scmp.eq.s32.totalorder %s50, 0
      %p702 = por %p700, %p701
      %p703 = scmp.ne.s32.totalorder %s689, %s690
      %p704 = scmp.eq.s32.totalorder %s51, 3
      %p705 = por %p703, %p704
      %p707 = scmp.ne.s32.totalorder %s690, %s706
      %p708 = scmp.eq.s32.totalorder %s51, 0
      %p709 = por %p707, %p708
      %p710 = scmp.le.s32.totalorder 1, %s45
      %p711 = scmp.lt.s32.totalorder %s45, 5
      %p712 = pnand %p710, %p711
      %p713 = pneg %p712
      // Predicated region
      $region9: #{transformer_blocks.1} parent=5 // pred_check
        _
      $region10: #{transformer_blocks.1} parent=5 // pred_check_branch
        %715 = sbr.rel (%p712) target = $region12
      $region11: #{transformer_blocks.1} parent=5 // pred_region
        %s716 = ssub.s32 %s45, 1
        // Predicated region
        $region13: #{transformer_blocks.1} parent=11 // pred_check
          %p717 = pneg %p676
        $region14: #{transformer_blocks.1} parent=11 // pred_check_branch
          %719 = sbr.rel (%p717) target = $region16
        $region15: #{transformer_blocks.1} parent=11 // pred_region
          _
        $region16: #{transformer_blocks.1} parent=11 // pred_fallthru
          _
      $region12: #{transformer_blocks.1} parent=5 // pred_fallthru
        _
      %p720 = scmp.lt.s32.totalorder %s45, 4
      // Predicated region
      $region17: #{transformer_blocks.1} parent=5 // pred_check
        %p721 = pneg %p720
      $region18: #{transformer_blocks.1} parent=5 // pred_check_branch
        %723 = sbr.rel (%p721) target = $region20
      $region19: #{transformer_blocks.1} parent=5 // pred_region
        // Predicated region
        $region21: #{transformer_blocks.1} parent=19 // pred_check
          %p724 = pneg %p77
        $region22: #{transformer_blocks.1} parent=19 // pred_check_branch
          %726 = sbr.rel (%p724) target = $region24
        $region23: #{transformer_blocks.1} parent=19 // pred_region
          %p727 = scmp.lt.s32.totalorder %s52, 1
          %s728 = scalar_select %p727, %s52, 1
          %s729 = smul.addr %s728, 8
          %s730 = scalar_lea.vmem %s0, %s729
        $region24: #{transformer_blocks.1} parent=19 // pred_fallthru
          _
        // Predicated region
        $region25: #{transformer_blocks.1} parent=19 // pred_check
          %p731 = pneg %p103
        $region26: #{transformer_blocks.1} parent=19 // pred_check_branch
          %733 = sbr.rel (%p731) target = $region28
        $region27: #{transformer_blocks.1} parent=19 // pred_region
          %p734 = scmp.lt.s32.totalorder %s52, 1
          %s735 = scalar_select %p734, %s52, 1
          %s736 = smul.addr %s735, 8
          %s737 = scalar_lea.vmem %s1, %s736
        $region28: #{transformer_blocks.1} parent=19 // pred_fallthru
          _
        // Predicated region
        $region29: #{transformer_blocks.1} parent=19 // pred_check
          %p738 = pneg %p129
        $region30: #{transformer_blocks.1} parent=19 // pred_check_branch
          %740 = sbr.rel (%p738) target = $region32
        $region31: #{transformer_blocks.1} parent=19 // pred_region
          %p741 = scmp.lt.s32.totalorder %s52, 1
          %s742 = scalar_select %p741, %s52, 1
          %s743 = scalar_lea.vmem %s2, %s742
        $region32: #{transformer_blocks.1} parent=19 // pred_fallthru
          _
        // Predicated region
        $region33: #{transformer_blocks.1} parent=19 // pred_check
          %p744 = pneg %p155
        $region34: #{transformer_blocks.1} parent=19 // pred_check_branch
          %746 = sbr.rel (%p744) target = $region36
        $region35: #{transformer_blocks.1} parent=19 // pred_region
          %p747 = scmp.lt.s32.totalorder %s53, 1
          %s748 = scalar_select %p747, %s53, 1
          %s749 = scalar_lea.vmem %s3, %s748
        $region36: #{transformer_blocks.1} parent=19 // pred_fallthru
          _
        // Predicated region
        $region37: #{transformer_blocks.1} parent=19 // pred_check
          %p750 = pneg %p181
        $region38: #{transformer_blocks.1} parent=19 // pred_check_branch
          %752 = sbr.rel (%p750) target = $region40
        $region39: #{transformer_blocks.1} parent=19 // pred_region
          %p753 = scmp.lt.s32.totalorder %s53, 1
          %s754 = scalar_select %p753, %s53, 1
          %s755 = smul.addr %s754, 6
          %s756 = smul.addr %s755, 8
          %s757 = scalar_lea.vmem %s4, %s756
        $region40: #{transformer_blocks.1} parent=19 // pred_fallthru
          _
        // Predicated region
        $region41: #{transformer_blocks.1} parent=19 // pred_check
          %p758 = pneg %p207
        $region42: #{transformer_blocks.1} parent=19 // pred_check_branch
          %760 = sbr.rel (%p758) target = $region44
        $region43: #{transformer_blocks.1} parent=19 // pred_region
          %p761 = scmp.lt.s32.totalorder %s53, 1
          %s762 = scalar_select %p761, %s53, 1
          %s763 = smul.addr %s762, 6
          %s764 = smul.addr %s763, 8
          %s765 = scalar_lea.vmem %s5, %s764
        $region44: #{transformer_blocks.1} parent=19 // pred_fallthru
          _
        // Predicated region
        $region45: #{transformer_blocks.1} parent=19 // pred_check
          %p766 = pneg %p233
        $region46: #{transformer_blocks.1} parent=19 // pred_check_branch
          %768 = sbr.rel (%p766) target = $region48
        $region47: #{transformer_blocks.1} parent=19 // pred_region
          %p769 = scmp.lt.s32.totalorder %s53, 1
          %s770 = scalar_select %p769, %s53, 1
          %s771 = smul.addr %s770, 8
          %s772 = smul.addr %s771, 8
          %s773 = scalar_lea.vmem %s6, %s772
        $region48: #{transformer_blocks.1} parent=19 // pred_fallthru
          _
        // Predicated region
        $region49: #{transformer_blocks.1} parent=19 // pred_check
          %p774 = pneg %p259
        $region50: #{transformer_blocks.1} parent=19 // pred_check_branch
          %776 = sbr.rel (%p774) target = $region52
        $region51: #{transformer_blocks.1} parent=19 // pred_region
          %p777 = scmp.lt.s32.totalorder %s53, 1
          %s778 = scalar_select %p777, %s53, 1
          %s779 = scalar_lea.vmem %s7, %s778
        $region52: #{transformer_blocks.1} parent=19 // pred_fallthru
          _
        // Predicated region
        $region53: #{transformer_blocks.1} parent=19 // pred_check
          %p780 = pneg %p285
        $region54: #{transformer_blocks.1} parent=19 // pred_check_branch
          %782 = sbr.rel (%p780) target = $region56
        $region55: #{transformer_blocks.1} parent=19 // pred_region
          %p783 = scmp.lt.s32.totalorder %s53, 1
          %s784 = scalar_select %p783, %s53, 1
          %s785 = scalar_lea.vmem %s8, %s784
        $region56: #{transformer_blocks.1} parent=19 // pred_fallthru
          _
        // Predicated region
        $region57: #{transformer_blocks.1} parent=19 // pred_check
          %p786 = pneg %p311
        $region58: #{transformer_blocks.1} parent=19 // pred_check_branch
          %788 = sbr.rel (%p786) target = $region60
        $region59: #{transformer_blocks.1} parent=19 // pred_region
          %p789 = scmp.lt.s32.totalorder %s53, 1
          %s790 = scalar_select %p789, %s53, 1
          %s791 = smul.addr %s790, 4
          %s792 = scalar_lea.vmem %s9, %s791
        $region60: #{transformer_blocks.1} parent=19 // pred_fallthru
          _
        // Predicated region
        $region61: #{transformer_blocks.1} parent=19 // pred_check
          %p793 = pneg %p337
        $region62: #{transformer_blocks.1} parent=19 // pred_check_branch
          %795 = sbr.rel (%p793) target = $region64
        $region63: #{transformer_blocks.1} parent=19 // pred_region
          %p796 = scmp.lt.s32.totalorder %s53, 1
          %s797 = scalar_select %p796, %s53, 1
          %s798 = smul.addr %s797, 4
          %s799 = scalar_lea.vmem %s10, %s798
        $region64: #{transformer_blocks.1} parent=19 // pred_fallthru
          _
        // Predicated region
        $region65: #{transformer_blocks.1} parent=19 // pred_check
          %p800 = pneg %p363
        $region66: #{transformer_blocks.1} parent=19 // pred_check_branch
          %802 = sbr.rel (%p800) target = $region68
        $region67: #{transformer_blocks.1} parent=19 // pred_region
          %s803 = sand.u32 %s353, 1
          %s804 = scalar_lea.sflag [#allocation5], %s803
          %s805 = sand.u32 %s353, 1
          %s806 = scalar_lea.vmem [#allocation4], %s805
          %s808 = ssub.s32 16, 16
          %809 = vsyncadd %s804, %s808
          %s810 = smul.addr %s53, 16
          %s811 = scalar_lea.hbm %s11, %s810
          %s813 = sshll.u32 %s806, 4
          %s814 = int_to_ptr.vmem [resolvable:$true] %s813
          %816 = dma.hbm_to_vmem [thread:$0]  %s811, 16, %s814, %s804
        $region68: #{transformer_blocks.1} parent=19 // pred_fallthru
          _
        // Predicated region
        $region69: #{transformer_blocks.1} parent=19 // pred_check
          %p817 = pneg %p389
        $region70: #{transformer_blocks.1} parent=19 // pred_check_branch
          %819 = sbr.rel (%p817) target = $region72
        $region71: #{transformer_blocks.1} parent=19 // pred_region
          %p820 = scmp.lt.s32.totalorder %s53, 1
          %s821 = scalar_select %p820, %s53, 1
          %s822 = smul.addr %s821, 6
          %s823 = smul.addr %s822, 8
          %s824 = scalar_lea.vmem %s12, %s823
        $region72: #{transformer_blocks.1} parent=19 // pred_fallthru
          _
        // Predicated region
        $region73: #{transformer_blocks.1} parent=19 // pred_check
          %p825 = pneg %p415
        $region74: #{transformer_blocks.1} parent=19 // pred_check_branch
          %827 = sbr.rel (%p825) target = $region76
        $region75: #{transformer_blocks.1} parent=19 // pred_region
          %p828 = scmp.lt.s32.totalorder %s53, 1
          %s829 = scalar_select %p828, %s53, 1
          %s830 = smul.addr %s829, 6
          %s831 = smul.addr %s830, 8
          %s832 = scalar_lea.vmem %s13, %s831
        $region76: #{transformer_blocks.1} parent=19 // pred_fallthru
          _
        // Predicated region
        $region77: #{transformer_blocks.1} parent=19 // pred_check
          %p833 = pneg %p441
        $region78: #{transformer_blocks.1} parent=19 // pred_check_branch
          %835 = sbr.rel (%p833) target = $region80
        $region79: #{transformer_blocks.1} parent=19 // pred_region
          %p836 = scmp.lt.s32.totalorder %s53, 1
          %s837 = scalar_select %p836, %s53, 1
          %s838 = smul.addr %s837, 8
          %s839 = smul.addr %s838, 8
          %s840 = scalar_lea.vmem %s14, %s839
        $region80: #{transformer_blocks.1} parent=19 // pred_fallthru
          _
        // Predicated region
        $region81: #{transformer_blocks.1} parent=19 // pred_check
          %p841 = pneg %p467
        $region82: #{transformer_blocks.1} parent=19 // pred_check_branch
          %843 = sbr.rel (%p841) target = $region84
        $region83: #{transformer_blocks.1} parent=19 // pred_region
          %s844 = sand.u32 %s45, 1
          %s845 = scalar_lea.sflag [#allocation8], %s844
          %s846 = sand.u32 %s457, 1
          %s847 = scalar_lea.vmem [#allocation7], %s846
          %s849 = ssub.s32 16, 16
          %850 = vsyncadd %s845, %s849
          %s851 = smul.addr %s53, 16
          %s852 = scalar_lea.hbm %s15, %s851
          %s854 = sshll.u32 %s847, 4
          %s855 = int_to_ptr.vmem [resolvable:$true] %s854
          %857 = dma.hbm_to_vmem [thread:$0]  %s852, 16, %s855, %s845
        $region84: #{transformer_blocks.1} parent=19 // pred_fallthru
          _
        // Predicated region
        $region85: #{transformer_blocks.1} parent=19 // pred_check
          %p858 = pneg %p493
        $region86: #{transformer_blocks.1} parent=19 // pred_check_branch
          %860 = sbr.rel (%p858) target = $region88
        $region87: #{transformer_blocks.1} parent=19 // pred_region
          %s861 = sand.u32 %s45, 1
          %s862 = scalar_lea.sflag [#allocation8], %s861
          %s863 = sand.u32 %s483, 1
          %s864 = scalar_lea.vmem [#allocation9], %s863
          %s866 = ssub.s32 16, 16
          %867 = vsyncadd %s862, %s866
          %s868 = smul.addr %s53, 16
          %s869 = scalar_lea.hbm %s16, %s868
          %s871 = sshll.u32 %s864, 4
          %s872 = int_to_ptr.vmem [resolvable:$true] %s871
          %874 = dma.hbm_to_vmem [thread:$0]  %s869, 16, %s872, %s862
        $region88: #{transformer_blocks.1} parent=19 // pred_fallthru
          _
        // Predicated region
        $region89: #{transformer_blocks.1} parent=19 // pred_check
          %p875 = pneg %p519
        $region90: #{transformer_blocks.1} parent=19 // pred_check_branch
          %877 = sbr.rel (%p875) target = $region92
        $region91: #{transformer_blocks.1} parent=19 // pred_region
          %s878 = sand.u32 %s45, 1
          %s879 = scalar_lea.sflag [#allocation11], %s878
          %s880 = sand.u32 %s509, 1
          %s881 = smul.addr %s880, 4
          %s882 = scalar_lea.vmem [#allocation10], %s881
          %s884 = ssub.s32 64, 64
          %885 = vsyncadd %s879, %s884
          %s886 = smul.addr %s53, 64
          %s887 = scalar_lea.hbm %s17, %s886
          %s889 = sshll.u32 %s882, 4
          %s890 = int_to_ptr.vmem [resolvable:$true] %s889
          %892 = dma.hbm_to_vmem [thread:$0]  %s887, 64, %s890, %s879
        $region92: #{transformer_blocks.1} parent=19 // pred_fallthru
          _
        // Predicated region
        $region93: #{transformer_blocks.1} parent=19 // pred_check
          %p893 = pneg %p545
        $region94: #{transformer_blocks.1} parent=19 // pred_check_branch
          %895 = sbr.rel (%p893) target = $region96
        $region95: #{transformer_blocks.1} parent=19 // pred_region
          %s896 = sand.u32 %s45, 1
          %s897 = scalar_lea.sflag [#allocation11], %s896
          %s898 = sand.u32 %s535, 1
          %s899 = smul.addr %s898, 4
          %s900 = scalar_lea.vmem [#allocation12], %s899
          %s902 = ssub.s32 64, 64
          %903 = vsyncadd %s897, %s902
          %s904 = smul.addr %s53, 64
          %s905 = scalar_lea.hbm %s18, %s904
          %s907 = sshll.u32 %s900, 4
          %s908 = int_to_ptr.vmem [resolvable:$true] %s907
          %910 = dma.hbm_to_vmem [thread:$0]  %s905, 64, %s908, %s897
        $region96: #{transformer_blocks.1} parent=19 // pred_fallthru
          _
        // Predicated region
        $region97: #{transformer_blocks.1} parent=19 // pred_check
          %p911 = pneg %p571
        $region98: #{transformer_blocks.1} parent=19 // pred_check_branch
          %913 = sbr.rel (%p911) target = $region100
        $region99: #{transformer_blocks.1} parent=19 // pred_region
          %s914 = sand.u32 %s45, 1
          %s915 = scalar_lea.sflag [#allocation14], %s914
          %s916 = sand.u32 %s561, 1
          %s917 = scalar_lea.vmem [#allocation13], %s916
          %s919 = ssub.s32 16, 16
          %920 = vsyncadd %s915, %s919
          %s921 = smul.addr %s53, 16
          %s922 = scalar_lea.hbm %s19, %s921
          %s924 = sshll.u32 %s917, 4
          %s925 = int_to_ptr.vmem [resolvable:$true] %s924
          %927 = dma.hbm_to_vmem [thread:$0]  %s922, 16, %s925, %s915
        $region100: #{transformer_blocks.1} parent=19 // pred_fallthru
          _
        // Predicated region
        $region101: #{transformer_blocks.1} parent=19 // pred_check
          %p928 = pneg %p597
        $region102: #{transformer_blocks.1} parent=19 // pred_check_branch
          %930 = sbr.rel (%p928) target = $region104
        $region103: #{transformer_blocks.1} parent=19 // pred_region
          %p931 = scmp.lt.s32.totalorder %s53, 1
          %s932 = scalar_select %p931, %s53, 1
          %s933 = smul.addr %s932, 12
          %s934 = smul.addr %s933, 8
          %s935 = scalar_lea.vmem %s20, %s934
        $region104: #{transformer_blocks.1} parent=19 // pred_fallthru
          _
        // Predicated region
        $region105: #{transformer_blocks.1} parent=19 // pred_check
          %p936 = pneg %p623
        $region106: #{transformer_blocks.1} parent=19 // pred_check_branch
          %938 = sbr.rel (%p936) target = $region108
        $region107: #{transformer_blocks.1} parent=19 // pred_region
          %s939 = sand.u32 %s45, 1
          %s940 = scalar_lea.sflag [#allocation14], %s939
          %s941 = sand.u32 %s613, 1
          %s942 = scalar_lea.vmem [#allocation15], %s941
          %s944 = ssub.s32 16, 16
          %945 = vsyncadd %s940, %s944
          %s946 = smul.addr %s53, 16
          %s947 = scalar_lea.hbm %s21, %s946
          %s949 = sshll.u32 %s942, 4
          %s950 = int_to_ptr.vmem [resolvable:$true] %s949
          %952 = dma.hbm_to_vmem [thread:$0]  %s947, 16, %s950, %s940
        $region108: #{transformer_blocks.1} parent=19 // pred_fallthru
          _
        // Predicated region
        $region109: #{transformer_blocks.1} parent=19 // pred_check
          %p953 = pneg %p649
        $region110: #{transformer_blocks.1} parent=19 // pred_check_branch
          %955 = sbr.rel (%p953) target = $region112
        $region111: #{transformer_blocks.1} parent=19 // pred_region
          %p956 = scmp.lt.s32.totalorder %s53, 1
          %s957 = scalar_select %p956, %s53, 1
          %s958 = smul.addr %s957, 16
          %s959 = smul.addr %s958, 8
          %s960 = scalar_lea.vmem %s22, %s959
        $region112: #{transformer_blocks.1} parent=19 // pred_fallthru
          _
      $region20: #{transformer_blocks.1} parent=5 // pred_fallthru
        _
      %p961 = scmp.le.s32.totalorder 1, %s45
      %p962 = scmp.lt.s32.totalorder %s45, 5
      %p963 = pnand %p961, %p962
      %p964 = pneg %p963
      // Predicated region
      $region113: #{transformer_blocks.1} parent=5 // pred_check
        _
      $region114: #{transformer_blocks.1} parent=5 // pred_check_branch
        %966 = sbr.rel (%p963) target = $region116
      $region115: #{transformer_blocks.1} parent=5 // pred_region
        %s967 = ssub.s32 %s45, 1
        %s968 = sand.u32 %s356, 1
        %s969 = scalar_lea.sflag [#allocation5], %s968
        %s970 = sand.u32 %s356, 1
        %s971 = scalar_lea.vmem [#allocation4], %s970
        // Predicated region
        $region117: #{transformer_blocks.1} parent=115 // pred_check
          %p972 = pneg %p369
        $region118: #{transformer_blocks.1} parent=115 // pred_check_branch
          %974 = sbr.rel (%p972) target = $region120
        $region119: #{transformer_blocks.1} parent=115 // pred_region
          %975 = dma.done %s969, 16
        $region120: #{transformer_blocks.1} parent=115 // pred_fallthru
          _
        %s976 = sand.u32 %s50, 1
        %s977 = scalar_lea.sflag [#allocation8], %s976
        %s978 = sand.u32 %s460, 1
        %s979 = scalar_lea.vmem [#allocation7], %s978
        // Predicated region
        $region121: #{transformer_blocks.1} parent=115 // pred_check
          %p980 = pneg %p473
        $region122: #{transformer_blocks.1} parent=115 // pred_check_branch
          %982 = sbr.rel (%p980) target = $region124
        $region123: #{transformer_blocks.1} parent=115 // pred_region
          %983 = dma.done %s977, 16
        $region124: #{transformer_blocks.1} parent=115 // pred_fallthru
          _
        %s984 = sand.u32 %s50, 1
        %s985 = scalar_lea.sflag [#allocation8], %s984
        %s986 = sand.u32 %s486, 1
        %s987 = scalar_lea.vmem [#allocation9], %s986
        // Predicated region
        $region125: #{transformer_blocks.1} parent=115 // pred_check
          %p988 = pneg %p499
        $region126: #{transformer_blocks.1} parent=115 // pred_check_branch
          %990 = sbr.rel (%p988) target = $region128
        $region127: #{transformer_blocks.1} parent=115 // pred_region
          %991 = dma.done %s985, 16
        $region128: #{transformer_blocks.1} parent=115 // pred_fallthru
          _
        %s992 = sand.u32 %s50, 1
        %s993 = scalar_lea.sflag [#allocation11], %s992
        %s994 = sand.u32 %s512, 1
        %s995 = smul.addr %s994, 4
        %s996 = scalar_lea.vmem [#allocation10], %s995
        // Predicated region
        $region129: #{transformer_blocks.1} parent=115 // pred_check
          %p997 = pneg %p525
        $region130: #{transformer_blocks.1} parent=115 // pred_check_branch
          %999 = sbr.rel (%p997) target = $region132
        $region131: #{transformer_blocks.1} parent=115 // pred_region
          %1000 = dma.done %s993, 64
        $region132: #{transformer_blocks.1} parent=115 // pred_fallthru
          _
        %s1001 = sand.u32 %s50, 1
        %s1002 = scalar_lea.sflag [#allocation11], %s1001
        %s1003 = sand.u32 %s538, 1
        %s1004 = smul.addr %s1003, 4
        %s1005 = scalar_lea.vmem [#allocation12], %s1004
        // Predicated region
        $region133: #{transformer_blocks.1} parent=115 // pred_check
          %p1006 = pneg %p551
        $region134: #{transformer_blocks.1} parent=115 // pred_check_branch
          %1008 = sbr.rel (%p1006) target = $region136
        $region135: #{transformer_blocks.1} parent=115 // pred_region
          %1009 = dma.done %s1002, 64
        $region136: #{transformer_blocks.1} parent=115 // pred_fallthru
          _
        %s1010 = sand.u32 %s50, 1
        %s1011 = scalar_lea.sflag [#allocation14], %s1010
        %s1012 = sand.u32 %s564, 1
        %s1013 = scalar_lea.vmem [#allocation13], %s1012
        // Predicated region
        $region137: #{transformer_blocks.1} parent=115 // pred_check
          %p1014 = pneg %p577
        $region138: #{transformer_blocks.1} parent=115 // pred_check_branch
          %1016 = sbr.rel (%p1014) target = $region140
        $region139: #{transformer_blocks.1} parent=115 // pred_region
          %1017 = dma.done %s1011, 16
        $region140: #{transformer_blocks.1} parent=115 // pred_fallthru
          _
        %s1018 = sand.u32 %s50, 1
        %s1019 = scalar_lea.sflag [#allocation14], %s1018
        %s1020 = sand.u32 %s616, 1
        %s1021 = scalar_lea.vmem [#allocation15], %s1020
        // Predicated region
        $region141: #{transformer_blocks.1} parent=115 // pred_check
          %p1022 = pneg %p629
        $region142: #{transformer_blocks.1} parent=115 // pred_check_branch
          %1024 = sbr.rel (%p1022) target = $region144
        $region143: #{transformer_blocks.1} parent=115 // pred_region
          %1025 = dma.done %s1019, 16
        $region144: #{transformer_blocks.1} parent=115 // pred_fallthru
          _
        %p1026 = scmp.lt.s32.totalorder %s54, 1
        %s1027 = scalar_select %p1026, %s54, 1
        %s1028 = smul.addr %s1027, 8
        %s1029 = scalar_lea.vmem %s0, %s1028
        %p1030 = pneg %p83
        %p1031 = pneg %p80
        %p1032 = scmp.lt.s32.totalorder %s54, 1
        %s1033 = scalar_select %p1032, %s54, 1
        %s1034 = smul.addr %s1033, 8
        %s1035 = scalar_lea.vmem %s1, %s1034
        %p1036 = pneg %p109
        %p1037 = pneg %p106
        %p1038 = scmp.lt.s32.totalorder %s54, 1
        %s1039 = scalar_select %p1038, %s54, 1
        %s1040 = scalar_lea.vmem %s2, %s1039
        %p1041 = pneg %p135
        %p1042 = pneg %p132
        %p1043 = scmp.lt.s32.totalorder %s55, 1
        %s1044 = scalar_select %p1043, %s55, 1
        %s1045 = scalar_lea.vmem %s3, %s1044
        %p1046 = pneg %p161
        %p1047 = pneg %p158
        %p1048 = scmp.lt.s32.totalorder %s55, 1
        %s1049 = scalar_select %p1048, %s55, 1
        %s1050 = smul.addr %s1049, 6
        %s1051 = smul.addr %s1050, 8
        %s1052 = scalar_lea.vmem %s4, %s1051
        %p1053 = pneg %p187
        %p1054 = pneg %p184
        %p1055 = scmp.lt.s32.totalorder %s55, 1
        %s1056 = scalar_select %p1055, %s55, 1
        %s1057 = smul.addr %s1056, 6
        %s1058 = smul.addr %s1057, 8
        %s1059 = scalar_lea.vmem %s5, %s1058
        %p1060 = pneg %p213
        %p1061 = pneg %p210
        %p1062 = scmp.lt.s32.totalorder %s55, 1
        %s1063 = scalar_select %p1062, %s55, 1
        %s1064 = smul.addr %s1063, 8
        %s1065 = smul.addr %s1064, 8
        %s1066 = scalar_lea.vmem %s6, %s1065
        %p1067 = pneg %p239
        %p1068 = pneg %p236
        %p1069 = scmp.lt.s32.totalorder %s55, 1
        %s1070 = scalar_select %p1069, %s55, 1
        %s1071 = scalar_lea.vmem %s7, %s1070
        %p1072 = pneg %p265
        %p1073 = pneg %p262
        %p1074 = scmp.lt.s32.totalorder %s55, 1
        %s1075 = scalar_select %p1074, %s55, 1
        %s1076 = scalar_lea.vmem %s8, %s1075
        %p1077 = pneg %p291
        %p1078 = pneg %p288
        %p1079 = scmp.lt.s32.totalorder %s55, 1
        %s1080 = scalar_select %p1079, %s55, 1
        %s1081 = smul.addr %s1080, 4
        %s1082 = scalar_lea.vmem %s9, %s1081
        %p1083 = pneg %p317
        %p1084 = pneg %p314
        %p1085 = scmp.lt.s32.totalorder %s55, 1
        %s1086 = scalar_select %p1085, %s55, 1
        %s1087 = smul.addr %s1086, 4
        %s1088 = scalar_lea.vmem %s10, %s1087
        %p1089 = pneg %p343
        %p1090 = pneg %p340
        %s1091 = sand.u32 %s356, 1
        %s1092 = scalar_lea.sflag [#allocation5], %s1091
        %s1093 = sand.u32 %s356, 1
        %s1094 = scalar_lea.vmem [#allocation4], %s1093
        %p1095 = pneg %p369
        %p1096 = pneg %p366
        %p1097 = scmp.lt.s32.totalorder %s55, 1
        %s1098 = scalar_select %p1097, %s55, 1
        %s1099 = smul.addr %s1098, 6
        %s1100 = smul.addr %s1099, 8
        %s1101 = scalar_lea.vmem %s12, %s1100
        %p1102 = pneg %p395
        %p1103 = pneg %p392
        %p1104 = scmp.lt.s32.totalorder %s55, 1
        %s1105 = scalar_select %p1104, %s55, 1
        %s1106 = smul.addr %s1105, 6
        %s1107 = smul.addr %s1106, 8
        %s1108 = scalar_lea.vmem %s13, %s1107
        %p1109 = pneg %p421
        %p1110 = pneg %p418
        %p1111 = scmp.lt.s32.totalorder %s55, 1
        %s1112 = scalar_select %p1111, %s55, 1
        %s1113 = smul.addr %s1112, 8
        %s1114 = smul.addr %s1113, 8
        %s1115 = scalar_lea.vmem %s14, %s1114
        %p1116 = pneg %p447
        %p1117 = pneg %p444
        %s1118 = sand.u32 %s50, 1
        %s1119 = scalar_lea.sflag [#allocation8], %s1118
        %s1120 = sand.u32 %s460, 1
        %s1121 = scalar_lea.vmem [#allocation7], %s1120
        %p1122 = pneg %p473
        %p1123 = pneg %p470
        %s1124 = sand.u32 %s50, 1
        %s1125 = scalar_lea.sflag [#allocation8], %s1124
        %s1126 = sand.u32 %s486, 1
        %s1127 = scalar_lea.vmem [#allocation9], %s1126
        %p1128 = pneg %p499
        %p1129 = pneg %p496
        %s1130 = sand.u32 %s50, 1
        %s1131 = scalar_lea.sflag [#allocation11], %s1130
        %s1132 = sand.u32 %s512, 1
        %s1133 = smul.addr %s1132, 4
        %s1134 = scalar_lea.vmem [#allocation10], %s1133
        %p1135 = pneg %p525
        %p1136 = pneg %p522
        %s1137 = sand.u32 %s50, 1
        %s1138 = scalar_lea.sflag [#allocation11], %s1137
        %s1139 = sand.u32 %s538, 1
        %s1140 = smul.addr %s1139, 4
        %s1141 = scalar_lea.vmem [#allocation12], %s1140
        %p1142 = pneg %p551
        %p1143 = pneg %p548
        %s1144 = sand.u32 %s50, 1
        %s1145 = scalar_lea.sflag [#allocation14], %s1144
        %s1146 = sand.u32 %s564, 1
        %s1147 = scalar_lea.vmem [#allocation13], %s1146
        %p1148 = pneg %p577
        %p1149 = pneg %p574
        %p1150 = scmp.lt.s32.totalorder %s55, 1
        %s1151 = scalar_select %p1150, %s55, 1
        %s1152 = smul.addr %s1151, 12
        %s1153 = smul.addr %s1152, 8
        %s1154 = scalar_lea.vmem %s20, %s1153
        %p1155 = pneg %p603
        %p1156 = pneg %p600
        %s1157 = sand.u32 %s50, 1
        %s1158 = scalar_lea.sflag [#allocation14], %s1157
        %s1159 = sand.u32 %s616, 1
        %s1160 = scalar_lea.vmem [#allocation15], %s1159
        %p1161 = pneg %p629
        %p1162 = pneg %p626
        %p1163 = scmp.lt.s32.totalorder %s55, 1
        %s1164 = scalar_select %p1163, %s55, 1
        %s1165 = smul.addr %s1164, 16
        %s1166 = smul.addr %s1165, 8
        %s1167 = scalar_lea.vmem %s22, %s1166
        %p1168 = pneg %p655
        %p1169 = pneg %p652
        %p1170 = pneg %p676
        %p1171 = pneg %p673
        %p1172 = pneg %p702
        %p1173 = pneg %p699
        %s1174 = sand.u32 %s689, 1
        %s1175 = scalar_lea.sflag [#allocation6], %s1174
        %s1176 = sand.u32 %s689, 1
        %s1177 = smul.addr %s1176, 8
        %s1178 = scalar_lea.vmem [#allocation16], %s1177
        %p1179 = scmp.lt.s32.totalorder %s54, 1
        %s1180 = scalar_select %p1179, %s54, 1
        %s1181 = smul.addr %s1180, 8
        %s1182 = scalar_lea.vmem %s0, %s1181
        %p1183 = scmp.lt.s32.totalorder %s54, 1
        %s1184 = scalar_select %p1183, %s54, 1
        %s1185 = smul.addr %s1184, 8
        %s1186 = scalar_lea.vmem %s1, %s1185
        %p1187 = scmp.lt.s32.totalorder %s54, 1
        %s1188 = scalar_select %p1187, %s54, 1
        %s1189 = scalar_lea.vmem %s2, %s1188
        %p1190 = scmp.lt.s32.totalorder %s55, 1
        %s1191 = scalar_select %p1190, %s55, 1
        %s1192 = scalar_lea.vmem %s3, %s1191
        %p1193 = scmp.lt.s32.totalorder %s55, 1
        %s1194 = scalar_select %p1193, %s55, 1
        %s1195 = smul.addr %s1194, 6
        %s1196 = smul.addr %s1195, 8
        %s1197 = scalar_lea.vmem %s4, %s1196
        %p1198 = scmp.lt.s32.totalorder %s55, 1
        %s1199 = scalar_select %p1198, %s55, 1
        %s1200 = smul.addr %s1199, 6
        %s1201 = smul.addr %s1200, 8
        %s1202 = scalar_lea.vmem %s5, %s1201
        %p1203 = scmp.lt.s32.totalorder %s55, 1
        %s1204 = scalar_select %p1203, %s55, 1
        %s1205 = smul.addr %s1204, 8
        %s1206 = smul.addr %s1205, 8
        %s1207 = scalar_lea.vmem %s6, %s1206
        %p1208 = scmp.lt.s32.totalorder %s55, 1
        %s1209 = scalar_select %p1208, %s55, 1
        %s1210 = scalar_lea.vmem %s7, %s1209
        %p1211 = scmp.lt.s32.totalorder %s55, 1
        %s1212 = scalar_select %p1211, %s55, 1
        %s1213 = scalar_lea.vmem %s8, %s1212
        %p1214 = scmp.lt.s32.totalorder %s55, 1
        %s1215 = scalar_select %p1214, %s55, 1
        %s1216 = smul.addr %s1215, 4
        %s1217 = scalar_lea.vmem %s9, %s1216
        %p1218 = scmp.lt.s32.totalorder %s55, 1
        %s1219 = scalar_select %p1218, %s55, 1
        %s1220 = smul.addr %s1219, 4
        %s1221 = scalar_lea.vmem %s10, %s1220
        %p1222 = scmp.lt.s32.totalorder %s55, 1
        %s1223 = scalar_select %p1222, %s55, 1
        %s1224 = smul.addr %s1223, 6
        %s1225 = smul.addr %s1224, 8
        %s1226 = scalar_lea.vmem %s12, %s1225
        %p1227 = scmp.lt.s32.totalorder %s55, 1
        %s1228 = scalar_select %p1227, %s55, 1
        %s1229 = smul.addr %s1228, 6
        %s1230 = smul.addr %s1229, 8
        %s1231 = scalar_lea.vmem %s13, %s1230
        %p1232 = scmp.lt.s32.totalorder %s55, 1
        %s1233 = scalar_select %p1232, %s55, 1
        %s1234 = smul.addr %s1233, 8
        %s1235 = smul.addr %s1234, 8
        %s1236 = scalar_lea.vmem %s14, %s1235
        %p1237 = scmp.lt.s32.totalorder %s55, 1
        %s1238 = scalar_select %p1237, %s55, 1
        %s1239 = smul.addr %s1238, 12
        %s1240 = smul.addr %s1239, 8
        %s1241 = scalar_lea.vmem %s20, %s1240
        %p1242 = scmp.lt.s32.totalorder %s55, 1
        %s1243 = scalar_select %p1242, %s55, 1
        %s1244 = smul.addr %s1243, 16
        %s1245 = smul.addr %s1244, 8
        %s1246 = scalar_lea.vmem %s22, %s1245
        %p1247 = scmp.eq.s32.totalorder %s55, 1
        %p1248 = scmp.eq.s32.totalorder %s55, 0
        // Predicated region
        $region145: #{transformer_blocks.1} parent=115 // pred_check
          %p1249 = pneg %p1248
        $region146: #{transformer_blocks.1} parent=115 // pred_check_branch
          %1251 = sbr.rel (%p1249) target = $region148
        $region147: #{transformer_blocks.1} parent=115 // pred_region
          %v1252 = vld [vmem:[%s1182] sm:$0xff]
          %vm1253 = vcmask 392192
          %1254 = vst.msk [vmem:[#allocation2] sm:$0xff] %vm1253, %v1252
        $region148: #{transformer_blocks.1} parent=115 // pred_fallthru
          _
        %v1255 = vld [vmem:[#allocation2] sm:$0xff]
        %v1256 = vld [vmem:[%s1186] sm:$0xff]
        %v1257 = vld [vmem:[%s1189] sm:$0x1]
        %v1258 = vld [vmem:[%s1192] sm:$0x1]
        %vm1259 = vcmask 392192
        %v1260 = vsel %vm1259, %v1255, 0.0
        %1261 = vadd.xlane.f32.xlu0 %v1260
        %v1262 = vpop.xlane.xlu0 %1261
        %v1263 = vrcp.pop 48.0
        %v1264 = vmul.f32 %v1262, %v1263
        %v1265 = vsub.f32 %v1255, %v1264
        %v1266 = vmul.f32 %v1265, %v1265
        %v1267 = vsel %vm1259, %v1266, 0.0
        %1268 = vadd.xlane.f32.xlu0 %v1267
        %v1269 = vpop.xlane.xlu0 %1268
        %v1270 = vmul.f32 %v1269, %v1263
        %v1271 = vadd.f32 %v1270, 1e-05
        %v1272 = vrsqrt.pop %v1271
        %v1273 = vmul.f32 %v1265, %v1272
        %v1275 = vlaneseq
        %v1276 = vshrl.u32 %v1275, 7
        %v1277 = vsub.s32 0, %v1276
        %v1278 = vrot.slane %v1258, %v1277
        %v1280 = vmul.f32 %v1273, %v1278
        %v1281 = vld [vmem:[%s1197] sm:$0xff]
        %v1282 = vld [vmem:[%s1197 + $0x8] sm:$0xff]
        %v1283 = vld [vmem:[%s1197 + $0x10] sm:$0xff]
        %v1284 = vld [vmem:[%s1197 + $0x18] sm:$0xff]
        %v1285 = vld [vmem:[%s1197 + $0x20] sm:$0xff]
        %v1286 = vld [vmem:[%s1197 + $0x28] sm:$0xff]
        %v1288 = vsel %vm1259, %v1280, 0
        %1290 = vmatprep.subr.mxu0 0.0
        %1291 = vmatpush1.msra.mxu0 0.0
        %1292 = vmatprep.subr.mxu0 0.0
        %1293 = vmatpush1.msra.mxu0 0.0
        %1294 = vmatprep.subr.mxu0 0.0
        %1295 = vmatpush1.msra.mxu0 0.0
        %1296 = vmatprep.subr.mxu0 0.0
        %1297 = vmatpush1.msra.mxu0 0.0
        %1298 = vmatprep.subr.mxu0 0.0
        %1299 = vmatpush1.msra.mxu0 0.0
        %1300 = vmatprep.subr.mxu0 0.0
        %1301 = vmatpush1.msra.mxu0 0.0
        %1302 = vmatprep.subr.mxu0 0.0
        %1303 = vmatpush1.msra.mxu0 0.0
        %1304 = vmatprep.subr.mxu0 0.0
        %1305 = vmatpush1.msra.mxu0 0.0
        %1306 = vmatprep.subr.mxu0 0.0
        %1307 = vmatpush1.msra.mxu0 0.0
        %1308 = vmatprep.subr.mxu0 0.0
        %1309 = vmatpush1.msra.mxu0 0.0
        %1310 = vmatprep.subr.mxu0 0.0
        %1311 = vmatpush1.msra.mxu0 %v1286
        %1312 = vmatprep.subr.mxu0 0.0
        %1313 = vmatpush1.msra.mxu0 %v1285
        %1314 = vmatprep.subr.mxu0 0.0
        %1315 = vmatpush1.msra.mxu0 %v1284
        %1316 = vmatprep.subr.mxu0 0.0
        %1317 = vmatpush1.msra.mxu0 %v1283
        %1318 = vmatprep.subr.mxu0 0.0
        %1319 = vmatpush1.msra.mxu0 %v1282
        %1320 = vmatprep.subr.mxu0 0.0
        %1321 = vmatpush1.msra.mxu0 %v1281
        %1322 = vmatprep.subr.mxu0 0.0
        %1323 = vmatpush2.msra.mxu0 0.0
        %1324 = vmatprep.subr.mxu0 0.0
        %1325 = vmatpush2.msra.mxu0 0.0
        %1326 = vmatprep.subr.mxu0 0.0
        %1327 = vmatpush2.msra.mxu0 0.0
        %1328 = vmatprep.subr.mxu0 0.0
        %1329 = vmatpush2.msra.mxu0 0.0
        %1330 = vmatprep.subr.mxu0 0.0
        %1331 = vmatpush2.msra.mxu0 0.0
        %1332 = vmatprep.subr.mxu0 0.0
        %1333 = vmatpush2.msra.mxu0 0.0
        %1334 = vmatprep.subr.mxu0 0.0
        %1335 = vmatpush2.msra.mxu0 0.0
        %1336 = vmatprep.subr.mxu0 0.0
        %1337 = vmatpush2.msra.mxu0 0.0
        %1338 = vmatprep.subr.mxu0 0.0
        %1339 = vmatpush2.msra.mxu0 0.0
        %1340 = vmatprep.subr.mxu0 0.0
        %1341 = vmatpush2.msra.mxu0 0.0
        %1342 = vmatprep.subr.mxu0 0.0
        %1343 = vmatpush2.msra.mxu0 0.0
        %1344 = vmatprep.subr.mxu0 0.0
        %1345 = vmatpush2.msra.mxu0 0.0
        %1346 = vmatprep.subr.mxu0 0.0
        %1347 = vmatpush2.msra.mxu0 0.0
        %1348 = vmatprep.subr.mxu0 0.0
        %1349 = vmatpush2.msra.mxu0 0.0
        %1350 = vmatprep.subr.mxu0 0.0
        %1351 = vmatpush2.msra.mxu0 0.0
        %1352 = vmatprep.subr.mxu0 0.0
        %1353 = vmatpush2.msra.mxu0 0.0
        %1354 = vmatprep.mubr.f32.mxu0 0.0
        %1355 = vmatmul.mubr.f32.gmra.mxu0 %v1288
        %v1356 = vpop.f32.mrf.mxu0
        %v1357 = vadd.f32 0.0, %v1356
        %v1358 = vpop.f32.mrf.mxu0
        %1359 = vdwg.mxu0
        %v1360 = vld [vmem:[%s1202] sm:$0xff]
        %v1361 = vld [vmem:[%s1202 + $0x8] sm:$0xff]
        %v1362 = vld [vmem:[%s1202 + $0x10] sm:$0xff]
        %v1363 = vld [vmem:[%s1202 + $0x18] sm:$0xff]
        %v1364 = vld [vmem:[%s1202 + $0x20] sm:$0xff]
        %v1365 = vld [vmem:[%s1202 + $0x28] sm:$0xff]
        %1366 = vmatprep.subr.mxu0 0.0
        %1367 = vmatpush1.msra.mxu0 0.0
        %1368 = vmatprep.subr.mxu0 0.0
        %1369 = vmatpush1.msra.mxu0 0.0
        %1370 = vmatprep.subr.mxu0 0.0
        %1371 = vmatpush1.msra.mxu0 0.0
        %1372 = vmatprep.subr.mxu0 0.0
        %1373 = vmatpush1.msra.mxu0 0.0
        %1374 = vmatprep.subr.mxu0 0.0
        %1375 = vmatpush1.msra.mxu0 0.0
        %1376 = vmatprep.subr.mxu0 0.0
        %1377 = vmatpush1.msra.mxu0 0.0
        %1378 = vmatprep.subr.mxu0 0.0
        %1379 = vmatpush1.msra.mxu0 0.0
        %1380 = vmatprep.subr.mxu0 0.0
        %1381 = vmatpush1.msra.mxu0 0.0
        %1382 = vmatprep.subr.mxu0 0.0
        %1383 = vmatpush1.msra.mxu0 0.0
        %1384 = vmatprep.subr.mxu0 0.0
        %1385 = vmatpush1.msra.mxu0 0.0
        %1386 = vmatprep.subr.mxu0 0.0
        %1387 = vmatpush1.msra.mxu0 %v1365
        %1388 = vmatprep.subr.mxu0 0.0
        %1389 = vmatpush1.msra.mxu0 %v1364
        %1390 = vmatprep.subr.mxu0 0.0
        %1391 = vmatpush1.msra.mxu0 %v1363
        %1392 = vmatprep.subr.mxu0 0.0
        %1393 = vmatpush1.msra.mxu0 %v1362
        %1394 = vmatprep.subr.mxu0 0.0
        %1395 = vmatpush1.msra.mxu0 %v1361
        %1396 = vmatprep.subr.mxu0 0.0
        %1397 = vmatpush1.msra.mxu0 %v1360
        %1398 = vmatprep.subr.mxu0 0.0
        %1399 = vmatpush2.msra.mxu0 0.0
        %1400 = vmatprep.subr.mxu0 0.0
        %1401 = vmatpush2.msra.mxu0 0.0
        %1402 = vmatprep.subr.mxu0 0.0
        %1403 = vmatpush2.msra.mxu0 0.0
        %1404 = vmatprep.subr.mxu0 0.0
        %1405 = vmatpush2.msra.mxu0 0.0
        %1406 = vmatprep.subr.mxu0 0.0
        %1407 = vmatpush2.msra.mxu0 0.0
        %1408 = vmatprep.subr.mxu0 0.0
        %1409 = vmatpush2.msra.mxu0 0.0
        %1410 = vmatprep.subr.mxu0 0.0
        %1411 = vmatpush2.msra.mxu0 0.0
        %1412 = vmatprep.subr.mxu0 0.0
        %1413 = vmatpush2.msra.mxu0 0.0
        %1414 = vmatprep.subr.mxu0 0.0
        %1415 = vmatpush2.msra.mxu0 0.0
        %1416 = vmatprep.subr.mxu0 0.0
        %1417 = vmatpush2.msra.mxu0 0.0
        %1418 = vmatprep.subr.mxu0 0.0
        %1419 = vmatpush2.msra.mxu0 0.0
        %1420 = vmatprep.subr.mxu0 0.0
        %1421 = vmatpush2.msra.mxu0 0.0
        %1422 = vmatprep.subr.mxu0 0.0
        %1423 = vmatpush2.msra.mxu0 0.0
        %1424 = vmatprep.subr.mxu0 0.0
        %1425 = vmatpush2.msra.mxu0 0.0
        %1426 = vmatprep.subr.mxu0 0.0
        %1427 = vmatpush2.msra.mxu0 0.0
        %1428 = vmatprep.subr.mxu0 0.0
        %1429 = vmatpush2.msra.mxu0 0.0
        %1430 = vmatprep.mubr.f32.mxu0 0.0
        %1431 = vmatmul.mubr.f32.gmra.mxu0 %v1288
        %v1432 = vpop.f32.mrf.mxu0
        %v1433 = vadd.f32 0.0, %v1432
        %v1434 = vpop.f32.mrf.mxu0
        %1435 = vdwg.mxu0
        %v1436 = vld [vmem:[%s1210] sm:$0x1]
        %v1437 = vld [vmem:[%s1213] sm:$0x1]
        %v1438 = vld [vmem:[%s1217] sm:$0xf]
        %v1439 = vld [vmem:[%s1221] sm:$0xf]
        %v1440 = vmul.f32 %v1357, %v1357
        %vm1441 = vcmask 130048
        %v1442 = vsel %vm1441, %v1440, 0.0
        %1443 = vadd.xlane.f32.xlu0 %v1442
        %v1444 = vpop.xlane.xlu0 %1443
        %v1445 = vmax.f32 %v1444, 1e-24
        %v1446 = vrsqrt.pop %v1445
        %v1447 = vmul.f32 %v1357, %v1446
        %v1449 = vlaneseq
        %v1450 = vshrl.u32 %v1449, 7
        %v1451 = vsub.s32 0, %v1450
        %v1452 = vrot.slane %v1436, %v1451
        %v1454 = vmul.f32 %v1447, %v1452
        %v1455 = vmul.f32 %v1433, %v1433
        %v1456 = vsel %vm1441, %v1455, 0.0
        %1457 = vadd.xlane.f32.xlu0 %v1456
        %v1458 = vpop.xlane.xlu0 %1457
        %v1459 = vmax.f32 %v1458, 1e-24
        %v1460 = vrsqrt.pop %v1459
        %v1461 = vmul.f32 %v1433, %v1460
        %v1463 = vlaneseq
        %v1464 = vshrl.u32 %v1463, 7
        %v1465 = vsub.s32 0, %v1464
        %v1466 = vrot.slane %v1437, %v1465
        %v1468 = vmul.f32 %v1461, %v1466
        %v1469 = vmul.f32 %v1438, %v1438
        %vm1470 = vcmask 122880
        %v1471 = vsel %vm1470, %v1469, 0.0
        %1472 = vadd.xlane.f32.xlu0 %v1471
        %v1473 = vpop.xlane.xlu0 %1472
        %v1474 = vmax.f32 %v1473, 1e-24
        %v1475 = vrsqrt.pop %v1474
        %v1476 = vmul.f32 %v1438, %v1475
        %v1477 = vmul.f32 %v1476, %v1437
        %v1479 = vsel %vm1441, %v1454, 0
        %v1482 = vsel %vm1441, %v1468, 0
        %1484 = vmatprep.subr.mxu0 0.0
        %1485 = vmatpush1.xpose.msra.mxu0 0.0
        %1486 = vmatprep.subr.mxu0 0.0
        %1487 = vmatpush1.xpose.msra.mxu0 0.0
        %1488 = vmatprep.subr.mxu0 0.0
        %1489 = vmatpush1.xpose.msra.mxu0 0.0
        %1490 = vmatprep.subr.mxu0 0.0
        %1491 = vmatpush1.xpose.msra.mxu0 0.0
        %1492 = vmatprep.subr.mxu0 0.0
        %1493 = vmatpush1.xpose.msra.mxu0 0.0
        %1494 = vmatprep.subr.mxu0 0.0
        %1495 = vmatpush1.xpose.msra.mxu0 0.0
        %1496 = vmatprep.subr.mxu0 0.0
        %1497 = vmatpush1.xpose.msra.mxu0 0.0
        %1498 = vmatprep.subr.mxu0 0.0
        %1499 = vmatpush1.xpose.msra.mxu0 0.0
        %1500 = vmatprep.subr.mxu0 0.0
        %1501 = vmatpush1.xpose.msra.mxu0 0.0
        %1502 = vmatprep.subr.mxu0 0.0
        %1503 = vmatpush1.xpose.msra.mxu0 0.0
        %1504 = vmatprep.subr.mxu0 0.0
        %1505 = vmatpush1.xpose.msra.mxu0 0.0
        %1506 = vmatprep.subr.mxu0 0.0
        %1507 = vmatpush1.xpose.msra.mxu0 0.0
        %1508 = vmatprep.subr.mxu0 0.0
        %1509 = vmatpush1.xpose.msra.mxu0 0.0
        %1510 = vmatprep.subr.mxu0 0.0
        %1511 = vmatpush1.xpose.msra.mxu0 0.0
        %1512 = vmatprep.subr.mxu0 0.0
        %1513 = vmatpush1.xpose.msra.mxu0 0.0
        %1514 = vmatprep.subr.mxu0 0.0
        %1515 = vmatpush1.xpose.msra.mxu0 %v1482
        %1516 = vmatprep.subr.mxu0 0.0
        %1517 = vmatpush2.xpose.msra.mxu0 0.0
        %1518 = vmatprep.subr.mxu0 0.0
        %1519 = vmatpush2.xpose.msra.mxu0 0.0
        %1520 = vmatprep.subr.mxu0 0.0
        %1521 = vmatpush2.xpose.msra.mxu0 0.0
        %1522 = vmatprep.subr.mxu0 0.0
        %1523 = vmatpush2.xpose.msra.mxu0 0.0
        %1524 = vmatprep.subr.mxu0 0.0
        %1525 = vmatpush2.xpose.msra.mxu0 0.0
        %1526 = vmatprep.subr.mxu0 0.0
        %1527 = vmatpush2.xpose.msra.mxu0 0.0
        %1528 = vmatprep.subr.mxu0 0.0
        %1529 = vmatpush2.xpose.msra.mxu0 0.0
        %1530 = vmatprep.subr.mxu0 0.0
        %1531 = vmatpush2.xpose.msra.mxu0 0.0
        %1532 = vmatprep.subr.mxu0 0.0
        %1533 = vmatpush2.xpose.msra.mxu0 0.0
        %1534 = vmatprep.subr.mxu0 0.0
        %1535 = vmatpush2.xpose.msra.mxu0 0.0
        %1536 = vmatprep.subr.mxu0 0.0
        %1537 = vmatpush2.xpose.msra.mxu0 0.0
        %1538 = vmatprep.subr.mxu0 0.0
        %1539 = vmatpush2.xpose.msra.mxu0 0.0
        %1540 = vmatprep.subr.mxu0 0.0
        %1541 = vmatpush2.xpose.msra.mxu0 0.0
        %1542 = vmatprep.subr.mxu0 0.0
        %1543 = vmatpush2.xpose.msra.mxu0 0.0
        %1544 = vmatprep.subr.mxu0 0.0
        %1545 = vmatpush2.xpose.msra.mxu0 0.0
        %1546 = vmatprep.subr.mxu0 0.0
        %1547 = vmatpush2.xpose.msra.mxu0 0.0
        %1548 = vmatprep.mubr.f32.mxu0 0.0
        %1549 = vmatmul.mubr.f32.gmra.mxu0 %v1479
        %v1550 = vpop.f32.mrf.mxu0
        %v1551 = vadd.f32 0.0, %v1550
        %v1552 = vpop.f32.mrf.mxu0
        %1553 = vdwg.mxu0
        %v1554 = vlaneseq
        %v1555 = vshrl.u32 %v1554, 7
        %v1556 = vsub.s32 0, %v1555
        %v1557 = vrot.slane %v1477, %v1556
        %v1558 = vmul.f32 %v1454, %v1557
        %v1559 = vsel %vm1441, %v1558, 0.0
        %1560 = vadd.xlane.f32.xlu0 %v1559
        %v1561 = vpop.xlane.xlu0 %1560
        %vm1562 = vcmask 64512
        %v1563 = vsel %vm1562, %v1551, -inf
        %1564 = vmax.xlane.f32.xlu0 %v1563
        %v1565 = vpop.xlane.xlu0 %1564
        %v1566 = vmax.f32 %v1565, %v1561
        %v1567 = vsub.f32 %v1551, %v1566
        %v1568 = vmul.f32 %v1567, 1.442695
        %v1569 = vpow.pop %v1568
        %v1570 = vsub.f32 %v1561, %v1566
        %v1571 = vmul.f32 %v1570, 1.442695
        %v1572 = vpow.pop %v1571
        %v1573 = vsel %vm1562, %v1569, 0.0
        %1574 = vadd.xlane.f32.xlu0 %v1573
        %v1575 = vpop.xlane.xlu0 %1574
        %v1576 = vadd.f32 %v1575, %v1572
        %v1577 = vrcp.pop %v1576
        %v1578 = vlaneseq
        %v1579 = vshrl.u32 %v1578, 7
        %v1580 = vsub.s32 0, %v1579
        %v1581 = vrot.slane %v1439, %v1580
        %v1582 = vmul.f32 %v1572, %v1581
        %1584 = vrot.lane.b32.xlu0 %v1433, 64
        %v1585 = vpop.permute.xlu0 %1584
        %v1588 = vsel %vm1562, %v1569, 0
        %1590 = vmatprep.subr.mxu0 0.0
        %1591 = vmatpush1.msra.mxu0 0.0
        %1592 = vmatprep.subr.mxu0 0.0
        %1593 = vmatpush1.msra.mxu0 0.0
        %1594 = vmatprep.subr.mxu0 0.0
        %1595 = vmatpush1.msra.mxu0 0.0
        %1596 = vmatprep.subr.mxu0 0.0
        %1597 = vmatpush1.msra.mxu0 0.0
        %1598 = vmatprep.subr.mxu0 0.0
        %1599 = vmatpush1.msra.mxu0 0.0
        %1600 = vmatprep.subr.mxu0 0.0
        %1601 = vmatpush1.msra.mxu0 0.0
        %1602 = vmatprep.subr.mxu0 0.0
        %1603 = vmatpush1.msra.mxu0 0.0
        %1604 = vmatprep.subr.mxu0 0.0
        %1605 = vmatpush1.msra.mxu0 0.0
        %1606 = vmatprep.subr.mxu0 0.0
        %1607 = vmatpush1.msra.mxu0 0.0
        %1608 = vmatprep.subr.mxu0 0.0
        %1609 = vmatpush1.msra.mxu0 0.0
        %1610 = vmatprep.subr.mxu0 0.0
        %1611 = vmatpush1.msra.mxu0 0.0
        %1612 = vmatprep.subr.mxu0 0.0
        %1613 = vmatpush1.msra.mxu0 0.0
        %1614 = vmatprep.subr.mxu0 0.0
        %1615 = vmatpush1.msra.mxu0 0.0
        %1616 = vmatprep.subr.mxu0 0.0
        %1617 = vmatpush1.msra.mxu0 0.0
        %1618 = vmatprep.subr.mxu0 0.0
        %1619 = vmatpush1.msra.mxu0 0.0
        %1620 = vmatprep.subr.mxu0 0.0
        %1621 = vmatpush1.msra.mxu0 %v1585
        %1622 = vmatprep.subr.mxu0 0.0
        %1623 = vmatpush2.msra.mxu0 0.0
        %1624 = vmatprep.subr.mxu0 0.0
        %1625 = vmatpush2.msra.mxu0 0.0
        %1626 = vmatprep.subr.mxu0 0.0
        %1627 = vmatpush2.msra.mxu0 0.0
        %1628 = vmatprep.subr.mxu0 0.0
        %1629 = vmatpush2.msra.mxu0 0.0
        %1630 = vmatprep.subr.mxu0 0.0
        %1631 = vmatpush2.msra.mxu0 0.0
        %1632 = vmatprep.subr.mxu0 0.0
        %1633 = vmatpush2.msra.mxu0 0.0
        %1634 = vmatprep.subr.mxu0 0.0
        %1635 = vmatpush2.msra.mxu0 0.0
        %1636 = vmatprep.subr.mxu0 0.0
        %1637 = vmatpush2.msra.mxu0 0.0
        %1638 = vmatprep.subr.mxu0 0.0
        %1639 = vmatpush2.msra.mxu0 0.0
        %1640 = vmatprep.subr.mxu0 0.0
        %1641 = vmatpush2.msra.mxu0 0.0
        %1642 = vmatprep.subr.mxu0 0.0
        %1643 = vmatpush2.msra.mxu0 0.0
        %1644 = vmatprep.subr.mxu0 0.0
        %1645 = vmatpush2.msra.mxu0 0.0
        %1646 = vmatprep.subr.mxu0 0.0
        %1647 = vmatpush2.msra.mxu0 0.0
        %1648 = vmatprep.subr.mxu0 0.0
        %1649 = vmatpush2.msra.mxu0 0.0
        %1650 = vmatprep.subr.mxu0 0.0
        %1651 = vmatpush2.msra.mxu0 0.0
        %1652 = vmatprep.subr.mxu0 0.0
        %1653 = vmatpush2.msra.mxu0 0.0
        %1654 = vmatprep.mubr.f32.mxu0 0.0
        %1655 = vmatmul.mubr.f32.gmra.mxu0 %v1588
        %v1656 = vpop.f32.mrf.mxu0
        %v1657 = vadd.f32 %v1582, %v1656
        %v1658 = vpop.f32.mrf.mxu0
        %1659 = vdwg.mxu0
        %v1660 = vmul.f32 %v1657, %v1577
        %1661 = vst.msk [vmem:[#allocation3] sm:$0xff] %vm1441, %v1660
        %1663 = vrot.lane.b32.xlu0 %v1440, 112
        %v1664 = vpop.permute.xlu0 %1663
        %v1666 = vsel %vm1441, %v1664, 0.0
        %1667 = vadd.xlane.f32.xlu0 %v1666
        %v1668 = vpop.xlane.xlu0 %1667
        %v1669 = vmax.f32 %v1668, 1e-24
        %v1670 = vrsqrt.pop %v1669
        %v1671 = vmul.f32 %v1357, %v1670
        %1672 = vrot.lane.b32.xlu0 %v1452, 16
        %v1673 = vpop.permute.xlu0 %1672
        %v1675 = vmul.f32 %v1671, %v1673
        %1677 = vrot.lane.b32.xlu0 %v1455, 112
        %v1678 = vpop.permute.xlu0 %1677
        %v1680 = vsel %vm1441, %v1678, 0.0
        %1681 = vadd.xlane.f32.xlu0 %v1680
        %v1682 = vpop.xlane.xlu0 %1681
        %v1683 = vmax.f32 %v1682, 1e-24
        %v1684 = vrsqrt.pop %v1683
        %v1685 = vmul.f32 %v1433, %v1684
        %1686 = vrot.lane.b32.xlu0 %v1466, 16
        %v1687 = vpop.permute.xlu0 %1686
        %v1689 = vmul.f32 %v1685, %v1687
        %vm1690 = vcmask 123905
        %v1691 = vsel %vm1690, %v1469, 0.0
        %1692 = vadd.xlane.f32.xlu0 %v1691
        %v1693 = vpop.xlane.xlu0 %1692
        %v1694 = vmax.f32 %v1693, 1e-24
        %v1695 = vrsqrt.pop %v1694
        %v1696 = vmul.f32 %v1438, %v1695
        %v1697 = vmul.f32 %v1696, %v1466
        %1699 = vrot.lane.b32.xlu0 %v1675, 112
        %v1700 = vpop.permute.xlu0 %1699
        %1702 = vrot.lane.b32.xlu0 %v1689, 112
        %v1703 = vpop.permute.xlu0 %1702
        %v1704 = vsel %vm1441, %v1700, 0
        %v1706 = vsel %vm1441, %v1703, 0
        %1708 = vmatprep.subr.mxu0 0.0
        %1709 = vmatpush1.xpose.msra.mxu0 0.0
        %1710 = vmatprep.subr.mxu0 0.0
        %1711 = vmatpush1.xpose.msra.mxu0 0.0
        %1712 = vmatprep.subr.mxu0 0.0
        %1713 = vmatpush1.xpose.msra.mxu0 0.0
        %1714 = vmatprep.subr.mxu0 0.0
        %1715 = vmatpush1.xpose.msra.mxu0 0.0
        %1716 = vmatprep.subr.mxu0 0.0
        %1717 = vmatpush1.xpose.msra.mxu0 0.0
        %1718 = vmatprep.subr.mxu0 0.0
        %1719 = vmatpush1.xpose.msra.mxu0 0.0
        %1720 = vmatprep.subr.mxu0 0.0
        %1721 = vmatpush1.xpose.msra.mxu0 0.0
        %1722 = vmatprep.subr.mxu0 0.0
        %1723 = vmatpush1.xpose.msra.mxu0 0.0
        %1724 = vmatprep.subr.mxu0 0.0
        %1725 = vmatpush1.xpose.msra.mxu0 0.0
        %1726 = vmatprep.subr.mxu0 0.0
        %1727 = vmatpush1.xpose.msra.mxu0 0.0
        %1728 = vmatprep.subr.mxu0 0.0
        %1729 = vmatpush1.xpose.msra.mxu0 0.0
        %1730 = vmatprep.subr.mxu0 0.0
        %1731 = vmatpush1.xpose.msra.mxu0 0.0
        %1732 = vmatprep.subr.mxu0 0.0
        %1733 = vmatpush1.xpose.msra.mxu0 0.0
        %1734 = vmatprep.subr.mxu0 0.0
        %1735 = vmatpush1.xpose.msra.mxu0 0.0
        %1736 = vmatprep.subr.mxu0 0.0
        %1737 = vmatpush1.xpose.msra.mxu0 0.0
        %1738 = vmatprep.subr.mxu0 0.0
        %1739 = vmatpush1.xpose.msra.mxu0 %v1706
        %1740 = vmatprep.subr.mxu0 0.0
        %1741 = vmatpush2.xpose.msra.mxu0 0.0
        %1742 = vmatprep.subr.mxu0 0.0
        %1743 = vmatpush2.xpose.msra.mxu0 0.0
        %1744 = vmatprep.subr.mxu0 0.0
        %1745 = vmatpush2.xpose.msra.mxu0 0.0
        %1746 = vmatprep.subr.mxu0 0.0
        %1747 = vmatpush2.xpose.msra.mxu0 0.0
        %1748 = vmatprep.subr.mxu0 0.0
        %1749 = vmatpush2.xpose.msra.mxu0 0.0
        %1750 = vmatprep.subr.mxu0 0.0
        %1751 = vmatpush2.xpose.msra.mxu0 0.0
        %1752 = vmatprep.subr.mxu0 0.0
        %1753 = vmatpush2.xpose.msra.mxu0 0.0
        %1754 = vmatprep.subr.mxu0 0.0
        %1755 = vmatpush2.xpose.msra.mxu0 0.0
        %1756 = vmatprep.subr.mxu0 0.0
        %1757 = vmatpush2.xpose.msra.mxu0 0.0
        %1758 = vmatprep.subr.mxu0 0.0
        %1759 = vmatpush2.xpose.msra.mxu0 0.0
        %1760 = vmatprep.subr.mxu0 0.0
        %1761 = vmatpush2.xpose.msra.mxu0 0.0
        %1762 = vmatprep.subr.mxu0 0.0
        %1763 = vmatpush2.xpose.msra.mxu0 0.0
        %1764 = vmatprep.subr.mxu0 0.0
        %1765 = vmatpush2.xpose.msra.mxu0 0.0
        %1766 = vmatprep.subr.mxu0 0.0
        %1767 = vmatpush2.xpose.msra.mxu0 0.0
        %1768 = vmatprep.subr.mxu0 0.0
        %1769 = vmatpush2.xpose.msra.mxu0 0.0
        %1770 = vmatprep.subr.mxu0 0.0
        %1771 = vmatpush2.xpose.msra.mxu0 0.0
        %1772 = vmatprep.mubr.f32.mxu0 0.0
        %1773 = vmatmul.mubr.f32.gmra.mxu0 %v1704
        %v1774 = vpop.f32.mrf.mxu0
        %v1775 = vadd.f32 0.0, %v1774
        %v1776 = vpop.f32.mrf.mxu0
        %1777 = vdwg.mxu0
        %v1778 = vlaneseq
        %v1779 = vshrl.u32 %v1778, 7
        %v1780 = vsub.s32 1, %v1779
        %v1781 = vrot.slane %v1697, %v1780
        %1783 = vrot.lane.b32.xlu0 %v1781, 16
        %v1784 = vpop.permute.xlu0 %1783
        %v1786 = vmul.f32 %v1675, %v1784
        %1788 = vrot.lane.b32.xlu0 %v1786, 112
        %v1789 = vpop.permute.xlu0 %1788
        %v1791 = vsel %vm1441, %v1789, 0.0
        %1792 = vadd.xlane.f32.xlu0 %v1791
        %v1793 = vpop.xlane.xlu0 %1792
        %v1794 = vsel %vm1562, %v1775, -inf
        %1795 = vmax.xlane.f32.xlu0 %v1794
        %v1796 = vpop.xlane.xlu0 %1795
        %v1797 = vmax.f32 %v1796, %v1793
        %v1798 = vsub.f32 %v1775, %v1797
        %v1799 = vmul.f32 %v1798, 1.442695
        %v1800 = vpow.pop %v1799
        %v1801 = vsub.f32 %v1793, %v1797
        %v1802 = vmul.f32 %v1801, 1.442695
        %v1803 = vpow.pop %v1802
        %v1804 = vsel %vm1562, %v1800, 0.0
        %1805 = vadd.xlane.f32.xlu0 %v1804
        %v1806 = vpop.xlane.xlu0 %1805
        %v1807 = vadd.f32 %v1806, %v1803
        %v1808 = vrcp.pop %v1807
        %v1809 = vlaneseq
        %v1810 = vshrl.u32 %v1809, 7
        %v1811 = vsub.s32 1, %v1810
        %v1812 = vrot.slane %v1439, %v1811
        %v1813 = vmul.f32 %v1803, %v1812
        %1814 = vrot.lane.b32.xlu0 %v1433, 48
        %v1815 = vpop.permute.xlu0 %1814
        %v1818 = vsel %vm1562, %v1800, 0
        %1820 = vmatprep.subr.mxu0 0.0
        %1821 = vmatpush1.msra.mxu0 0.0
        %1822 = vmatprep.subr.mxu0 0.0
        %1823 = vmatpush1.msra.mxu0 0.0
        %1824 = vmatprep.subr.mxu0 0.0
        %1825 = vmatpush1.msra.mxu0 0.0
        %1826 = vmatprep.subr.mxu0 0.0
        %1827 = vmatpush1.msra.mxu0 0.0
        %1828 = vmatprep.subr.mxu0 0.0
        %1829 = vmatpush1.msra.mxu0 0.0
        %1830 = vmatprep.subr.mxu0 0.0
        %1831 = vmatpush1.msra.mxu0 0.0
        %1832 = vmatprep.subr.mxu0 0.0
        %1833 = vmatpush1.msra.mxu0 0.0
        %1834 = vmatprep.subr.mxu0 0.0
        %1835 = vmatpush1.msra.mxu0 0.0
        %1836 = vmatprep.subr.mxu0 0.0
        %1837 = vmatpush1.msra.mxu0 0.0
        %1838 = vmatprep.subr.mxu0 0.0
        %1839 = vmatpush1.msra.mxu0 0.0
        %1840 = vmatprep.subr.mxu0 0.0
        %1841 = vmatpush1.msra.mxu0 0.0
        %1842 = vmatprep.subr.mxu0 0.0
        %1843 = vmatpush1.msra.mxu0 0.0
        %1844 = vmatprep.subr.mxu0 0.0
        %1845 = vmatpush1.msra.mxu0 0.0
        %1846 = vmatprep.subr.mxu0 0.0
        %1847 = vmatpush1.msra.mxu0 0.0
        %1848 = vmatprep.subr.mxu0 0.0
        %1849 = vmatpush1.msra.mxu0 0.0
        %1850 = vmatprep.subr.mxu0 0.0
        %1851 = vmatpush1.msra.mxu0 %v1815
        %1852 = vmatprep.subr.mxu0 0.0
        %1853 = vmatpush2.msra.mxu0 0.0
        %1854 = vmatprep.subr.mxu0 0.0
        %1855 = vmatpush2.msra.mxu0 0.0
        %1856 = vmatprep.subr.mxu0 0.0
        %1857 = vmatpush2.msra.mxu0 0.0
        %1858 = vmatprep.subr.mxu0 0.0
        %1859 = vmatpush2.msra.mxu0 0.0
        %1860 = vmatprep.subr.mxu0 0.0
        %1861 = vmatpush2.msra.mxu0 0.0
        %1862 = vmatprep.subr.mxu0 0.0
        %1863 = vmatpush2.msra.mxu0 0.0
        %1864 = vmatprep.subr.mxu0 0.0
        %1865 = vmatpush2.msra.mxu0 0.0
        %1866 = vmatprep.subr.mxu0 0.0
        %1867 = vmatpush2.msra.mxu0 0.0
        %1868 = vmatprep.subr.mxu0 0.0
        %1869 = vmatpush2.msra.mxu0 0.0
        %1870 = vmatprep.subr.mxu0 0.0
        %1871 = vmatpush2.msra.mxu0 0.0
        %1872 = vmatprep.subr.mxu0 0.0
        %1873 = vmatpush2.msra.mxu0 0.0
        %1874 = vmatprep.subr.mxu0 0.0
        %1875 = vmatpush2.msra.mxu0 0.0
        %1876 = vmatprep.subr.mxu0 0.0
        %1877 = vmatpush2.msra.mxu0 0.0
        %1878 = vmatprep.subr.mxu0 0.0
        %1879 = vmatpush2.msra.mxu0 0.0
        %1880 = vmatprep.subr.mxu0 0.0
        %1881 = vmatpush2.msra.mxu0 0.0
        %1882 = vmatprep.subr.mxu0 0.0
        %1883 = vmatpush2.msra.mxu0 0.0
        %1884 = vmatprep.mubr.f32.mxu0 0.0
        %1885 = vmatmul.mubr.f32.gmra.mxu0 %v1818
        %v1886 = vpop.f32.mrf.mxu0
        %v1887 = vadd.f32 %v1813, %v1886
        %v1888 = vpop.f32.mrf.mxu0
        %1889 = vdwg.mxu0
        %v1890 = vmul.f32 %v1887, %v1808
        %1892 = vrot.lane.b32.xlu0 %v1890, 16
        %v1893 = vpop.permute.xlu0 %1892
        %vm1895 = vcmask 261248
        %1896 = vst.msk [vmem:[#allocation3] sm:$0xff] %vm1895, %v1893
        %1897 = vrot.lane.b32.xlu0 %v1440, 96
        %v1898 = vpop.permute.xlu0 %1897
        %v1900 = vsel %vm1441, %v1898, 0.0
        %1901 = vadd.xlane.f32.xlu0 %v1900
        %v1902 = vpop.xlane.xlu0 %1901
        %v1903 = vmax.f32 %v1902, 1e-24
        %v1904 = vrsqrt.pop %v1903
        %v1905 = vmul.f32 %v1357, %v1904
        %1906 = vrot.lane.b32.xlu0 %v1452, 32
        %v1907 = vpop.permute.xlu0 %1906
        %v1909 = vmul.f32 %v1905, %v1907
        %1910 = vrot.lane.b32.xlu0 %v1455, 96
        %v1911 = vpop.permute.xlu0 %1910
        %v1913 = vsel %vm1441, %v1911, 0.0
        %1914 = vadd.xlane.f32.xlu0 %v1913
        %v1915 = vpop.xlane.xlu0 %1914
        %v1916 = vmax.f32 %v1915, 1e-24
        %v1917 = vrsqrt.pop %v1916
        %v1918 = vmul.f32 %v1433, %v1917
        %1919 = vrot.lane.b32.xlu0 %v1466, 32
        %v1920 = vpop.permute.xlu0 %1919
        %v1922 = vmul.f32 %v1918, %v1920
        %vm1923 = vcmask 124930
        %v1924 = vsel %vm1923, %v1469, 0.0
        %1925 = vadd.xlane.f32.xlu0 %v1924
        %v1926 = vpop.xlane.xlu0 %1925
        %v1927 = vmax.f32 %v1926, 1e-24
        %v1928 = vrsqrt.pop %v1927
        %v1929 = vmul.f32 %v1438, %v1928
        %v1930 = vmul.f32 %v1929, %v1466
        %1932 = vrot.lane.b32.xlu0 %v1909, 96
        %v1933 = vpop.permute.xlu0 %1932
        %1935 = vrot.lane.b32.xlu0 %v1922, 96
        %v1936 = vpop.permute.xlu0 %1935
        %v1937 = vsel %vm1441, %v1933, 0
        %v1939 = vsel %vm1441, %v1936, 0
        %1941 = vmatprep.subr.mxu0 0.0
        %1942 = vmatpush1.xpose.msra.mxu0 0.0
        %1943 = vmatprep.subr.mxu0 0.0
        %1944 = vmatpush1.xpose.msra.mxu0 0.0
        %1945 = vmatprep.subr.mxu0 0.0
        %1946 = vmatpush1.xpose.msra.mxu0 0.0
        %1947 = vmatprep.subr.mxu0 0.0
        %1948 = vmatpush1.xpose.msra.mxu0 0.0
        %1949 = vmatprep.subr.mxu0 0.0
        %1950 = vmatpush1.xpose.msra.mxu0 0.0
        %1951 = vmatprep.subr.mxu0 0.0
        %1952 = vmatpush1.xpose.msra.mxu0 0.0
        %1953 = vmatprep.subr.mxu0 0.0
        %1954 = vmatpush1.xpose.msra.mxu0 0.0
        %1955 = vmatprep.subr.mxu0 0.0
        %1956 = vmatpush1.xpose.msra.mxu0 0.0
        %1957 = vmatprep.subr.mxu0 0.0
        %1958 = vmatpush1.xpose.msra.mxu0 0.0
        %1959 = vmatprep.subr.mxu0 0.0
        %1960 = vmatpush1.xpose.msra.mxu0 0.0
        %1961 = vmatprep.subr.mxu0 0.0
        %1962 = vmatpush1.xpose.msra.mxu0 0.0
        %1963 = vmatprep.subr.mxu0 0.0
        %1964 = vmatpush1.xpose.msra.mxu0 0.0
        %1965 = vmatprep.subr.mxu0 0.0
        %1966 = vmatpush1.xpose.msra.mxu0 0.0
        %1967 = vmatprep.subr.mxu0 0.0
        %1968 = vmatpush1.xpose.msra.mxu0 0.0
        %1969 = vmatprep.subr.mxu0 0.0
        %1970 = vmatpush1.xpose.msra.mxu0 0.0
        %1971 = vmatprep.subr.mxu0 0.0
        %1972 = vmatpush1.xpose.msra.mxu0 %v1939
        %1973 = vmatprep.subr.mxu0 0.0
        %1974 = vmatpush2.xpose.msra.mxu0 0.0
        %1975 = vmatprep.subr.mxu0 0.0
        %1976 = vmatpush2.xpose.msra.mxu0 0.0
        %1977 = vmatprep.subr.mxu0 0.0
        %1978 = vmatpush2.xpose.msra.mxu0 0.0
        %1979 = vmatprep.subr.mxu0 0.0
        %1980 = vmatpush2.xpose.msra.mxu0 0.0
        %1981 = vmatprep.subr.mxu0 0.0
        %1982 = vmatpush2.xpose.msra.mxu0 0.0
        %1983 = vmatprep.subr.mxu0 0.0
        %1984 = vmatpush2.xpose.msra.mxu0 0.0
        %1985 = vmatprep.subr.mxu0 0.0
        %1986 = vmatpush2.xpose.msra.mxu0 0.0
        %1987 = vmatprep.subr.mxu0 0.0
        %1988 = vmatpush2.xpose.msra.mxu0 0.0
        %1989 = vmatprep.subr.mxu0 0.0
        %1990 = vmatpush2.xpose.msra.mxu0 0.0
        %1991 = vmatprep.subr.mxu0 0.0
        %1992 = vmatpush2.xpose.msra.mxu0 0.0
        %1993 = vmatprep.subr.mxu0 0.0
        %1994 = vmatpush2.xpose.msra.mxu0 0.0
        %1995 = vmatprep.subr.mxu0 0.0
        %1996 = vmatpush2.xpose.msra.mxu0 0.0
        %1997 = vmatprep.subr.mxu0 0.0
        %1998 = vmatpush2.xpose.msra.mxu0 0.0
        %1999 = vmatprep.subr.mxu0 0.0
        %2000 = vmatpush2.xpose.msra.mxu0 0.0
        %2001 = vmatprep.subr.mxu0 0.0
        %2002 = vmatpush2.xpose.msra.mxu0 0.0
        %2003 = vmatprep.subr.mxu0 0.0
        %2004 = vmatpush2.xpose.msra.mxu0 0.0
        %2005 = vmatprep.mubr.f32.mxu0 0.0
        %2006 = vmatmul.mubr.f32.gmra.mxu0 %v1937
        %v2007 = vpop.f32.mrf.mxu0
        %v2008 = vadd.f32 0.0, %v2007
        %v2009 = vpop.f32.mrf.mxu0
        %2010 = vdwg.mxu0
        %v2011 = vlaneseq
        %v2012 = vshrl.u32 %v2011, 7
        %v2013 = vsub.s32 2, %v2012
        %v2014 = vrot.slane %v1930, %v2013
        %2016 = vrot.lane.b32.xlu0 %v2014, 32
        %v2017 = vpop.permute.xlu0 %2016
        %v2019 = vmul.f32 %v1909, %v2017
        %2021 = vrot.lane.b32.xlu0 %v2019, 96
        %v2022 = vpop.permute.xlu0 %2021
        %v2024 = vsel %vm1441, %v2022, 0.0
        %2025 = vadd.xlane.f32.xlu0 %v2024
        %v2026 = vpop.xlane.xlu0 %2025
        %v2027 = vsel %vm1562, %v2008, -inf
        %2028 = vmax.xlane.f32.xlu0 %v2027
        %v2029 = vpop.xlane.xlu0 %2028
        %v2030 = vmax.f32 %v2029, %v2026
        %v2031 = vsub.f32 %v2008, %v2030
        %v2032 = vmul.f32 %v2031, 1.442695
        %v2033 = vpow.pop %v2032
        %v2034 = vsub.f32 %v2026, %v2030
        %v2035 = vmul.f32 %v2034, 1.442695
        %v2036 = vpow.pop %v2035
        %v2037 = vsel %vm1562, %v2033, 0.0
        %2038 = vadd.xlane.f32.xlu0 %v2037
        %v2039 = vpop.xlane.xlu0 %2038
        %v2040 = vadd.f32 %v2039, %v2036
        %v2041 = vrcp.pop %v2040
        %v2042 = vlaneseq
        %v2043 = vshrl.u32 %v2042, 7
        %v2044 = vsub.s32 2, %v2043
        %v2045 = vrot.slane %v1439, %v2044
        %v2046 = vmul.f32 %v2036, %v2045
        %2047 = vrot.lane.b32.xlu0 %v1433, 32
        %v2048 = vpop.permute.xlu0 %2047
        %v2051 = vsel %vm1562, %v2033, 0
        %2053 = vmatprep.subr.mxu0 0.0
        %2054 = vmatpush1.msra.mxu0 0.0
        %2055 = vmatprep.subr.mxu0 0.0
        %2056 = vmatpush1.msra.mxu0 0.0
        %2057 = vmatprep.subr.mxu0 0.0
        %2058 = vmatpush1.msra.mxu0 0.0
        %2059 = vmatprep.subr.mxu0 0.0
        %2060 = vmatpush1.msra.mxu0 0.0
        %2061 = vmatprep.subr.mxu0 0.0
        %2062 = vmatpush1.msra.mxu0 0.0
        %2063 = vmatprep.subr.mxu0 0.0
        %2064 = vmatpush1.msra.mxu0 0.0
        %2065 = vmatprep.subr.mxu0 0.0
        %2066 = vmatpush1.msra.mxu0 0.0
        %2067 = vmatprep.subr.mxu0 0.0
        %2068 = vmatpush1.msra.mxu0 0.0
        %2069 = vmatprep.subr.mxu0 0.0
        %2070 = vmatpush1.msra.mxu0 0.0
        %2071 = vmatprep.subr.mxu0 0.0
        %2072 = vmatpush1.msra.mxu0 0.0
        %2073 = vmatprep.subr.mxu0 0.0
        %2074 = vmatpush1.msra.mxu0 0.0
        %2075 = vmatprep.subr.mxu0 0.0
        %2076 = vmatpush1.msra.mxu0 0.0
        %2077 = vmatprep.subr.mxu0 0.0
        %2078 = vmatpush1.msra.mxu0 0.0
        %2079 = vmatprep.subr.mxu0 0.0
        %2080 = vmatpush1.msra.mxu0 0.0
        %2081 = vmatprep.subr.mxu0 0.0
        %2082 = vmatpush1.msra.mxu0 0.0
        %2083 = vmatprep.subr.mxu0 0.0
        %2084 = vmatpush1.msra.mxu0 %v2048
        %2085 = vmatprep.subr.mxu0 0.0
        %2086 = vmatpush2.msra.mxu0 0.0
        %2087 = vmatprep.subr.mxu0 0.0
        %2088 = vmatpush2.msra.mxu0 0.0
        %2089 = vmatprep.subr.mxu0 0.0
        %2090 = vmatpush2.msra.mxu0 0.0
        %2091 = vmatprep.subr.mxu0 0.0
        %2092 = vmatpush2.msra.mxu0 0.0
        %2093 = vmatprep.subr.mxu0 0.0
        %2094 = vmatpush2.msra.mxu0 0.0
        %2095 = vmatprep.subr.mxu0 0.0
        %2096 = vmatpush2.msra.mxu0 0.0
        %2097 = vmatprep.subr.mxu0 0.0
        %2098 = vmatpush2.msra.mxu0 0.0
        %2099 = vmatprep.subr.mxu0 0.0
        %2100 = vmatpush2.msra.mxu0 0.0
        %2101 = vmatprep.subr.mxu0 0.0
        %2102 = vmatpush2.msra.mxu0 0.0
        %2103 = vmatprep.subr.mxu0 0.0
        %2104 = vmatpush2.msra.mxu0 0.0
        %2105 = vmatprep.subr.mxu0 0.0
        %2106 = vmatpush2.msra.mxu0 0.0
        %2107 = vmatprep.subr.mxu0 0.0
        %2108 = vmatpush2.msra.mxu0 0.0
        %2109 = vmatprep.subr.mxu0 0.0
        %2110 = vmatpush2.msra.mxu0 0.0
        %2111 = vmatprep.subr.mxu0 0.0
        %2112 = vmatpush2.msra.mxu0 0.0
        %2113 = vmatprep.subr.mxu0 0.0
        %2114 = vmatpush2.msra.mxu0 0.0
        %2115 = vmatprep.subr.mxu0 0.0
        %2116 = vmatpush2.msra.mxu0 0.0
        %2117 = vmatprep.mubr.f32.mxu0 0.0
        %2118 = vmatmul.mubr.f32.gmra.mxu0 %v2051
        %v2119 = vpop.f32.mrf.mxu0
        %v2120 = vadd.f32 %v2046, %v2119
        %v2121 = vpop.f32.mrf.mxu0
        %2122 = vdwg.mxu0
        %v2123 = vmul.f32 %v2120, %v2041
        %2125 = vrot.lane.b32.xlu0 %v2123, 32
        %v2126 = vpop.permute.xlu0 %2125
        %vm2128 = vcmask 392448
        %2129 = vst.msk [vmem:[#allocation3] sm:$0xff] %vm2128, %v2126
        %2130 = vrot.lane.b32.xlu0 %v1440, 80
        %v2131 = vpop.permute.xlu0 %2130
        %v2133 = vsel %vm1441, %v2131, 0.0
        %2134 = vadd.xlane.f32.xlu0 %v2133
        %v2135 = vpop.xlane.xlu0 %2134
        %v2136 = vmax.f32 %v2135, 1e-24
        %v2137 = vrsqrt.pop %v2136
        %v2138 = vmul.f32 %v1357, %v2137
        %2139 = vrot.lane.b32.xlu0 %v1452, 48
        %v2140 = vpop.permute.xlu0 %2139
        %v2142 = vmul.f32 %v2138, %v2140
        %2143 = vrot.lane.b32.xlu0 %v1455, 80
        %v2144 = vpop.permute.xlu0 %2143
        %v2146 = vsel %vm1441, %v2144, 0.0
        %2147 = vadd.xlane.f32.xlu0 %v2146
        %v2148 = vpop.xlane.xlu0 %2147
        %v2149 = vmax.f32 %v2148, 1e-24
        %v2150 = vrsqrt.pop %v2149
        %v2151 = vmul.f32 %v1433, %v2150
        %2152 = vrot.lane.b32.xlu0 %v1466, 48
        %v2153 = vpop.permute.xlu0 %2152
        %v2155 = vmul.f32 %v2151, %v2153
        %vm2156 = vcmask 125955
        %v2157 = vsel %vm2156, %v1469, 0.0
        %2158 = vadd.xlane.f32.xlu0 %v2157
        %v2159 = vpop.xlane.xlu0 %2158
        %v2160 = vmax.f32 %v2159, 1e-24
        %v2161 = vrsqrt.pop %v2160
        %v2162 = vmul.f32 %v1438, %v2161
        %v2163 = vmul.f32 %v2162, %v1466
        %2165 = vrot.lane.b32.xlu0 %v2142, 80
        %v2166 = vpop.permute.xlu0 %2165
        %2168 = vrot.lane.b32.xlu0 %v2155, 80
        %v2169 = vpop.permute.xlu0 %2168
        %v2170 = vsel %vm1441, %v2166, 0
        %v2172 = vsel %vm1441, %v2169, 0
        %2174 = vmatprep.subr.mxu0 0.0
        %2175 = vmatpush1.xpose.msra.mxu0 0.0
        %2176 = vmatprep.subr.mxu0 0.0
        %2177 = vmatpush1.xpose.msra.mxu0 0.0
        %2178 = vmatprep.subr.mxu0 0.0
        %2179 = vmatpush1.xpose.msra.mxu0 0.0
        %2180 = vmatprep.subr.mxu0 0.0
        %2181 = vmatpush1.xpose.msra.mxu0 0.0
        %2182 = vmatprep.subr.mxu0 0.0
        %2183 = vmatpush1.xpose.msra.mxu0 0.0
        %2184 = vmatprep.subr.mxu0 0.0
        %2185 = vmatpush1.xpose.msra.mxu0 0.0
        %2186 = vmatprep.subr.mxu0 0.0
        %2187 = vmatpush1.xpose.msra.mxu0 0.0
        %2188 = vmatprep.subr.mxu0 0.0
        %2189 = vmatpush1.xpose.msra.mxu0 0.0
        %2190 = vmatprep.subr.mxu0 0.0
        %2191 = vmatpush1.xpose.msra.mxu0 0.0
        %2192 = vmatprep.subr.mxu0 0.0
        %2193 = vmatpush1.xpose.msra.mxu0 0.0
        %2194 = vmatprep.subr.mxu0 0.0
        %2195 = vmatpush1.xpose.msra.mxu0 0.0
        %2196 = vmatprep.subr.mxu0 0.0
        %2197 = vmatpush1.xpose.msra.mxu0 0.0
        %2198 = vmatprep.subr.mxu0 0.0
        %2199 = vmatpush1.xpose.msra.mxu0 0.0
        %2200 = vmatprep.subr.mxu0 0.0
        %2201 = vmatpush1.xpose.msra.mxu0 0.0
        %2202 = vmatprep.subr.mxu0 0.0
        %2203 = vmatpush1.xpose.msra.mxu0 0.0
        %2204 = vmatprep.subr.mxu0 0.0
        %2205 = vmatpush1.xpose.msra.mxu0 %v2172
        %2206 = vmatprep.subr.mxu0 0.0
        %2207 = vmatpush2.xpose.msra.mxu0 0.0
        %2208 = vmatprep.subr.mxu0 0.0
        %2209 = vmatpush2.xpose.msra.mxu0 0.0
        %2210 = vmatprep.subr.mxu0 0.0
        %2211 = vmatpush2.xpose.msra.mxu0 0.0
        %2212 = vmatprep.subr.mxu0 0.0
        %2213 = vmatpush2.xpose.msra.mxu0 0.0
        %2214 = vmatprep.subr.mxu0 0.0
        %2215 = vmatpush2.xpose.msra.mxu0 0.0
        %2216 = vmatprep.subr.mxu0 0.0
        %2217 = vmatpush2.xpose.msra.mxu0 0.0
        %2218 = vmatprep.subr.mxu0 0.0
        %2219 = vmatpush2.xpose.msra.mxu0 0.0
        %2220 = vmatprep.subr.mxu0 0.0
        %2221 = vmatpush2.xpose.msra.mxu0 0.0
        %2222 = vmatprep.subr.mxu0 0.0
        %2223 = vmatpush2.xpose.msra.mxu0 0.0
        %2224 = vmatprep.subr.mxu0 0.0
        %2225 = vmatpush2.xpose.msra.mxu0 0.0
        %2226 = vmatprep.subr.mxu0 0.0
        %2227 = vmatpush2.xpose.msra.mxu0 0.0
        %2228 = vmatprep.subr.mxu0 0.0
        %2229 = vmatpush2.xpose.msra.mxu0 0.0
        %2230 = vmatprep.subr.mxu0 0.0
        %2231 = vmatpush2.xpose.msra.mxu0 0.0
        %2232 = vmatprep.subr.mxu0 0.0
        %2233 = vmatpush2.xpose.msra.mxu0 0.0
        %2234 = vmatprep.subr.mxu0 0.0
        %2235 = vmatpush2.xpose.msra.mxu0 0.0
        %2236 = vmatprep.subr.mxu0 0.0
        %2237 = vmatpush2.xpose.msra.mxu0 0.0
        %2238 = vmatprep.mubr.f32.mxu0 0.0
        %2239 = vmatmul.mubr.f32.gmra.mxu0 %v2170
        %v2240 = vpop.f32.mrf.mxu0
        %v2241 = vadd.f32 0.0, %v2240
        %v2242 = vpop.f32.mrf.mxu0
        %2243 = vdwg.mxu0
        %v2244 = vlaneseq
        %v2245 = vshrl.u32 %v2244, 7
        %v2246 = vsub.s32 3, %v2245
        %v2247 = vrot.slane %v2163, %v2246
        %2249 = vrot.lane.b32.xlu0 %v2247, 48
        %v2250 = vpop.permute.xlu0 %2249
        %v2252 = vmul.f32 %v2142, %v2250
        %2254 = vrot.lane.b32.xlu0 %v2252, 80
        %v2255 = vpop.permute.xlu0 %2254
        %v2257 = vsel %vm1441, %v2255, 0.0
        %2258 = vadd.xlane.f32.xlu0 %v2257
        %v2259 = vpop.xlane.xlu0 %2258
        %v2260 = vsel %vm1562, %v2241, -inf
        %2261 = vmax.xlane.f32.xlu0 %v2260
        %v2262 = vpop.xlane.xlu0 %2261
        %v2263 = vmax.f32 %v2262, %v2259
        %v2264 = vsub.f32 %v2241, %v2263
        %v2265 = vmul.f32 %v2264, 1.442695
        %v2266 = vpow.pop %v2265
        %v2267 = vsub.f32 %v2259, %v2263
        %v2268 = vmul.f32 %v2267, 1.442695
        %v2269 = vpow.pop %v2268
        %v2270 = vsel %vm1562, %v2266, 0.0
        %2271 = vadd.xlane.f32.xlu0 %v2270
        %v2272 = vpop.xlane.xlu0 %2271
        %v2273 = vadd.f32 %v2272, %v2269
        %v2274 = vrcp.pop %v2273
        %v2275 = vlaneseq
        %v2276 = vshrl.u32 %v2275, 7
        %v2277 = vsub.s32 3, %v2276
        %v2278 = vrot.slane %v1439, %v2277
        %v2279 = vmul.f32 %v2269, %v2278
        %2280 = vrot.lane.b32.xlu0 %v1433, 16
        %v2281 = vpop.permute.xlu0 %2280
        %v2284 = vsel %vm1562, %v2266, 0
        %2286 = vmatprep.subr.mxu0 0.0
        %2287 = vmatpush1.msra.mxu0 0.0
        %2288 = vmatprep.subr.mxu0 0.0
        %2289 = vmatpush1.msra.mxu0 0.0
        %2290 = vmatprep.subr.mxu0 0.0
        %2291 = vmatpush1.msra.mxu0 0.0
        %2292 = vmatprep.subr.mxu0 0.0
        %2293 = vmatpush1.msra.mxu0 0.0
        %2294 = vmatprep.subr.mxu0 0.0
        %2295 = vmatpush1.msra.mxu0 0.0
        %2296 = vmatprep.subr.mxu0 0.0
        %2297 = vmatpush1.msra.mxu0 0.0
        %2298 = vmatprep.subr.mxu0 0.0
        %2299 = vmatpush1.msra.mxu0 0.0
        %2300 = vmatprep.subr.mxu0 0.0
        %2301 = vmatpush1.msra.mxu0 0.0
        %2302 = vmatprep.subr.mxu0 0.0
        %2303 = vmatpush1.msra.mxu0 0.0
        %2304 = vmatprep.subr.mxu0 0.0
        %2305 = vmatpush1.msra.mxu0 0.0
        %2306 = vmatprep.subr.mxu0 0.0
        %2307 = vmatpush1.msra.mxu0 0.0
        %2308 = vmatprep.subr.mxu0 0.0
        %2309 = vmatpush1.msra.mxu0 0.0
        %2310 = vmatprep.subr.mxu0 0.0
        %2311 = vmatpush1.msra.mxu0 0.0
        %2312 = vmatprep.subr.mxu0 0.0
        %2313 = vmatpush1.msra.mxu0 0.0
        %2314 = vmatprep.subr.mxu0 0.0
        %2315 = vmatpush1.msra.mxu0 0.0
        %2316 = vmatprep.subr.mxu0 0.0
        %2317 = vmatpush1.msra.mxu0 %v2281
        %2318 = vmatprep.subr.mxu0 0.0
        %2319 = vmatpush2.msra.mxu0 0.0
        %2320 = vmatprep.subr.mxu0 0.0
        %2321 = vmatpush2.msra.mxu0 0.0
        %2322 = vmatprep.subr.mxu0 0.0
        %2323 = vmatpush2.msra.mxu0 0.0
        %2324 = vmatprep.subr.mxu0 0.0
        %2325 = vmatpush2.msra.mxu0 0.0
        %2326 = vmatprep.subr.mxu0 0.0
        %2327 = vmatpush2.msra.mxu0 0.0
        %2328 = vmatprep.subr.mxu0 0.0
        %2329 = vmatpush2.msra.mxu0 0.0
        %2330 = vmatprep.subr.mxu0 0.0
        %2331 = vmatpush2.msra.mxu0 0.0
        %2332 = vmatprep.subr.mxu0 0.0
        %2333 = vmatpush2.msra.mxu0 0.0
        %2334 = vmatprep.subr.mxu0 0.0
        %2335 = vmatpush2.msra.mxu0 0.0
        %2336 = vmatprep.subr.mxu0 0.0
        %2337 = vmatpush2.msra.mxu0 0.0
        %2338 = vmatprep.subr.mxu0 0.0
        %2339 = vmatpush2.msra.mxu0 0.0
        %2340 = vmatprep.subr.mxu0 0.0
        %2341 = vmatpush2.msra.mxu0 0.0
        %2342 = vmatprep.subr.mxu0 0.0
        %2343 = vmatpush2.msra.mxu0 0.0
        %2344 = vmatprep.subr.mxu0 0.0
        %2345 = vmatpush2.msra.mxu0 0.0
        %2346 = vmatprep.subr.mxu0 0.0
        %2347 = vmatpush2.msra.mxu0 0.0
        %2348 = vmatprep.subr.mxu0 0.0
        %2349 = vmatpush2.msra.mxu0 0.0
        %2350 = vmatprep.mubr.f32.mxu0 0.0
        %2351 = vmatmul.mubr.f32.gmra.mxu0 %v2284
        %v2352 = vpop.f32.mrf.mxu0
        %v2353 = vadd.f32 %v2279, %v2352
        %v2354 = vpop.f32.mrf.mxu0
        %2355 = vdwg.mxu0
        %v2356 = vmul.f32 %v2353, %v2274
        %2358 = vrot.lane.b32.xlu0 %v2356, 48
        %v2359 = vpop.permute.xlu0 %2358
        %vm2361 = vcmask 523648
        %2362 = vst.msk [vmem:[#allocation3] sm:$0xff] %vm2361, %v2359
        %v2363 = vld [vmem:[#allocation3] sm:$0xff]
        %v2364 = vld [vmem:[%s1207] sm:$0xff]
        %v2365 = vld [vmem:[%s1207 + $0x8] sm:$0xff]
        %v2366 = vld [vmem:[%s1207 + $0x10] sm:$0xff]
        %v2367 = vld [vmem:[%s1207 + $0x18] sm:$0xff]
        %v2368 = vld [vmem:[%s1207 + $0x20] sm:$0xff]
        %v2369 = vld [vmem:[%s1207 + $0x28] sm:$0xff]
        %v2370 = vld [vmem:[%s1207 + $0x30] sm:$0xff]
        %v2371 = vld [vmem:[%s1207 + $0x38] sm:$0xff]
        %vm2372 = vcmask 523264
        %v2374 = vsel %vm2372, %v2363, 0
        %2376 = vmatprep.subr.mxu0 0.0
        %2377 = vmatpush1.msra.mxu0 0.0
        %2378 = vmatprep.subr.mxu0 0.0
        %2379 = vmatpush1.msra.mxu0 0.0
        %2380 = vmatprep.subr.mxu0 0.0
        %2381 = vmatpush1.msra.mxu0 0.0
        %2382 = vmatprep.subr.mxu0 0.0
        %2383 = vmatpush1.msra.mxu0 0.0
        %2384 = vmatprep.subr.mxu0 0.0
        %2385 = vmatpush1.msra.mxu0 0.0
        %2386 = vmatprep.subr.mxu0 0.0
        %2387 = vmatpush1.msra.mxu0 0.0
        %2388 = vmatprep.subr.mxu0 0.0
        %2389 = vmatpush1.msra.mxu0 0.0
        %2390 = vmatprep.subr.mxu0 0.0
        %2391 = vmatpush1.msra.mxu0 0.0
        %2392 = vmatprep.subr.mxu0 0.0
        %2393 = vmatpush1.msra.mxu0 %v2371
        %2394 = vmatprep.subr.mxu0 0.0
        %2395 = vmatpush1.msra.mxu0 %v2370
        %2396 = vmatprep.subr.mxu0 0.0
        %2397 = vmatpush1.msra.mxu0 %v2369
        %2398 = vmatprep.subr.mxu0 0.0
        %2399 = vmatpush1.msra.mxu0 %v2368
        %2400 = vmatprep.subr.mxu0 0.0
        %2401 = vmatpush1.msra.mxu0 %v2367
        %2402 = vmatprep.subr.mxu0 0.0
        %2403 = vmatpush1.msra.mxu0 %v2366
        %2404 = vmatprep.subr.mxu0 0.0
        %2405 = vmatpush1.msra.mxu0 %v2365
        %2406 = vmatprep.subr.mxu0 0.0
        %2407 = vmatpush1.msra.mxu0 %v2364
        %2408 = vmatprep.subr.mxu0 0.0
        %2409 = vmatpush2.msra.mxu0 0.0
        %2410 = vmatprep.subr.mxu0 0.0
        %2411 = vmatpush2.msra.mxu0 0.0
        %2412 = vmatprep.subr.mxu0 0.0
        %2413 = vmatpush2.msra.mxu0 0.0
        %2414 = vmatprep.subr.mxu0 0.0
        %2415 = vmatpush2.msra.mxu0 0.0
        %2416 = vmatprep.subr.mxu0 0.0
        %2417 = vmatpush2.msra.mxu0 0.0
        %2418 = vmatprep.subr.mxu0 0.0
        %2419 = vmatpush2.msra.mxu0 0.0
        %2420 = vmatprep.subr.mxu0 0.0
        %2421 = vmatpush2.msra.mxu0 0.0
        %2422 = vmatprep.subr.mxu0 0.0
        %2423 = vmatpush2.msra.mxu0 0.0
        %2424 = vmatprep.subr.mxu0 0.0
        %2425 = vmatpush2.msra.mxu0 0.0
        %2426 = vmatprep.subr.mxu0 0.0
        %2427 = vmatpush2.msra.mxu0 0.0
        %2428 = vmatprep.subr.mxu0 0.0
        %2429 = vmatpush2.msra.mxu0 0.0
        %2430 = vmatprep.subr.mxu0 0.0
        %2431 = vmatpush2.msra.mxu0 0.0
        %2432 = vmatprep.subr.mxu0 0.0
        %2433 = vmatpush2.msra.mxu0 0.0
        %2434 = vmatprep.subr.mxu0 0.0
        %2435 = vmatpush2.msra.mxu0 0.0
        %2436 = vmatprep.subr.mxu0 0.0
        %2437 = vmatpush2.msra.mxu0 0.0
        %2438 = vmatprep.subr.mxu0 0.0
        %2439 = vmatpush2.msra.mxu0 0.0
        %2440 = vmatprep.mubr.f32.mxu0 0.0
        %2441 = vmatmul.mubr.f32.gmra.mxu0 %v2374
        %v2442 = vpop.f32.mrf.mxu0
        %v2443 = vadd.f32 0.0, %v2442
        %v2444 = vpop.f32.mrf.mxu0
        %2445 = vdwg.mxu0
        %v2446 = vadd.f32 %v1255, %v2443
        %v2447 = vld [vmem:[%s971] sm:$0x1]
        %v2448 = vsel %vm1259, %v2446, 0.0
        %2449 = vadd.xlane.f32.xlu0 %v2448
        %v2450 = vpop.xlane.xlu0 %2449
        %v2451 = vmul.f32 %v2450, %v1263
        %v2452 = vsub.f32 %v2446, %v2451
        %v2453 = vmul.f32 %v2452, %v2452
        %v2454 = vsel %vm1259, %v2453, 0.0
        %2455 = vadd.xlane.f32.xlu0 %v2454
        %v2456 = vpop.xlane.xlu0 %2455
        %v2457 = vmul.f32 %v2456, %v1263
        %v2458 = vadd.f32 %v2457, 1e-05
        %v2459 = vrsqrt.pop %v2458
        %v2460 = vmul.f32 %v2452, %v2459
        %v2462 = vlaneseq
        %v2463 = vshrl.u32 %v2462, 7
        %v2464 = vsub.s32 0, %v2463
        %v2465 = vrot.slane %v2447, %v2464
        %v2467 = vmul.f32 %v2460, %v2465
        %v2468 = vld [vmem:[%s1226] sm:$0xff]
        %v2469 = vld [vmem:[%s1226 + $0x8] sm:$0xff]
        %v2470 = vld [vmem:[%s1226 + $0x10] sm:$0xff]
        %v2471 = vld [vmem:[%s1226 + $0x18] sm:$0xff]
        %v2472 = vld [vmem:[%s1226 + $0x20] sm:$0xff]
        %v2473 = vld [vmem:[%s1226 + $0x28] sm:$0xff]
        %v2475 = vsel %vm1259, %v2467, 0
        %2477 = vmatprep.subr.mxu0 0.0
        %2478 = vmatpush1.msra.mxu0 0.0
        %2479 = vmatprep.subr.mxu0 0.0
        %2480 = vmatpush1.msra.mxu0 0.0
        %2481 = vmatprep.subr.mxu0 0.0
        %2482 = vmatpush1.msra.mxu0 0.0
        %2483 = vmatprep.subr.mxu0 0.0
        %2484 = vmatpush1.msra.mxu0 0.0
        %2485 = vmatprep.subr.mxu0 0.0
        %2486 = vmatpush1.msra.mxu0 0.0
        %2487 = vmatprep.subr.mxu0 0.0
        %2488 = vmatpush1.msra.mxu0 0.0
        %2489 = vmatprep.subr.mxu0 0.0
        %2490 = vmatpush1.msra.mxu0 0.0
        %2491 = vmatprep.subr.mxu0 0.0
        %2492 = vmatpush1.msra.mxu0 0.0
        %2493 = vmatprep.subr.mxu0 0.0
        %2494 = vmatpush1.msra.mxu0 0.0
        %2495 = vmatprep.subr.mxu0 0.0
        %2496 = vmatpush1.msra.mxu0 0.0
        %2497 = vmatprep.subr.mxu0 0.0
        %2498 = vmatpush1.msra.mxu0 %v2473
        %2499 = vmatprep.subr.mxu0 0.0
        %2500 = vmatpush1.msra.mxu0 %v2472
        %2501 = vmatprep.subr.mxu0 0.0
        %2502 = vmatpush1.msra.mxu0 %v2471
        %2503 = vmatprep.subr.mxu0 0.0
        %2504 = vmatpush1.msra.mxu0 %v2470
        %2505 = vmatprep.subr.mxu0 0.0
        %2506 = vmatpush1.msra.mxu0 %v2469
        %2507 = vmatprep.subr.mxu0 0.0
        %2508 = vmatpush1.msra.mxu0 %v2468
        %2509 = vmatprep.subr.mxu0 0.0
        %2510 = vmatpush2.msra.mxu0 0.0
        %2511 = vmatprep.subr.mxu0 0.0
        %2512 = vmatpush2.msra.mxu0 0.0
        %2513 = vmatprep.subr.mxu0 0.0
        %2514 = vmatpush2.msra.mxu0 0.0
        %2515 = vmatprep.subr.mxu0 0.0
        %2516 = vmatpush2.msra.mxu0 0.0
        %2517 = vmatprep.subr.mxu0 0.0
        %2518 = vmatpush2.msra.mxu0 0.0
        %2519 = vmatprep.subr.mxu0 0.0
        %2520 = vmatpush2.msra.mxu0 0.0
        %2521 = vmatprep.subr.mxu0 0.0
        %2522 = vmatpush2.msra.mxu0 0.0
        %2523 = vmatprep.subr.mxu0 0.0
        %2524 = vmatpush2.msra.mxu0 0.0
        %2525 = vmatprep.subr.mxu0 0.0
        %2526 = vmatpush2.msra.mxu0 0.0
        %2527 = vmatprep.subr.mxu0 0.0
        %2528 = vmatpush2.msra.mxu0 0.0
        %2529 = vmatprep.subr.mxu0 0.0
        %2530 = vmatpush2.msra.mxu0 0.0
        %2531 = vmatprep.subr.mxu0 0.0
        %2532 = vmatpush2.msra.mxu0 0.0
        %2533 = vmatprep.subr.mxu0 0.0
        %2534 = vmatpush2.msra.mxu0 0.0
        %2535 = vmatprep.subr.mxu0 0.0
        %2536 = vmatpush2.msra.mxu0 0.0
        %2537 = vmatprep.subr.mxu0 0.0
        %2538 = vmatpush2.msra.mxu0 0.0
        %2539 = vmatprep.subr.mxu0 0.0
        %2540 = vmatpush2.msra.mxu0 0.0
        %2541 = vmatprep.mubr.f32.mxu0 0.0
        %2542 = vmatmul.mubr.f32.gmra.mxu0 %v2475
        %v2543 = vpop.f32.mrf.mxu0
        %v2544 = vadd.f32 0.0, %v2543
        %v2545 = vpop.f32.mrf.mxu0
        %2546 = vdwg.mxu0
        %v2547 = vld [vmem:[%s1231] sm:$0xff]
        %v2548 = vld [vmem:[%s1231 + $0x8] sm:$0xff]
        %v2549 = vld [vmem:[%s1231 + $0x10] sm:$0xff]
        %v2550 = vld [vmem:[%s1231 + $0x18] sm:$0xff]
        %v2551 = vld [vmem:[%s1231 + $0x20] sm:$0xff]
        %v2552 = vld [vmem:[%s1231 + $0x28] sm:$0xff]
        %v2554 = vsel %vm1259, %v1256, 0
        %2556 = vmatprep.subr.mxu0 0.0
        %2557 = vmatpush1.msra.mxu0 0.0
        %2558 = vmatprep.subr.mxu0 0.0
        %2559 = vmatpush1.msra.mxu0 0.0
        %2560 = vmatprep.subr.mxu0 0.0
        %2561 = vmatpush1.msra.mxu0 0.0
        %2562 = vmatprep.subr.mxu0 0.0
        %2563 = vmatpush1.msra.mxu0 0.0
        %2564 = vmatprep.subr.mxu0 0.0
        %2565 = vmatpush1.msra.mxu0 0.0
        %2566 = vmatprep.subr.mxu0 0.0
        %2567 = vmatpush1.msra.mxu0 0.0
        %2568 = vmatprep.subr.mxu0 0.0
        %2569 = vmatpush1.msra.mxu0 0.0
        %2570 = vmatprep.subr.mxu0 0.0
        %2571 = vmatpush1.msra.mxu0 0.0
        %2572 = vmatprep.subr.mxu0 0.0
        %2573 = vmatpush1.msra.mxu0 0.0
        %2574 = vmatprep.subr.mxu0 0.0
        %2575 = vmatpush1.msra.mxu0 0.0
        %2576 = vmatprep.subr.mxu0 0.0
        %2577 = vmatpush1.msra.mxu0 %v2552
        %2578 = vmatprep.subr.mxu0 0.0
        %2579 = vmatpush1.msra.mxu0 %v2551
        %2580 = vmatprep.subr.mxu0 0.0
        %2581 = vmatpush1.msra.mxu0 %v2550
        %2582 = vmatprep.subr.mxu0 0.0
        %2583 = vmatpush1.msra.mxu0 %v2549
        %2584 = vmatprep.subr.mxu0 0.0
        %2585 = vmatpush1.msra.mxu0 %v2548
        %2586 = vmatprep.subr.mxu0 0.0
        %2587 = vmatpush1.msra.mxu0 %v2547
        %2588 = vmatprep.subr.mxu0 0.0
        %2589 = vmatpush2.msra.mxu0 0.0
        %2590 = vmatprep.subr.mxu0 0.0
        %2591 = vmatpush2.msra.mxu0 0.0
        %2592 = vmatprep.subr.mxu0 0.0
        %2593 = vmatpush2.msra.mxu0 0.0
        %2594 = vmatprep.subr.mxu0 0.0
        %2595 = vmatpush2.msra.mxu0 0.0
        %2596 = vmatprep.subr.mxu0 0.0
        %2597 = vmatpush2.msra.mxu0 0.0
        %2598 = vmatprep.subr.mxu0 0.0
        %2599 = vmatpush2.msra.mxu0 0.0
        %2600 = vmatprep.subr.mxu0 0.0
        %2601 = vmatpush2.msra.mxu0 0.0
        %2602 = vmatprep.subr.mxu0 0.0
        %2603 = vmatpush2.msra.mxu0 0.0
        %2604 = vmatprep.subr.mxu0 0.0
        %2605 = vmatpush2.msra.mxu0 0.0
        %2606 = vmatprep.subr.mxu0 0.0
        %2607 = vmatpush2.msra.mxu0 0.0
        %2608 = vmatprep.subr.mxu0 0.0
        %2609 = vmatpush2.msra.mxu0 0.0
        %2610 = vmatprep.subr.mxu0 0.0
        %2611 = vmatpush2.msra.mxu0 0.0
        %2612 = vmatprep.subr.mxu0 0.0
        %2613 = vmatpush2.msra.mxu0 0.0
        %2614 = vmatprep.subr.mxu0 0.0
        %2615 = vmatpush2.msra.mxu0 0.0
        %2616 = vmatprep.subr.mxu0 0.0
        %2617 = vmatpush2.msra.mxu0 0.0
        %2618 = vmatprep.subr.mxu0 0.0
        %2619 = vmatpush2.msra.mxu0 0.0
        %2620 = vmatprep.mubr.f32.mxu0 0.0
        %2621 = vmatmul.mubr.f32.gmra.mxu0 %v2554
        %v2622 = vpop.f32.mrf.mxu0
        %v2623 = vadd.f32 0.0, %v2622
        %v2624 = vpop.f32.mrf.mxu0
        %2625 = vdwg.mxu0
        %v2626 = vld [vmem:[%s979] sm:$0x1]
        %v2627 = vld [vmem:[%s987] sm:$0x1]
        %v2628 = vld [vmem:[%s996] sm:$0xf]
        %v2629 = vld [vmem:[%s1005] sm:$0xf]
        %v2630 = vmul.f32 %v2544, %v2544
        %v2631 = vsel %vm1441, %v2630, 0.0
        %2632 = vadd.xlane.f32.xlu0 %v2631
        %v2633 = vpop.xlane.xlu0 %2632
        %v2634 = vmax.f32 %v2633, 1e-24
        %v2635 = vrsqrt.pop %v2634
        %v2636 = vmul.f32 %v2544, %v2635
        %v2638 = vlaneseq
        %v2639 = vshrl.u32 %v2638, 7
        %v2640 = vsub.s32 0, %v2639
        %v2641 = vrot.slane %v2626, %v2640
        %v2643 = vmul.f32 %v2636, %v2641
        %v2644 = vmul.f32 %v2623, %v2623
        %v2645 = vsel %vm1441, %v2644, 0.0
        %2646 = vadd.xlane.f32.xlu0 %v2645
        %v2647 = vpop.xlane.xlu0 %2646
        %v2648 = vmax.f32 %v2647, 1e-24
        %v2649 = vrsqrt.pop %v2648
        %v2650 = vmul.f32 %v2623, %v2649
        %v2652 = vlaneseq
        %v2653 = vshrl.u32 %v2652, 7
        %v2654 = vsub.s32 0, %v2653
        %v2655 = vrot.slane %v2627, %v2654
        %v2657 = vmul.f32 %v2650, %v2655
        %v2658 = vmul.f32 %v2628, %v2628
        %v2659 = vsel %vm1470, %v2658, 0.0
        %2660 = vadd.xlane.f32.xlu0 %v2659
        %v2661 = vpop.xlane.xlu0 %2660
        %v2662 = vmax.f32 %v2661, 1e-24
        %v2663 = vrsqrt.pop %v2662
        %v2664 = vmul.f32 %v2628, %v2663
        %v2665 = vmul.f32 %v2664, %v2627
        %v2667 = vlaneseq
        %v2668 = vshrl.u32 %v2667, 7
        %v2669 = vsub.s32 0, %v2668
        %v2670 = vrot.slane %v1257, %v2669
        %v2673 = vsel %vm1441, %v2643, 0
        %v2676 = vsel %vm1441, %v2657, 0
        %2678 = vmatprep.subr.mxu0 0.0
        %2679 = vmatpush1.xpose.msra.mxu0 0.0
        %2680 = vmatprep.subr.mxu0 0.0
        %2681 = vmatpush1.xpose.msra.mxu0 0.0
        %2682 = vmatprep.subr.mxu0 0.0
        %2683 = vmatpush1.xpose.msra.mxu0 0.0
        %2684 = vmatprep.subr.mxu0 0.0
        %2685 = vmatpush1.xpose.msra.mxu0 0.0
        %2686 = vmatprep.subr.mxu0 0.0
        %2687 = vmatpush1.xpose.msra.mxu0 0.0
        %2688 = vmatprep.subr.mxu0 0.0
        %2689 = vmatpush1.xpose.msra.mxu0 0.0
        %2690 = vmatprep.subr.mxu0 0.0
        %2691 = vmatpush1.xpose.msra.mxu0 0.0
        %2692 = vmatprep.subr.mxu0 0.0
        %2693 = vmatpush1.xpose.msra.mxu0 0.0
        %2694 = vmatprep.subr.mxu0 0.0
        %2695 = vmatpush1.xpose.msra.mxu0 0.0
        %2696 = vmatprep.subr.mxu0 0.0
        %2697 = vmatpush1.xpose.msra.mxu0 0.0
        %2698 = vmatprep.subr.mxu0 0.0
        %2699 = vmatpush1.xpose.msra.mxu0 0.0
        %2700 = vmatprep.subr.mxu0 0.0
        %2701 = vmatpush1.xpose.msra.mxu0 0.0
        %2702 = vmatprep.subr.mxu0 0.0
        %2703 = vmatpush1.xpose.msra.mxu0 0.0
        %2704 = vmatprep.subr.mxu0 0.0
        %2705 = vmatpush1.xpose.msra.mxu0 0.0
        %2706 = vmatprep.subr.mxu0 0.0
        %2707 = vmatpush1.xpose.msra.mxu0 0.0
        %2708 = vmatprep.subr.mxu0 0.0
        %2709 = vmatpush1.xpose.msra.mxu0 %v2676
        %2710 = vmatprep.subr.mxu0 0.0
        %2711 = vmatpush2.xpose.msra.mxu0 0.0
        %2712 = vmatprep.subr.mxu0 0.0
        %2713 = vmatpush2.xpose.msra.mxu0 0.0
        %2714 = vmatprep.subr.mxu0 0.0
        %2715 = vmatpush2.xpose.msra.mxu0 0.0
        %2716 = vmatprep.subr.mxu0 0.0
        %2717 = vmatpush2.xpose.msra.mxu0 0.0
        %2718 = vmatprep.subr.mxu0 0.0
        %2719 = vmatpush2.xpose.msra.mxu0 0.0
        %2720 = vmatprep.subr.mxu0 0.0
        %2721 = vmatpush2.xpose.msra.mxu0 0.0
        %2722 = vmatprep.subr.mxu0 0.0
        %2723 = vmatpush2.xpose.msra.mxu0 0.0
        %2724 = vmatprep.subr.mxu0 0.0
        %2725 = vmatpush2.xpose.msra.mxu0 0.0
        %2726 = vmatprep.subr.mxu0 0.0
        %2727 = vmatpush2.xpose.msra.mxu0 0.0
        %2728 = vmatprep.subr.mxu0 0.0
        %2729 = vmatpush2.xpose.msra.mxu0 0.0
        %2730 = vmatprep.subr.mxu0 0.0
        %2731 = vmatpush2.xpose.msra.mxu0 0.0
        %2732 = vmatprep.subr.mxu0 0.0
        %2733 = vmatpush2.xpose.msra.mxu0 0.0
        %2734 = vmatprep.subr.mxu0 0.0
        %2735 = vmatpush2.xpose.msra.mxu0 0.0
        %2736 = vmatprep.subr.mxu0 0.0
        %2737 = vmatpush2.xpose.msra.mxu0 0.0
        %2738 = vmatprep.subr.mxu0 0.0
        %2739 = vmatpush2.xpose.msra.mxu0 0.0
        %2740 = vmatprep.subr.mxu0 0.0
        %2741 = vmatpush2.xpose.msra.mxu0 0.0
        %2742 = vmatprep.mubr.f32.mxu0 0.0
        %2743 = vmatmul.mubr.f32.gmra.mxu0 %v2673
        %v2744 = vpop.f32.mrf.mxu0
        %v2745 = vadd.f32 %v2670, %v2744
        %v2746 = vpop.f32.mrf.mxu0
        %2747 = vdwg.mxu0
        %v2748 = vlaneseq
        %v2749 = vshrl.u32 %v2748, 7
        %v2750 = vsub.s32 0, %v2749
        %v2751 = vrot.slane %v2665, %v2750
        %v2752 = vmul.f32 %v2643, %v2751
        %v2753 = vsel %vm1441, %v2752, 0.0
        %2754 = vadd.xlane.f32.xlu0 %v2753
        %v2755 = vpop.xlane.xlu0 %2754
        %v2756 = vsel %vm1562, %v2745, -inf
        %2757 = vmax.xlane.f32.xlu0 %v2756
        %v2758 = vpop.xlane.xlu0 %2757
        %v2759 = vmax.f32 %v2758, %v2755
        %v2760 = vsub.f32 %v2745, %v2759
        %v2761 = vmul.f32 %v2760, 1.442695
        %v2762 = vpow.pop %v2761
        %v2763 = vsub.f32 %v2755, %v2759
        %v2764 = vmul.f32 %v2763, 1.442695
        %v2765 = vpow.pop %v2764
        %v2766 = vsel %vm1562, %v2762, 0.0
        %2767 = vadd.xlane.f32.xlu0 %v2766
        %v2768 = vpop.xlane.xlu0 %2767
        %v2769 = vadd.f32 %v2768, %v2765
        %v2770 = vrcp.pop %v2769
        %v2771 = vlaneseq
        %v2772 = vshrl.u32 %v2771, 7
        %v2773 = vsub.s32 0, %v2772
        %v2774 = vrot.slane %v2629, %v2773
        %v2775 = vmul.f32 %v2765, %v2774
        %2777 = vrot.lane.b32.xlu0 %v2623, 64
        %v2778 = vpop.permute.xlu0 %2777
        %v2781 = vsel %vm1562, %v2762, 0
        %2783 = vmatprep.subr.mxu0 0.0
        %2784 = vmatpush1.msra.mxu0 0.0
        %2785 = vmatprep.subr.mxu0 0.0
        %2786 = vmatpush1.msra.mxu0 0.0
        %2787 = vmatprep.subr.mxu0 0.0
        %2788 = vmatpush1.msra.mxu0 0.0
        %2789 = vmatprep.subr.mxu0 0.0
        %2790 = vmatpush1.msra.mxu0 0.0
        %2791 = vmatprep.subr.mxu0 0.0
        %2792 = vmatpush1.msra.mxu0 0.0
        %2793 = vmatprep.subr.mxu0 0.0
        %2794 = vmatpush1.msra.mxu0 0.0
        %2795 = vmatprep.subr.mxu0 0.0
        %2796 = vmatpush1.msra.mxu0 0.0
        %2797 = vmatprep.subr.mxu0 0.0
        %2798 = vmatpush1.msra.mxu0 0.0
        %2799 = vmatprep.subr.mxu0 0.0
        %2800 = vmatpush1.msra.mxu0 0.0
        %2801 = vmatprep.subr.mxu0 0.0
        %2802 = vmatpush1.msra.mxu0 0.0
        %2803 = vmatprep.subr.mxu0 0.0
        %2804 = vmatpush1.msra.mxu0 0.0
        %2805 = vmatprep.subr.mxu0 0.0
        %2806 = vmatpush1.msra.mxu0 0.0
        %2807 = vmatprep.subr.mxu0 0.0
        %2808 = vmatpush1.msra.mxu0 0.0
        %2809 = vmatprep.subr.mxu0 0.0
        %2810 = vmatpush1.msra.mxu0 0.0
        %2811 = vmatprep.subr.mxu0 0.0
        %2812 = vmatpush1.msra.mxu0 0.0
        %2813 = vmatprep.subr.mxu0 0.0
        %2814 = vmatpush1.msra.mxu0 %v2778
        %2815 = vmatprep.subr.mxu0 0.0
        %2816 = vmatpush2.msra.mxu0 0.0
        %2817 = vmatprep.subr.mxu0 0.0
        %2818 = vmatpush2.msra.mxu0 0.0
        %2819 = vmatprep.subr.mxu0 0.0
        %2820 = vmatpush2.msra.mxu0 0.0
        %2821 = vmatprep.subr.mxu0 0.0
        %2822 = vmatpush2.msra.mxu0 0.0
        %2823 = vmatprep.subr.mxu0 0.0
        %2824 = vmatpush2.msra.mxu0 0.0
        %2825 = vmatprep.subr.mxu0 0.0
        %2826 = vmatpush2.msra.mxu0 0.0
        %2827 = vmatprep.subr.mxu0 0.0
        %2828 = vmatpush2.msra.mxu0 0.0
        %2829 = vmatprep.subr.mxu0 0.0
        %2830 = vmatpush2.msra.mxu0 0.0
        %2831 = vmatprep.subr.mxu0 0.0
        %2832 = vmatpush2.msra.mxu0 0.0
        %2833 = vmatprep.subr.mxu0 0.0
        %2834 = vmatpush2.msra.mxu0 0.0
        %2835 = vmatprep.subr.mxu0 0.0
        %2836 = vmatpush2.msra.mxu0 0.0
        %2837 = vmatprep.subr.mxu0 0.0
        %2838 = vmatpush2.msra.mxu0 0.0
        %2839 = vmatprep.subr.mxu0 0.0
        %2840 = vmatpush2.msra.mxu0 0.0
        %2841 = vmatprep.subr.mxu0 0.0
        %2842 = vmatpush2.msra.mxu0 0.0
        %2843 = vmatprep.subr.mxu0 0.0
        %2844 = vmatpush2.msra.mxu0 0.0
        %2845 = vmatprep.subr.mxu0 0.0
        %2846 = vmatpush2.msra.mxu0 0.0
        %2847 = vmatprep.mubr.f32.mxu0 0.0
        %2848 = vmatmul.mubr.f32.gmra.mxu0 %v2781
        %v2849 = vpop.f32.mrf.mxu0
        %v2850 = vadd.f32 %v2775, %v2849
        %v2851 = vpop.f32.mrf.mxu0
        %2852 = vdwg.mxu0
        %v2853 = vmul.f32 %v2850, %v2770
        %2854 = vst.msk [vmem:[#allocation3] sm:$0xff] %vm1441, %v2853
        %2856 = vrot.lane.b32.xlu0 %v2630, 112
        %v2857 = vpop.permute.xlu0 %2856
        %v2859 = vsel %vm1441, %v2857, 0.0
        %2860 = vadd.xlane.f32.xlu0 %v2859
        %v2861 = vpop.xlane.xlu0 %2860
        %v2862 = vmax.f32 %v2861, 1e-24
        %v2863 = vrsqrt.pop %v2862
        %v2864 = vmul.f32 %v2544, %v2863
        %2865 = vrot.lane.b32.xlu0 %v2641, 16
        %v2866 = vpop.permute.xlu0 %2865
        %v2868 = vmul.f32 %v2864, %v2866
        %2870 = vrot.lane.b32.xlu0 %v2644, 112
        %v2871 = vpop.permute.xlu0 %2870
        %v2873 = vsel %vm1441, %v2871, 0.0
        %2874 = vadd.xlane.f32.xlu0 %v2873
        %v2875 = vpop.xlane.xlu0 %2874
        %v2876 = vmax.f32 %v2875, 1e-24
        %v2877 = vrsqrt.pop %v2876
        %v2878 = vmul.f32 %v2623, %v2877
        %2879 = vrot.lane.b32.xlu0 %v2655, 16
        %v2880 = vpop.permute.xlu0 %2879
        %v2882 = vmul.f32 %v2878, %v2880
        %v2883 = vsel %vm1690, %v2658, 0.0
        %2884 = vadd.xlane.f32.xlu0 %v2883
        %v2885 = vpop.xlane.xlu0 %2884
        %v2886 = vmax.f32 %v2885, 1e-24
        %v2887 = vrsqrt.pop %v2886
        %v2888 = vmul.f32 %v2628, %v2887
        %v2889 = vmul.f32 %v2888, %v2655
        %2891 = vrot.lane.b32.xlu0 %v2868, 112
        %v2892 = vpop.permute.xlu0 %2891
        %2894 = vrot.lane.b32.xlu0 %v2882, 112
        %v2895 = vpop.permute.xlu0 %2894
        %v2896 = vsel %vm1441, %v2892, 0
        %v2898 = vsel %vm1441, %v2895, 0
        %2900 = vmatprep.subr.mxu0 0.0
        %2901 = vmatpush1.xpose.msra.mxu0 0.0
        %2902 = vmatprep.subr.mxu0 0.0
        %2903 = vmatpush1.xpose.msra.mxu0 0.0
        %2904 = vmatprep.subr.mxu0 0.0
        %2905 = vmatpush1.xpose.msra.mxu0 0.0
        %2906 = vmatprep.subr.mxu0 0.0
        %2907 = vmatpush1.xpose.msra.mxu0 0.0
        %2908 = vmatprep.subr.mxu0 0.0
        %2909 = vmatpush1.xpose.msra.mxu0 0.0
        %2910 = vmatprep.subr.mxu0 0.0
        %2911 = vmatpush1.xpose.msra.mxu0 0.0
        %2912 = vmatprep.subr.mxu0 0.0
        %2913 = vmatpush1.xpose.msra.mxu0 0.0
        %2914 = vmatprep.subr.mxu0 0.0
        %2915 = vmatpush1.xpose.msra.mxu0 0.0
        %2916 = vmatprep.subr.mxu0 0.0
        %2917 = vmatpush1.xpose.msra.mxu0 0.0
        %2918 = vmatprep.subr.mxu0 0.0
        %2919 = vmatpush1.xpose.msra.mxu0 0.0
        %2920 = vmatprep.subr.mxu0 0.0
        %2921 = vmatpush1.xpose.msra.mxu0 0.0
        %2922 = vmatprep.subr.mxu0 0.0
        %2923 = vmatpush1.xpose.msra.mxu0 0.0
        %2924 = vmatprep.subr.mxu0 0.0
        %2925 = vmatpush1.xpose.msra.mxu0 0.0
        %2926 = vmatprep.subr.mxu0 0.0
        %2927 = vmatpush1.xpose.msra.mxu0 0.0
        %2928 = vmatprep.subr.mxu0 0.0
        %2929 = vmatpush1.xpose.msra.mxu0 0.0
        %2930 = vmatprep.subr.mxu0 0.0
        %2931 = vmatpush1.xpose.msra.mxu0 %v2898
        %2932 = vmatprep.subr.mxu0 0.0
        %2933 = vmatpush2.xpose.msra.mxu0 0.0
        %2934 = vmatprep.subr.mxu0 0.0
        %2935 = vmatpush2.xpose.msra.mxu0 0.0
        %2936 = vmatprep.subr.mxu0 0.0
        %2937 = vmatpush2.xpose.msra.mxu0 0.0
        %2938 = vmatprep.subr.mxu0 0.0
        %2939 = vmatpush2.xpose.msra.mxu0 0.0
        %2940 = vmatprep.subr.mxu0 0.0
        %2941 = vmatpush2.xpose.msra.mxu0 0.0
        %2942 = vmatprep.subr.mxu0 0.0
        %2943 = vmatpush2.xpose.msra.mxu0 0.0
        %2944 = vmatprep.subr.mxu0 0.0
        %2945 = vmatpush2.xpose.msra.mxu0 0.0
        %2946 = vmatprep.subr.mxu0 0.0
        %2947 = vmatpush2.xpose.msra.mxu0 0.0
        %2948 = vmatprep.subr.mxu0 0.0
        %2949 = vmatpush2.xpose.msra.mxu0 0.0
        %2950 = vmatprep.subr.mxu0 0.0
        %2951 = vmatpush2.xpose.msra.mxu0 0.0
        %2952 = vmatprep.subr.mxu0 0.0
        %2953 = vmatpush2.xpose.msra.mxu0 0.0
        %2954 = vmatprep.subr.mxu0 0.0
        %2955 = vmatpush2.xpose.msra.mxu0 0.0
        %2956 = vmatprep.subr.mxu0 0.0
        %2957 = vmatpush2.xpose.msra.mxu0 0.0
        %2958 = vmatprep.subr.mxu0 0.0
        %2959 = vmatpush2.xpose.msra.mxu0 0.0
        %2960 = vmatprep.subr.mxu0 0.0
        %2961 = vmatpush2.xpose.msra.mxu0 0.0
        %2962 = vmatprep.subr.mxu0 0.0
        %2963 = vmatpush2.xpose.msra.mxu0 0.0
        %2964 = vmatprep.mubr.f32.mxu0 0.0
        %2965 = vmatmul.mubr.f32.gmra.mxu0 %v2896
        %v2966 = vpop.f32.mrf.mxu0
        %v2967 = vadd.f32 %v2670, %v2966
        %v2968 = vpop.f32.mrf.mxu0
        %2969 = vdwg.mxu0
        %v2970 = vlaneseq
        %v2971 = vshrl.u32 %v2970, 7
        %v2972 = vsub.s32 1, %v2971
        %v2973 = vrot.slane %v2889, %v2972
        %2975 = vrot.lane.b32.xlu0 %v2973, 16
        %v2976 = vpop.permute.xlu0 %2975
        %v2978 = vmul.f32 %v2868, %v2976
        %2980 = vrot.lane.b32.xlu0 %v2978, 112
        %v2981 = vpop.permute.xlu0 %2980
        %v2983 = vsel %vm1441, %v2981, 0.0
        %2984 = vadd.xlane.f32.xlu0 %v2983
        %v2985 = vpop.xlane.xlu0 %2984
        %v2986 = vsel %vm1562, %v2967, -inf
        %2987 = vmax.xlane.f32.xlu0 %v2986
        %v2988 = vpop.xlane.xlu0 %2987
        %v2989 = vmax.f32 %v2988, %v2985
        %v2990 = vsub.f32 %v2967, %v2989
        %v2991 = vmul.f32 %v2990, 1.442695
        %v2992 = vpow.pop %v2991
        %v2993 = vsub.f32 %v2985, %v2989
        %v2994 = vmul.f32 %v2993, 1.442695
        %v2995 = vpow.pop %v2994
        %v2996 = vsel %vm1562, %v2992, 0.0
        %2997 = vadd.xlane.f32.xlu0 %v2996
        %v2998 = vpop.xlane.xlu0 %2997
        %v2999 = vadd.f32 %v2998, %v2995
        %v3000 = vrcp.pop %v2999
        %v3001 = vlaneseq
        %v3002 = vshrl.u32 %v3001, 7
        %v3003 = vsub.s32 1, %v3002
        %v3004 = vrot.slane %v2629, %v3003
        %v3005 = vmul.f32 %v2995, %v3004
        %3006 = vrot.lane.b32.xlu0 %v2623, 48
        %v3007 = vpop.permute.xlu0 %3006
        %v3010 = vsel %vm1562, %v2992, 0
        %3012 = vmatprep.subr.mxu0 0.0
        %3013 = vmatpush1.msra.mxu0 0.0
        %3014 = vmatprep.subr.mxu0 0.0
        %3015 = vmatpush1.msra.mxu0 0.0
        %3016 = vmatprep.subr.mxu0 0.0
        %3017 = vmatpush1.msra.mxu0 0.0
        %3018 = vmatprep.subr.mxu0 0.0
        %3019 = vmatpush1.msra.mxu0 0.0
        %3020 = vmatprep.subr.mxu0 0.0
        %3021 = vmatpush1.msra.mxu0 0.0
        %3022 = vmatprep.subr.mxu0 0.0
        %3023 = vmatpush1.msra.mxu0 0.0
        %3024 = vmatprep.subr.mxu0 0.0
        %3025 = vmatpush1.msra.mxu0 0.0
        %3026 = vmatprep.subr.mxu0 0.0
        %3027 = vmatpush1.msra.mxu0 0.0
        %3028 = vmatprep.subr.mxu0 0.0
        %3029 = vmatpush1.msra.mxu0 0.0
        %3030 = vmatprep.subr.mxu0 0.0
        %3031 = vmatpush1.msra.mxu0 0.0
        %3032 = vmatprep.subr.mxu0 0.0
        %3033 = vmatpush1.msra.mxu0 0.0
        %3034 = vmatprep.subr.mxu0 0.0
        %3035 = vmatpush1.msra.mxu0 0.0
        %3036 = vmatprep.subr.mxu0 0.0
        %3037 = vmatpush1.msra.mxu0 0.0
        %3038 = vmatprep.subr.mxu0 0.0
        %3039 = vmatpush1.msra.mxu0 0.0
        %3040 = vmatprep.subr.mxu0 0.0
        %3041 = vmatpush1.msra.mxu0 0.0
        %3042 = vmatprep.subr.mxu0 0.0
        %3043 = vmatpush1.msra.mxu0 %v3007
        %3044 = vmatprep.subr.mxu0 0.0
        %3045 = vmatpush2.msra.mxu0 0.0
        %3046 = vmatprep.subr.mxu0 0.0
        %3047 = vmatpush2.msra.mxu0 0.0
        %3048 = vmatprep.subr.mxu0 0.0
        %3049 = vmatpush2.msra.mxu0 0.0
        %3050 = vmatprep.subr.mxu0 0.0
        %3051 = vmatpush2.msra.mxu0 0.0
        %3052 = vmatprep.subr.mxu0 0.0
        %3053 = vmatpush2.msra.mxu0 0.0
        %3054 = vmatprep.subr.mxu0 0.0
        %3055 = vmatpush2.msra.mxu0 0.0
        %3056 = vmatprep.subr.mxu0 0.0
        %3057 = vmatpush2.msra.mxu0 0.0
        %3058 = vmatprep.subr.mxu0 0.0
        %3059 = vmatpush2.msra.mxu0 0.0
        %3060 = vmatprep.subr.mxu0 0.0
        %3061 = vmatpush2.msra.mxu0 0.0
        %3062 = vmatprep.subr.mxu0 0.0
        %3063 = vmatpush2.msra.mxu0 0.0
        %3064 = vmatprep.subr.mxu0 0.0
        %3065 = vmatpush2.msra.mxu0 0.0
        %3066 = vmatprep.subr.mxu0 0.0
        %3067 = vmatpush2.msra.mxu0 0.0
        %3068 = vmatprep.subr.mxu0 0.0
        %3069 = vmatpush2.msra.mxu0 0.0
        %3070 = vmatprep.subr.mxu0 0.0
        %3071 = vmatpush2.msra.mxu0 0.0
        %3072 = vmatprep.subr.mxu0 0.0
        %3073 = vmatpush2.msra.mxu0 0.0
        %3074 = vmatprep.subr.mxu0 0.0
        %3075 = vmatpush2.msra.mxu0 0.0
        %3076 = vmatprep.mubr.f32.mxu0 0.0
        %3077 = vmatmul.mubr.f32.gmra.mxu0 %v3010
        %v3078 = vpop.f32.mrf.mxu0
        %v3079 = vadd.f32 %v3005, %v3078
        %v3080 = vpop.f32.mrf.mxu0
        %3081 = vdwg.mxu0
        %v3082 = vmul.f32 %v3079, %v3000
        %3084 = vrot.lane.b32.xlu0 %v3082, 16
        %v3085 = vpop.permute.xlu0 %3084
        %3087 = vst.msk [vmem:[#allocation3] sm:$0xff] %vm1895, %v3085
        %3088 = vrot.lane.b32.xlu0 %v2630, 96
        %v3089 = vpop.permute.xlu0 %3088
        %v3091 = vsel %vm1441, %v3089, 0.0
        %3092 = vadd.xlane.f32.xlu0 %v3091
        %v3093 = vpop.xlane.xlu0 %3092
        %v3094 = vmax.f32 %v3093, 1e-24
        %v3095 = vrsqrt.pop %v3094
        %v3096 = vmul.f32 %v2544, %v3095
        %3097 = vrot.lane.b32.xlu0 %v2641, 32
        %v3098 = vpop.permute.xlu0 %3097
        %v3100 = vmul.f32 %v3096, %v3098
        %3101 = vrot.lane.b32.xlu0 %v2644, 96
        %v3102 = vpop.permute.xlu0 %3101
        %v3104 = vsel %vm1441, %v3102, 0.0
        %3105 = vadd.xlane.f32.xlu0 %v3104
        %v3106 = vpop.xlane.xlu0 %3105
        %v3107 = vmax.f32 %v3106, 1e-24
        %v3108 = vrsqrt.pop %v3107
        %v3109 = vmul.f32 %v2623, %v3108
        %3110 = vrot.lane.b32.xlu0 %v2655, 32
        %v3111 = vpop.permute.xlu0 %3110
        %v3113 = vmul.f32 %v3109, %v3111
        %v3114 = vsel %vm1923, %v2658, 0.0
        %3115 = vadd.xlane.f32.xlu0 %v3114
        %v3116 = vpop.xlane.xlu0 %3115
        %v3117 = vmax.f32 %v3116, 1e-24
        %v3118 = vrsqrt.pop %v3117
        %v3119 = vmul.f32 %v2628, %v3118
        %v3120 = vmul.f32 %v3119, %v2655
        %3122 = vrot.lane.b32.xlu0 %v3100, 96
        %v3123 = vpop.permute.xlu0 %3122
        %3125 = vrot.lane.b32.xlu0 %v3113, 96
        %v3126 = vpop.permute.xlu0 %3125
        %v3127 = vsel %vm1441, %v3123, 0
        %v3129 = vsel %vm1441, %v3126, 0
        %3131 = vmatprep.subr.mxu0 0.0
        %3132 = vmatpush1.xpose.msra.mxu0 0.0
        %3133 = vmatprep.subr.mxu0 0.0
        %3134 = vmatpush1.xpose.msra.mxu0 0.0
        %3135 = vmatprep.subr.mxu0 0.0
        %3136 = vmatpush1.xpose.msra.mxu0 0.0
        %3137 = vmatprep.subr.mxu0 0.0
        %3138 = vmatpush1.xpose.msra.mxu0 0.0
        %3139 = vmatprep.subr.mxu0 0.0
        %3140 = vmatpush1.xpose.msra.mxu0 0.0
        %3141 = vmatprep.subr.mxu0 0.0
        %3142 = vmatpush1.xpose.msra.mxu0 0.0
        %3143 = vmatprep.subr.mxu0 0.0
        %3144 = vmatpush1.xpose.msra.mxu0 0.0
        %3145 = vmatprep.subr.mxu0 0.0
        %3146 = vmatpush1.xpose.msra.mxu0 0.0
        %3147 = vmatprep.subr.mxu0 0.0
        %3148 = vmatpush1.xpose.msra.mxu0 0.0
        %3149 = vmatprep.subr.mxu0 0.0
        %3150 = vmatpush1.xpose.msra.mxu0 0.0
        %3151 = vmatprep.subr.mxu0 0.0
        %3152 = vmatpush1.xpose.msra.mxu0 0.0
        %3153 = vmatprep.subr.mxu0 0.0
        %3154 = vmatpush1.xpose.msra.mxu0 0.0
        %3155 = vmatprep.subr.mxu0 0.0
        %3156 = vmatpush1.xpose.msra.mxu0 0.0
        %3157 = vmatprep.subr.mxu0 0.0
        %3158 = vmatpush1.xpose.msra.mxu0 0.0
        %3159 = vmatprep.subr.mxu0 0.0
        %3160 = vmatpush1.xpose.msra.mxu0 0.0
        %3161 = vmatprep.subr.mxu0 0.0
        %3162 = vmatpush1.xpose.msra.mxu0 %v3129
        %3163 = vmatprep.subr.mxu0 0.0
        %3164 = vmatpush2.xpose.msra.mxu0 0.0
        %3165 = vmatprep.subr.mxu0 0.0
        %3166 = vmatpush2.xpose.msra.mxu0 0.0
        %3167 = vmatprep.subr.mxu0 0.0
        %3168 = vmatpush2.xpose.msra.mxu0 0.0
        %3169 = vmatprep.subr.mxu0 0.0
        %3170 = vmatpush2.xpose.msra.mxu0 0.0
        %3171 = vmatprep.subr.mxu0 0.0
        %3172 = vmatpush2.xpose.msra.mxu0 0.0
        %3173 = vmatprep.subr.mxu0 0.0
        %3174 = vmatpush2.xpose.msra.mxu0 0.0
        %3175 = vmatprep.subr.mxu0 0.0
        %3176 = vmatpush2.xpose.msra.mxu0 0.0
        %3177 = vmatprep.subr.mxu0 0.0
        %3178 = vmatpush2.xpose.msra.mxu0 0.0
        %3179 = vmatprep.subr.mxu0 0.0
        %3180 = vmatpush2.xpose.msra.mxu0 0.0
        %3181 = vmatprep.subr.mxu0 0.0
        %3182 = vmatpush2.xpose.msra.mxu0 0.0
        %3183 = vmatprep.subr.mxu0 0.0
        %3184 = vmatpush2.xpose.msra.mxu0 0.0
        %3185 = vmatprep.subr.mxu0 0.0
        %3186 = vmatpush2.xpose.msra.mxu0 0.0
        %3187 = vmatprep.subr.mxu0 0.0
        %3188 = vmatpush2.xpose.msra.mxu0 0.0
        %3189 = vmatprep.subr.mxu0 0.0
        %3190 = vmatpush2.xpose.msra.mxu0 0.0
        %3191 = vmatprep.subr.mxu0 0.0
        %3192 = vmatpush2.xpose.msra.mxu0 0.0
        %3193 = vmatprep.subr.mxu0 0.0
        %3194 = vmatpush2.xpose.msra.mxu0 0.0
        %3195 = vmatprep.mubr.f32.mxu0 0.0
        %3196 = vmatmul.mubr.f32.gmra.mxu0 %v3127
        %v3197 = vpop.f32.mrf.mxu0
        %v3198 = vadd.f32 %v2670, %v3197
        %v3199 = vpop.f32.mrf.mxu0
        %3200 = vdwg.mxu0
        %v3201 = vlaneseq
        %v3202 = vshrl.u32 %v3201, 7
        %v3203 = vsub.s32 2, %v3202
        %v3204 = vrot.slane %v3120, %v3203
        %3206 = vrot.lane.b32.xlu0 %v3204, 32
        %v3207 = vpop.permute.xlu0 %3206
        %v3209 = vmul.f32 %v3100, %v3207
        %3211 = vrot.lane.b32.xlu0 %v3209, 96
        %v3212 = vpop.permute.xlu0 %3211
        %v3214 = vsel %vm1441, %v3212, 0.0
        %3215 = vadd.xlane.f32.xlu0 %v3214
        %v3216 = vpop.xlane.xlu0 %3215
        %v3217 = vsel %vm1562, %v3198, -inf
        %3218 = vmax.xlane.f32.xlu0 %v3217
        %v3219 = vpop.xlane.xlu0 %3218
        %v3220 = vmax.f32 %v3219, %v3216
        %v3221 = vsub.f32 %v3198, %v3220
        %v3222 = vmul.f32 %v3221, 1.442695
        %v3223 = vpow.pop %v3222
        %v3224 = vsub.f32 %v3216, %v3220
        %v3225 = vmul.f32 %v3224, 1.442695
        %v3226 = vpow.pop %v3225
        %v3227 = vsel %vm1562, %v3223, 0.0
        %3228 = vadd.xlane.f32.xlu0 %v3227
        %v3229 = vpop.xlane.xlu0 %3228
        %v3230 = vadd.f32 %v3229, %v3226
        %v3231 = vrcp.pop %v3230
        %v3232 = vlaneseq
        %v3233 = vshrl.u32 %v3232, 7
        %v3234 = vsub.s32 2, %v3233
        %v3235 = vrot.slane %v2629, %v3234
        %v3236 = vmul.f32 %v3226, %v3235
        %3237 = vrot.lane.b32.xlu0 %v2623, 32
        %v3238 = vpop.permute.xlu0 %3237
        %v3241 = vsel %vm1562, %v3223, 0
        %3243 = vmatprep.subr.mxu0 0.0
        %3244 = vmatpush1.msra.mxu0 0.0
        %3245 = vmatprep.subr.mxu0 0.0
        %3246 = vmatpush1.msra.mxu0 0.0
        %3247 = vmatprep.subr.mxu0 0.0
        %3248 = vmatpush1.msra.mxu0 0.0
        %3249 = vmatprep.subr.mxu0 0.0
        %3250 = vmatpush1.msra.mxu0 0.0
        %3251 = vmatprep.subr.mxu0 0.0
        %3252 = vmatpush1.msra.mxu0 0.0
        %3253 = vmatprep.subr.mxu0 0.0
        %3254 = vmatpush1.msra.mxu0 0.0
        %3255 = vmatprep.subr.mxu0 0.0
        %3256 = vmatpush1.msra.mxu0 0.0
        %3257 = vmatprep.subr.mxu0 0.0
        %3258 = vmatpush1.msra.mxu0 0.0
        %3259 = vmatprep.subr.mxu0 0.0
        %3260 = vmatpush1.msra.mxu0 0.0
        %3261 = vmatprep.subr.mxu0 0.0
        %3262 = vmatpush1.msra.mxu0 0.0
        %3263 = vmatprep.subr.mxu0 0.0
        %3264 = vmatpush1.msra.mxu0 0.0
        %3265 = vmatprep.subr.mxu0 0.0
        %3266 = vmatpush1.msra.mxu0 0.0
        %3267 = vmatprep.subr.mxu0 0.0
        %3268 = vmatpush1.msra.mxu0 0.0
        %3269 = vmatprep.subr.mxu0 0.0
        %3270 = vmatpush1.msra.mxu0 0.0
        %3271 = vmatprep.subr.mxu0 0.0
        %3272 = vmatpush1.msra.mxu0 0.0
        %3273 = vmatprep.subr.mxu0 0.0
        %3274 = vmatpush1.msra.mxu0 %v3238
        %3275 = vmatprep.subr.mxu0 0.0
        %3276 = vmatpush2.msra.mxu0 0.0
        %3277 = vmatprep.subr.mxu0 0.0
        %3278 = vmatpush2.msra.mxu0 0.0
        %3279 = vmatprep.subr.mxu0 0.0
        %3280 = vmatpush2.msra.mxu0 0.0
        %3281 = vmatprep.subr.mxu0 0.0
        %3282 = vmatpush2.msra.mxu0 0.0
        %3283 = vmatprep.subr.mxu0 0.0
        %3284 = vmatpush2.msra.mxu0 0.0
        %3285 = vmatprep.subr.mxu0 0.0
        %3286 = vmatpush2.msra.mxu0 0.0
        %3287 = vmatprep.subr.mxu0 0.0
        %3288 = vmatpush2.msra.mxu0 0.0
        %3289 = vmatprep.subr.mxu0 0.0
        %3290 = vmatpush2.msra.mxu0 0.0
        %3291 = vmatprep.subr.mxu0 0.0
        %3292 = vmatpush2.msra.mxu0 0.0
        %3293 = vmatprep.subr.mxu0 0.0
        %3294 = vmatpush2.msra.mxu0 0.0
        %3295 = vmatprep.subr.mxu0 0.0
        %3296 = vmatpush2.msra.mxu0 0.0
        %3297 = vmatprep.subr.mxu0 0.0
        %3298 = vmatpush2.msra.mxu0 0.0
        %3299 = vmatprep.subr.mxu0 0.0
        %3300 = vmatpush2.msra.mxu0 0.0
        %3301 = vmatprep.subr.mxu0 0.0
        %3302 = vmatpush2.msra.mxu0 0.0
        %3303 = vmatprep.subr.mxu0 0.0
        %3304 = vmatpush2.msra.mxu0 0.0
        %3305 = vmatprep.subr.mxu0 0.0
        %3306 = vmatpush2.msra.mxu0 0.0
        %3307 = vmatprep.mubr.f32.mxu0 0.0
        %3308 = vmatmul.mubr.f32.gmra.mxu0 %v3241
        %v3309 = vpop.f32.mrf.mxu0
        %v3310 = vadd.f32 %v3236, %v3309
        %v3311 = vpop.f32.mrf.mxu0
        %3312 = vdwg.mxu0
        %v3313 = vmul.f32 %v3310, %v3231
        %3315 = vrot.lane.b32.xlu0 %v3313, 32
        %v3316 = vpop.permute.xlu0 %3315
        %3318 = vst.msk [vmem:[#allocation3] sm:$0xff] %vm2128, %v3316
        %3319 = vrot.lane.b32.xlu0 %v2630, 80
        %v3320 = vpop.permute.xlu0 %3319
        %v3322 = vsel %vm1441, %v3320, 0.0
        %3323 = vadd.xlane.f32.xlu0 %v3322
        %v3324 = vpop.xlane.xlu0 %3323
        %v3325 = vmax.f32 %v3324, 1e-24
        %v3326 = vrsqrt.pop %v3325
        %v3327 = vmul.f32 %v2544, %v3326
        %3328 = vrot.lane.b32.xlu0 %v2641, 48
        %v3329 = vpop.permute.xlu0 %3328
        %v3331 = vmul.f32 %v3327, %v3329
        %3332 = vrot.lane.b32.xlu0 %v2644, 80
        %v3333 = vpop.permute.xlu0 %3332
        %v3335 = vsel %vm1441, %v3333, 0.0
        %3336 = vadd.xlane.f32.xlu0 %v3335
        %v3337 = vpop.xlane.xlu0 %3336
        %v3338 = vmax.f32 %v3337, 1e-24
        %v3339 = vrsqrt.pop %v3338
        %v3340 = vmul.f32 %v2623, %v3339
        %3341 = vrot.lane.b32.xlu0 %v2655, 48
        %v3342 = vpop.permute.xlu0 %3341
        %v3344 = vmul.f32 %v3340, %v3342
        %v3345 = vsel %vm2156, %v2658, 0.0
        %3346 = vadd.xlane.f32.xlu0 %v3345
        %v3347 = vpop.xlane.xlu0 %3346
        %v3348 = vmax.f32 %v3347, 1e-24
        %v3349 = vrsqrt.pop %v3348
        %v3350 = vmul.f32 %v2628, %v3349
        %v3351 = vmul.f32 %v3350, %v2655
        %3353 = vrot.lane.b32.xlu0 %v3331, 80
        %v3354 = vpop.permute.xlu0 %3353
        %3356 = vrot.lane.b32.xlu0 %v3344, 80
        %v3357 = vpop.permute.xlu0 %3356
        %v3358 = vsel %vm1441, %v3354, 0
        %v3360 = vsel %vm1441, %v3357, 0
        %3362 = vmatprep.subr.mxu0 0.0
        %3363 = vmatpush1.xpose.msra.mxu0 0.0
        %3364 = vmatprep.subr.mxu0 0.0
        %3365 = vmatpush1.xpose.msra.mxu0 0.0
        %3366 = vmatprep.subr.mxu0 0.0
        %3367 = vmatpush1.xpose.msra.mxu0 0.0
        %3368 = vmatprep.subr.mxu0 0.0
        %3369 = vmatpush1.xpose.msra.mxu0 0.0
        %3370 = vmatprep.subr.mxu0 0.0
        %3371 = vmatpush1.xpose.msra.mxu0 0.0
        %3372 = vmatprep.subr.mxu0 0.0
        %3373 = vmatpush1.xpose.msra.mxu0 0.0
        %3374 = vmatprep.subr.mxu0 0.0
        %3375 = vmatpush1.xpose.msra.mxu0 0.0
        %3376 = vmatprep.subr.mxu0 0.0
        %3377 = vmatpush1.xpose.msra.mxu0 0.0
        %3378 = vmatprep.subr.mxu0 0.0
        %3379 = vmatpush1.xpose.msra.mxu0 0.0
        %3380 = vmatprep.subr.mxu0 0.0
        %3381 = vmatpush1.xpose.msra.mxu0 0.0
        %3382 = vmatprep.subr.mxu0 0.0
        %3383 = vmatpush1.xpose.msra.mxu0 0.0
        %3384 = vmatprep.subr.mxu0 0.0
        %3385 = vmatpush1.xpose.msra.mxu0 0.0
        %3386 = vmatprep.subr.mxu0 0.0
        %3387 = vmatpush1.xpose.msra.mxu0 0.0
        %3388 = vmatprep.subr.mxu0 0.0
        %3389 = vmatpush1.xpose.msra.mxu0 0.0
        %3390 = vmatprep.subr.mxu0 0.0
        %3391 = vmatpush1.xpose.msra.mxu0 0.0
        %3392 = vmatprep.subr.mxu0 0.0
        %3393 = vmatpush1.xpose.msra.mxu0 %v3360
        %3394 = vmatprep.subr.mxu0 0.0
        %3395 = vmatpush2.xpose.msra.mxu0 0.0
        %3396 = vmatprep.subr.mxu0 0.0
        %3397 = vmatpush2.xpose.msra.mxu0 0.0
        %3398 = vmatprep.subr.mxu0 0.0
        %3399 = vmatpush2.xpose.msra.mxu0 0.0
        %3400 = vmatprep.subr.mxu0 0.0
        %3401 = vmatpush2.xpose.msra.mxu0 0.0
        %3402 = vmatprep.subr.mxu0 0.0
        %3403 = vmatpush2.xpose.msra.mxu0 0.0
        %3404 = vmatprep.subr.mxu0 0.0
        %3405 = vmatpush2.xpose.msra.mxu0 0.0
        %3406 = vmatprep.subr.mxu0 0.0
        %3407 = vmatpush2.xpose.msra.mxu0 0.0
        %3408 = vmatprep.subr.mxu0 0.0
        %3409 = vmatpush2.xpose.msra.mxu0 0.0
        %3410 = vmatprep.subr.mxu0 0.0
        %3411 = vmatpush2.xpose.msra.mxu0 0.0
        %3412 = vmatprep.subr.mxu0 0.0
        %3413 = vmatpush2.xpose.msra.mxu0 0.0
        %3414 = vmatprep.subr.mxu0 0.0
        %3415 = vmatpush2.xpose.msra.mxu0 0.0
        %3416 = vmatprep.subr.mxu0 0.0
        %3417 = vmatpush2.xpose.msra.mxu0 0.0
        %3418 = vmatprep.subr.mxu0 0.0
        %3419 = vmatpush2.xpose.msra.mxu0 0.0
        %3420 = vmatprep.subr.mxu0 0.0
        %3421 = vmatpush2.xpose.msra.mxu0 0.0
        %3422 = vmatprep.subr.mxu0 0.0
        %3423 = vmatpush2.xpose.msra.mxu0 0.0
        %3424 = vmatprep.subr.mxu0 0.0
        %3425 = vmatpush2.xpose.msra.mxu0 0.0
        %3426 = vmatprep.mubr.f32.mxu0 0.0
        %3427 = vmatmul.mubr.f32.gmra.mxu0 %v3358
        %v3428 = vpop.f32.mrf.mxu0
        %v3429 = vadd.f32 %v2670, %v3428
        %v3430 = vpop.f32.mrf.mxu0
        %3431 = vdwg.mxu0
        %v3432 = vlaneseq
        %v3433 = vshrl.u32 %v3432, 7
        %v3434 = vsub.s32 3, %v3433
        %v3435 = vrot.slane %v3351, %v3434
        %3437 = vrot.lane.b32.xlu0 %v3435, 48
        %v3438 = vpop.permute.xlu0 %3437
        %v3440 = vmul.f32 %v3331, %v3438
        %3442 = vrot.lane.b32.xlu0 %v3440, 80
        %v3443 = vpop.permute.xlu0 %3442
        %v3445 = vsel %vm1441, %v3443, 0.0
        %3446 = vadd.xlane.f32.xlu0 %v3445
        %v3447 = vpop.xlane.xlu0 %3446
        %v3448 = vsel %vm1562, %v3429, -inf
        %3449 = vmax.xlane.f32.xlu0 %v3448
        %v3450 = vpop.xlane.xlu0 %3449
        %v3451 = vmax.f32 %v3450, %v3447
        %v3452 = vsub.f32 %v3429, %v3451
        %v3453 = vmul.f32 %v3452, 1.442695
        %v3454 = vpow.pop %v3453
        %v3455 = vsub.f32 %v3447, %v3451
        %v3456 = vmul.f32 %v3455, 1.442695
        %v3457 = vpow.pop %v3456
        %v3458 = vsel %vm1562, %v3454, 0.0
        %3459 = vadd.xlane.f32.xlu0 %v3458
        %v3460 = vpop.xlane.xlu0 %3459
        %v3461 = vadd.f32 %v3460, %v3457
        %v3462 = vrcp.pop %v3461
        %v3463 = vlaneseq
        %v3464 = vshrl.u32 %v3463, 7
        %v3465 = vsub.s32 3, %v3464
        %v3466 = vrot.slane %v2629, %v3465
        %v3467 = vmul.f32 %v3457, %v3466
        %3468 = vrot.lane.b32.xlu0 %v2623, 16
        %v3469 = vpop.permute.xlu0 %3468
        %v3472 = vsel %vm1562, %v3454, 0
        %3474 = vmatprep.subr.mxu0 0.0
        %3475 = vmatpush1.msra.mxu0 0.0
        %3476 = vmatprep.subr.mxu0 0.0
        %3477 = vmatpush1.msra.mxu0 0.0
        %3478 = vmatprep.subr.mxu0 0.0
        %3479 = vmatpush1.msra.mxu0 0.0
        %3480 = vmatprep.subr.mxu0 0.0
        %3481 = vmatpush1.msra.mxu0 0.0
        %3482 = vmatprep.subr.mxu0 0.0
        %3483 = vmatpush1.msra.mxu0 0.0
        %3484 = vmatprep.subr.mxu0 0.0
        %3485 = vmatpush1.msra.mxu0 0.0
        %3486 = vmatprep.subr.mxu0 0.0
        %3487 = vmatpush1.msra.mxu0 0.0
        %3488 = vmatprep.subr.mxu0 0.0
        %3489 = vmatpush1.msra.mxu0 0.0
        %3490 = vmatprep.subr.mxu0 0.0
        %3491 = vmatpush1.msra.mxu0 0.0
        %3492 = vmatprep.subr.mxu0 0.0
        %3493 = vmatpush1.msra.mxu0 0.0
        %3494 = vmatprep.subr.mxu0 0.0
        %3495 = vmatpush1.msra.mxu0 0.0
        %3496 = vmatprep.subr.mxu0 0.0
        %3497 = vmatpush1.msra.mxu0 0.0
        %3498 = vmatprep.subr.mxu0 0.0
        %3499 = vmatpush1.msra.mxu0 0.0
        %3500 = vmatprep.subr.mxu0 0.0
        %3501 = vmatpush1.msra.mxu0 0.0
        %3502 = vmatprep.subr.mxu0 0.0
        %3503 = vmatpush1.msra.mxu0 0.0
        %3504 = vmatprep.subr.mxu0 0.0
        %3505 = vmatpush1.msra.mxu0 %v3469
        %3506 = vmatprep.subr.mxu0 0.0
        %3507 = vmatpush2.msra.mxu0 0.0
        %3508 = vmatprep.subr.mxu0 0.0
        %3509 = vmatpush2.msra.mxu0 0.0
        %3510 = vmatprep.subr.mxu0 0.0
        %3511 = vmatpush2.msra.mxu0 0.0
        %3512 = vmatprep.subr.mxu0 0.0
        %3513 = vmatpush2.msra.mxu0 0.0
        %3514 = vmatprep.subr.mxu0 0.0
        %3515 = vmatpush2.msra.mxu0 0.0
        %3516 = vmatprep.subr.mxu0 0.0
        %3517 = vmatpush2.msra.mxu0 0.0
        %3518 = vmatprep.subr.mxu0 0.0
        %3519 = vmatpush2.msra.mxu0 0.0
        %3520 = vmatprep.subr.mxu0 0.0
        %3521 = vmatpush2.msra.mxu0 0.0
        %3522 = vmatprep.subr.mxu0 0.0
        %3523 = vmatpush2.msra.mxu0 0.0
        %3524 = vmatprep.subr.mxu0 0.0
        %3525 = vmatpush2.msra.mxu0 0.0
        %3526 = vmatprep.subr.mxu0 0.0
        %3527 = vmatpush2.msra.mxu0 0.0
        %3528 = vmatprep.subr.mxu0 0.0
        %3529 = vmatpush2.msra.mxu0 0.0
        %3530 = vmatprep.subr.mxu0 0.0
        %3531 = vmatpush2.msra.mxu0 0.0
        %3532 = vmatprep.subr.mxu0 0.0
        %3533 = vmatpush2.msra.mxu0 0.0
        %3534 = vmatprep.subr.mxu0 0.0
        %3535 = vmatpush2.msra.mxu0 0.0
        %3536 = vmatprep.subr.mxu0 0.0
        %3537 = vmatpush2.msra.mxu0 0.0
        %3538 = vmatprep.mubr.f32.mxu0 0.0
        %3539 = vmatmul.mubr.f32.gmra.mxu0 %v3472
        %v3540 = vpop.f32.mrf.mxu0
        %v3541 = vadd.f32 %v3467, %v3540
        %v3542 = vpop.f32.mrf.mxu0
        %3543 = vdwg.mxu0
        %v3544 = vmul.f32 %v3541, %v3462
        %3546 = vrot.lane.b32.xlu0 %v3544, 48
        %v3547 = vpop.permute.xlu0 %3546
        %3549 = vst.msk [vmem:[#allocation3] sm:$0xff] %vm2361, %v3547
        %v3550 = vld [vmem:[#allocation3] sm:$0xff]
        %v3551 = vld [vmem:[%s1236] sm:$0xff]
        %v3552 = vld [vmem:[%s1236 + $0x8] sm:$0xff]
        %v3553 = vld [vmem:[%s1236 + $0x10] sm:$0xff]
        %v3554 = vld [vmem:[%s1236 + $0x18] sm:$0xff]
        %v3555 = vld [vmem:[%s1236 + $0x20] sm:$0xff]
        %v3556 = vld [vmem:[%s1236 + $0x28] sm:$0xff]
        %v3557 = vld [vmem:[%s1236 + $0x30] sm:$0xff]
        %v3558 = vld [vmem:[%s1236 + $0x38] sm:$0xff]
        %v3560 = vsel %vm2372, %v3550, 0
        %3562 = vmatprep.subr.mxu0 0.0
        %3563 = vmatpush1.msra.mxu0 0.0
        %3564 = vmatprep.subr.mxu0 0.0
        %3565 = vmatpush1.msra.mxu0 0.0
        %3566 = vmatprep.subr.mxu0 0.0
        %3567 = vmatpush1.msra.mxu0 0.0
        %3568 = vmatprep.subr.mxu0 0.0
        %3569 = vmatpush1.msra.mxu0 0.0
        %3570 = vmatprep.subr.mxu0 0.0
        %3571 = vmatpush1.msra.mxu0 0.0
        %3572 = vmatprep.subr.mxu0 0.0
        %3573 = vmatpush1.msra.mxu0 0.0
        %3574 = vmatprep.subr.mxu0 0.0
        %3575 = vmatpush1.msra.mxu0 0.0
        %3576 = vmatprep.subr.mxu0 0.0
        %3577 = vmatpush1.msra.mxu0 0.0
        %3578 = vmatprep.subr.mxu0 0.0
        %3579 = vmatpush1.msra.mxu0 %v3558
        %3580 = vmatprep.subr.mxu0 0.0
        %3581 = vmatpush1.msra.mxu0 %v3557
        %3582 = vmatprep.subr.mxu0 0.0
        %3583 = vmatpush1.msra.mxu0 %v3556
        %3584 = vmatprep.subr.mxu0 0.0
        %3585 = vmatpush1.msra.mxu0 %v3555
        %3586 = vmatprep.subr.mxu0 0.0
        %3587 = vmatpush1.msra.mxu0 %v3554
        %3588 = vmatprep.subr.mxu0 0.0
        %3589 = vmatpush1.msra.mxu0 %v3553
        %3590 = vmatprep.subr.mxu0 0.0
        %3591 = vmatpush1.msra.mxu0 %v3552
        %3592 = vmatprep.subr.mxu0 0.0
        %3593 = vmatpush1.msra.mxu0 %v3551
        %3594 = vmatprep.subr.mxu0 0.0
        %3595 = vmatpush2.msra.mxu0 0.0
        %3596 = vmatprep.subr.mxu0 0.0
        %3597 = vmatpush2.msra.mxu0 0.0
        %3598 = vmatprep.subr.mxu0 0.0
        %3599 = vmatpush2.msra.mxu0 0.0
        %3600 = vmatprep.subr.mxu0 0.0
        %3601 = vmatpush2.msra.mxu0 0.0
        %3602 = vmatprep.subr.mxu0 0.0
        %3603 = vmatpush2.msra.mxu0 0.0
        %3604 = vmatprep.subr.mxu0 0.0
        %3605 = vmatpush2.msra.mxu0 0.0
        %3606 = vmatprep.subr.mxu0 0.0
        %3607 = vmatpush2.msra.mxu0 0.0
        %3608 = vmatprep.subr.mxu0 0.0
        %3609 = vmatpush2.msra.mxu0 0.0
        %3610 = vmatprep.subr.mxu0 0.0
        %3611 = vmatpush2.msra.mxu0 0.0
        %3612 = vmatprep.subr.mxu0 0.0
        %3613 = vmatpush2.msra.mxu0 0.0
        %3614 = vmatprep.subr.mxu0 0.0
        %3615 = vmatpush2.msra.mxu0 0.0
        %3616 = vmatprep.subr.mxu0 0.0
        %3617 = vmatpush2.msra.mxu0 0.0
        %3618 = vmatprep.subr.mxu0 0.0
        %3619 = vmatpush2.msra.mxu0 0.0
        %3620 = vmatprep.subr.mxu0 0.0
        %3621 = vmatpush2.msra.mxu0 0.0
        %3622 = vmatprep.subr.mxu0 0.0
        %3623 = vmatpush2.msra.mxu0 0.0
        %3624 = vmatprep.subr.mxu0 0.0
        %3625 = vmatpush2.msra.mxu0 0.0
        %3626 = vmatprep.mubr.f32.mxu0 0.0
        %3627 = vmatmul.mubr.f32.gmra.mxu0 %v3560
        %v3628 = vpop.f32.mrf.mxu0
        %v3629 = vadd.f32 0.0, %v3628
        %v3630 = vpop.f32.mrf.mxu0
        %3631 = vdwg.mxu0
        %v3632 = vadd.f32 %v2446, %v3629
        %v3633 = vld [vmem:[%s1013] sm:$0x1]
        %v3634 = vsel %vm1259, %v3632, 0.0
        %3635 = vadd.xlane.f32.xlu0 %v3634
        %v3636 = vpop.xlane.xlu0 %3635
        %v3637 = vmul.f32 %v3636, %v1263
        %v3638 = vsub.f32 %v3632, %v3637
        %v3639 = vmul.f32 %v3638, %v3638
        %v3640 = vsel %vm1259, %v3639, 0.0
        %3641 = vadd.xlane.f32.xlu0 %v3640
        %v3642 = vpop.xlane.xlu0 %3641
        %v3643 = vmul.f32 %v3642, %v1263
        %v3644 = vadd.f32 %v3643, 1e-05
        %v3645 = vrsqrt.pop %v3644
        %v3646 = vmul.f32 %v3638, %v3645
        %v3648 = vlaneseq
        %v3649 = vshrl.u32 %v3648, 7
        %v3650 = vsub.s32 0, %v3649
        %v3651 = vrot.slane %v3633, %v3650
        %v3653 = vmul.f32 %v3646, %v3651
        %v3654 = vld [vmem:[%s1241] sm:$0xff]
        %v3655 = vld [vmem:[%s1241 + $0x8] sm:$0xff]
        %v3656 = vld [vmem:[%s1241 + $0x10] sm:$0xff]
        %v3657 = vld [vmem:[%s1241 + $0x18] sm:$0xff]
        %v3658 = vld [vmem:[%s1241 + $0x20] sm:$0xff]
        %v3659 = vld [vmem:[%s1241 + $0x28] sm:$0xff]
        %v3660 = vld [vmem:[%s1241 + $0x30] sm:$0xff]
        %v3661 = vld [vmem:[%s1241 + $0x38] sm:$0xff]
        %v3662 = vld [vmem:[%s1241 + $0x40] sm:$0xff]
        %v3663 = vld [vmem:[%s1241 + $0x48] sm:$0xff]
        %v3664 = vld [vmem:[%s1241 + $0x50] sm:$0xff]
        %v3665 = vld [vmem:[%s1241 + $0x58] sm:$0xff]
        %v3667 = vsel %vm1259, %v3653, 0
        %3669 = vmatprep.subr.mxu0 0.0
        %3670 = vmatpush1.msra.mxu0 0.0
        %3671 = vmatprep.subr.mxu0 0.0
        %3672 = vmatpush1.msra.mxu0 0.0
        %3673 = vmatprep.subr.mxu0 0.0
        %3674 = vmatpush1.msra.mxu0 0.0
        %3675 = vmatprep.subr.mxu0 0.0
        %3676 = vmatpush1.msra.mxu0 0.0
        %3677 = vmatprep.subr.mxu0 0.0
        %3678 = vmatpush1.msra.mxu0 0.0
        %3679 = vmatprep.subr.mxu0 0.0
        %3680 = vmatpush1.msra.mxu0 0.0
        %3681 = vmatprep.subr.mxu0 0.0
        %3682 = vmatpush1.msra.mxu0 0.0
        %3683 = vmatprep.subr.mxu0 0.0
        %3684 = vmatpush1.msra.mxu0 0.0
        %3685 = vmatprep.subr.mxu0 0.0
        %3686 = vmatpush1.msra.mxu0 0.0
        %3687 = vmatprep.subr.mxu0 0.0
        %3688 = vmatpush1.msra.mxu0 0.0
        %3689 = vmatprep.subr.mxu0 %v3665
        %3690 = vmatpush1.msra.mxu0 %v3664
        %3691 = vmatprep.subr.mxu0 %v3663
        %3692 = vmatpush1.msra.mxu0 %v3662
        %3693 = vmatprep.subr.mxu0 %v3661
        %3694 = vmatpush1.msra.mxu0 %v3660
        %3695 = vmatprep.subr.mxu0 %v3659
        %3696 = vmatpush1.msra.mxu0 %v3658
        %3697 = vmatprep.subr.mxu0 %v3657
        %3698 = vmatpush1.msra.mxu0 %v3656
        %3699 = vmatprep.subr.mxu0 %v3655
        %3700 = vmatpush1.msra.mxu0 %v3654
        %3701 = vmatprep.subr.mxu0 0.0
        %3702 = vmatpush2.msra.mxu0 0.0
        %3703 = vmatprep.subr.mxu0 0.0
        %3704 = vmatpush2.msra.mxu0 0.0
        %3705 = vmatprep.subr.mxu0 0.0
        %3706 = vmatpush2.msra.mxu0 0.0
        %3707 = vmatprep.subr.mxu0 0.0
        %3708 = vmatpush2.msra.mxu0 0.0
        %3709 = vmatprep.subr.mxu0 0.0
        %3710 = vmatpush2.msra.mxu0 0.0
        %3711 = vmatprep.subr.mxu0 0.0
        %3712 = vmatpush2.msra.mxu0 0.0
        %3713 = vmatprep.subr.mxu0 0.0
        %3714 = vmatpush2.msra.mxu0 0.0
        %3715 = vmatprep.subr.mxu0 0.0
        %3716 = vmatpush2.msra.mxu0 0.0
        %3717 = vmatprep.subr.mxu0 0.0
        %3718 = vmatpush2.msra.mxu0 0.0
        %3719 = vmatprep.subr.mxu0 0.0
        %3720 = vmatpush2.msra.mxu0 0.0
        %3721 = vmatprep.subr.mxu0 0.0
        %3722 = vmatpush2.msra.mxu0 0.0
        %3723 = vmatprep.subr.mxu0 0.0
        %3724 = vmatpush2.msra.mxu0 0.0
        %3725 = vmatprep.subr.mxu0 0.0
        %3726 = vmatpush2.msra.mxu0 0.0
        %3727 = vmatprep.subr.mxu0 0.0
        %3728 = vmatpush2.msra.mxu0 0.0
        %3729 = vmatprep.subr.mxu0 0.0
        %3730 = vmatpush2.msra.mxu0 0.0
        %3731 = vmatprep.subr.mxu0 0.0
        %3732 = vmatpush2.msra.mxu0 0.0
        %3733 = vmatprep.mubr.f32.mxu0 0.0
        %3734 = vmatmul.mubr.f32.gmra.mxu0 %v3667
        %v3735 = vpop.f32.mrf.mxu0
        %v3736 = vadd.f32 0.0, %v3735
        %v3737 = vpop.f32.mrf.mxu0
        %v3738 = vadd.f32 0.0, %v3737
        %3739 = vdwg.mxu0
        %v3740 = vmul.f32 %v3736, 0.5
        %v3741 = vmul.f32 %v3736, 0.70710677
        %v3742 = verf.f32.pop %v3741
        %v3743 = vadd.f32 %v3742, 1.0
        %v3744 = vmul.f32 %v3740, %v3743
        %v3745 = vmul.f32 %v3738, %v3744
        %v3746 = vld [vmem:[%s1021] sm:$0x1]
        %3747 = vadd.xlane.f32.xlu0 %v3745
        %v3748 = vpop.xlane.xlu0 %3747
        %v3749 = vrcp.pop 128.0
        %v3750 = vmul.f32 %v3748, %v3749
        %v3751 = vsub.f32 %v3745, %v3750
        %v3752 = vmul.f32 %v3751, %v3751
        %3753 = vadd.xlane.f32.xlu0 %v3752
        %v3754 = vpop.xlane.xlu0 %3753
        %v3755 = vmul.f32 %v3754, %v3749
        %v3756 = vadd.f32 %v3755, 1e-05
        %v3757 = vrsqrt.pop %v3756
        %v3758 = vmul.f32 %v3751, %v3757
        %v3760 = vlaneseq
        %v3761 = vshrl.u32 %v3760, 7
        %v3762 = vsub.s32 0, %v3761
        %v3763 = vrot.slane %v3746, %v3762
        %v3765 = vmul.f32 %v3758, %v3763
        %v3766 = vld [vmem:[%s1246] sm:$0xff]
        %v3767 = vld [vmem:[%s1246 + $0x8] sm:$0xff]
        %v3768 = vld [vmem:[%s1246 + $0x10] sm:$0xff]
        %v3769 = vld [vmem:[%s1246 + $0x18] sm:$0xff]
        %v3770 = vld [vmem:[%s1246 + $0x20] sm:$0xff]
        %v3771 = vld [vmem:[%s1246 + $0x28] sm:$0xff]
        %v3772 = vld [vmem:[%s1246 + $0x30] sm:$0xff]
        %v3773 = vld [vmem:[%s1246 + $0x38] sm:$0xff]
        %v3774 = vld [vmem:[%s1246 + $0x40] sm:$0xff]
        %v3775 = vld [vmem:[%s1246 + $0x48] sm:$0xff]
        %v3776 = vld [vmem:[%s1246 + $0x50] sm:$0xff]
        %v3777 = vld [vmem:[%s1246 + $0x58] sm:$0xff]
        %v3778 = vld [vmem:[%s1246 + $0x60] sm:$0xff]
        %v3779 = vld [vmem:[%s1246 + $0x68] sm:$0xff]
        %v3780 = vld [vmem:[%s1246 + $0x70] sm:$0xff]
        %v3781 = vld [vmem:[%s1246 + $0x78] sm:$0xff]
        %3782 = vmatprep.subr.mxu0 0.0
        %3783 = vmatpush1.msra.mxu0 %v3781
        %3784 = vmatprep.subr.mxu0 0.0
        %3785 = vmatpush1.msra.mxu0 %v3780
        %3786 = vmatprep.subr.mxu0 0.0
        %3787 = vmatpush1.msra.mxu0 %v3779
        %3788 = vmatprep.subr.mxu0 0.0
        %3789 = vmatpush1.msra.mxu0 %v3778
        %3790 = vmatprep.subr.mxu0 0.0
        %3791 = vmatpush1.msra.mxu0 %v3777
        %3792 = vmatprep.subr.mxu0 0.0
        %3793 = vmatpush1.msra.mxu0 %v3776
        %3794 = vmatprep.subr.mxu0 0.0
        %3795 = vmatpush1.msra.mxu0 %v3775
        %3796 = vmatprep.subr.mxu0 0.0
        %3797 = vmatpush1.msra.mxu0 %v3774
        %3798 = vmatprep.subr.mxu0 0.0
        %3799 = vmatpush1.msra.mxu0 %v3773
        %3800 = vmatprep.subr.mxu0 0.0
        %3801 = vmatpush1.msra.mxu0 %v3772
        %3802 = vmatprep.subr.mxu0 0.0
        %3803 = vmatpush1.msra.mxu0 %v3771
        %3804 = vmatprep.subr.mxu0 0.0
        %3805 = vmatpush1.msra.mxu0 %v3770
        %3806 = vmatprep.subr.mxu0 0.0
        %3807 = vmatpush1.msra.mxu0 %v3769
        %3808 = vmatprep.subr.mxu0 0.0
        %3809 = vmatpush1.msra.mxu0 %v3768
        %3810 = vmatprep.subr.mxu0 0.0
        %3811 = vmatpush1.msra.mxu0 %v3767
        %3812 = vmatprep.subr.mxu0 0.0
        %3813 = vmatpush1.msra.mxu0 %v3766
        %3814 = vmatprep.subr.mxu0 0.0
        %3815 = vmatpush2.msra.mxu0 0.0
        %3816 = vmatprep.subr.mxu0 0.0
        %3817 = vmatpush2.msra.mxu0 0.0
        %3818 = vmatprep.subr.mxu0 0.0
        %3819 = vmatpush2.msra.mxu0 0.0
        %3820 = vmatprep.subr.mxu0 0.0
        %3821 = vmatpush2.msra.mxu0 0.0
        %3822 = vmatprep.subr.mxu0 0.0
        %3823 = vmatpush2.msra.mxu0 0.0
        %3824 = vmatprep.subr.mxu0 0.0
        %3825 = vmatpush2.msra.mxu0 0.0
        %3826 = vmatprep.subr.mxu0 0.0
        %3827 = vmatpush2.msra.mxu0 0.0
        %3828 = vmatprep.subr.mxu0 0.0
        %3829 = vmatpush2.msra.mxu0 0.0
        %3830 = vmatprep.subr.mxu0 0.0
        %3831 = vmatpush2.msra.mxu0 0.0
        %3832 = vmatprep.subr.mxu0 0.0
        %3833 = vmatpush2.msra.mxu0 0.0
        %3834 = vmatprep.subr.mxu0 0.0
        %3835 = vmatpush2.msra.mxu0 0.0
        %3836 = vmatprep.subr.mxu0 0.0
        %3837 = vmatpush2.msra.mxu0 0.0
        %3838 = vmatprep.subr.mxu0 0.0
        %3839 = vmatpush2.msra.mxu0 0.0
        %3840 = vmatprep.subr.mxu0 0.0
        %3841 = vmatpush2.msra.mxu0 0.0
        %3842 = vmatprep.subr.mxu0 0.0
        %3843 = vmatpush2.msra.mxu0 0.0
        %3844 = vmatprep.subr.mxu0 0.0
        %3845 = vmatpush2.msra.mxu0 0.0
        %3846 = vmatprep.mubr.f32.mxu0 0.0
        %3847 = vmatmul.mubr.f32.gmra.mxu0 %v3765
        %v3848 = vpop.f32.mrf.mxu0
        %v3849 = vadd.f32 0.0, %v3848
        %v3850 = vpop.f32.mrf.mxu0
        %3851 = vdwg.mxu0
        %v3852 = vadd.f32 %v3632, %v3849
        %3853 = vst.msk [vmem:[#allocation2] sm:$0xff] %vm1259, %v3852
        // Predicated region
        $region149: #{transformer_blocks.1} parent=115 // pred_check
          %p3854 = pneg %p1247
        $region150: #{transformer_blocks.1} parent=115 // pred_check_branch
          %3856 = sbr.rel (%p3854) target = $region152
        $region151: #{transformer_blocks.1} parent=115 // pred_region
          %v3857 = vld [vmem:[%s23] sm:$0x1]
          %v3858 = vsel %vm1259, %v3852, 0.0
          %3859 = vadd.xlane.f32.xlu0 %v3858
          %v3860 = vpop.xlane.xlu0 %3859
          %v3861 = vmul.f32 %v3860, %v1263
          %v3862 = vsub.f32 %v3852, %v3861
          %v3863 = vmul.f32 %v3862, %v3862
          %v3864 = vsel %vm1259, %v3863, 0.0
          %3865 = vadd.xlane.f32.xlu0 %v3864
          %v3866 = vpop.xlane.xlu0 %3865
          %v3867 = vmul.f32 %v3866, %v1263
          %v3868 = vadd.f32 %v3867, 1e-05
          %v3869 = vrsqrt.pop %v3868
          %v3870 = vmul.f32 %v3862, %v3869
          %v3872 = vlaneseq
          %v3873 = vshrl.u32 %v3872, 7
          %v3874 = vsub.s32 0, %v3873
          %v3875 = vrot.slane %v3857, %v3874
          %v3877 = vmul.f32 %v3870, %v3875
          %3878 = vst.msk [vmem:[%s1178] sm:$0xff] %vm1259, %v3877
        $region152: #{transformer_blocks.1} parent=115 // pred_fallthru
          _
        %s3879 = sand.u32 %s689, 1
        %s3880 = scalar_lea.sflag [#allocation6], %s3879
        %s3881 = sand.u32 %s689, 1
        %s3882 = smul.addr %s3881, 8
        %s3883 = scalar_lea.vmem [#allocation16], %s3882
        // Predicated region
        $region153: #{transformer_blocks.1} parent=115 // pred_check
          %p3884 = pneg %p699
        $region154: #{transformer_blocks.1} parent=115 // pred_check_branch
          %3886 = sbr.rel (%p3884) target = $region156
        $region155: #{transformer_blocks.1} parent=115 // pred_region
          %s3888 = ssub.s32 128, 128
          %3889 = vsyncadd %s3880, %s3888
          %s3890 = smul.addr %s54, 128
          %s3891 = scalar_lea.hbm %s24, %s3890
          %s3893 = sshll.u32 %s3883, 4
          %s3894 = int_to_ptr.vmem [resolvable:$true] %s3893
          %3896 = dma.vmem_to_hbm [thread:$0]  %s3894, 128, %s3891, %s3880
        $region156: #{transformer_blocks.1} parent=115 // pred_fallthru
          _
      $region116: #{transformer_blocks.1} parent=5 // pred_fallthru
        _
      %p3897 = scmp.le.s32.totalorder 2, %s45
      // Predicated region
      $region157: #{transformer_blocks.1} parent=5 // pred_check
        %p3898 = pneg %p3897
      $region158: #{transformer_blocks.1} parent=5 // pred_check_branch
        %3900 = sbr.rel (%p3898) target = $region160
      $region159: #{transformer_blocks.1} parent=5 // pred_region
        %s3901 = ssub.s32 %s45, 2
        // Predicated region
        $region161: #{transformer_blocks.1} parent=159 // pred_check
          %p3902 = pneg %p705
        $region162: #{transformer_blocks.1} parent=159 // pred_check_branch
          %3904 = sbr.rel (%p3902) target = $region164
        $region163: #{transformer_blocks.1} parent=159 // pred_region
          %s3905 = sand.u32 %s690, 1
          %s3906 = scalar_lea.sflag [#allocation6], %s3905
          %s3907 = sand.u32 %s690, 1
          %s3908 = smul.addr %s3907, 8
          %s3909 = scalar_lea.vmem [#allocation16], %s3908
          %3910 = dma.done %s3906, 128
        $region164: #{transformer_blocks.1} parent=159 // pred_fallthru
          _
      $region160: #{transformer_blocks.1} parent=5 // pred_fallthru
        _
    $region6: #{transformer_blocks.1} parent=1 // loop_footer
      %s49 = sadd.s32 1, %s45
    $region7: #{transformer_blocks.1} parent=1 // loop_footer_branch
      %44 = sbr.rel target = $region3
    $region8: #{transformer_blocks.1} parent=1 // loop_exit
      _
    %3911 = vsyncpa [#allocation5], 1
    %s3912 = scalar_lea.sflag [#allocation5], 1
    %3913 = vsyncpa %s3912, 1
    %3914 = vsyncpa [#allocation8], 1
    %s3915 = scalar_lea.sflag [#allocation8], 1
    %3916 = vsyncpa %s3915, 1
    %3917 = vsyncpa [#allocation11], 1
    %s3918 = scalar_lea.sflag [#allocation11], 1
    %3919 = vsyncpa %s3918, 1
    %3920 = vsyncpa [#allocation14], 1
    %s3921 = scalar_lea.sflag [#allocation14], 1
    %3922 = vsyncpa %s3921, 1
    %3923 = vsyncpa [#allocation6], 1
    %s3924 = scalar_lea.sflag [#allocation6], 1
    %3925 = vsyncpa %s3924, 1

</llo_original>
